<compile_context>
chip_gen: v6e
topology: v6e:2x2x1
jax: 0.10.0
libtpu: 0.0.40
codegen_flags: <defaults>
</compile_context>

<pallas_src>
import numpy as np
import jax
import jax.numpy as jnp
from jax.experimental import pallas as pl
from jax.experimental.pallas import tpu as pltpu

NUM_HEADS = 16
SP = 27            # spatial size expected by the module (9x9 patches of 3x3)
S9 = 81            # 9 * 9 patches
S27 = SP * SP      # 729 flattened spatial positions
S_M = S27 - 28     # 701: lanes that can hold a 2x2-window top-left corner


# ---------------------------------------------------------------------------
# constant matrices (built once with numpy)
# ---------------------------------------------------------------------------
def _bilinear_matrix_9_to_27():
    """PyTorch F.interpolate(bilinear, align_corners=False) 9 -> 27 matrix."""
    W = np.zeros((27, 9), np.float32)
    for o in range(27):
        src = (o + 0.5) / 3.0 - 0.5
        src = max(src, 0.0)
        i0 = min(int(np.floor(src)), 8)
        i1 = min(i0 + 1, 8)
        w1 = src - i0
        W[o, i0] += 1.0 - w1
        W[o, i1] += w1
    return W


_W1D = _bilinear_matrix_9_to_27()                     # (27, 9)
_WT_BIG = np.kron(_W1D, _W1D).T.astype(np.float32)    # (81, 729): fusion9 @ WT

# 3x3 / stride-3 sum-pooling matrix: POOL[s, p] = 1 iff spatial s lies in patch p
_POOL = np.zeros((S27, S9), np.float32)
for _r in range(SP):
    for _c in range(SP):
        _POOL[_r * SP + _c, (_r // 3) * 9 + (_c // 3)] = 1.0

# patch-corner selection: SEL[s, p] = 1 iff s = 81*i + 3*j is the top-left
# element of patch p = 9*i + j  (max corner lane = 672 < 701)
_SEL = np.zeros((S_M, S9), np.float32)
for _i in range(9):
    for _j in range(9):
        _SEL[81 * _i + 3 * _j, 9 * _i + _j] = 1.0


# ---------------------------------------------------------------------------
# Pallas kernel (one block of Bt batch elements per grid step)
# ---------------------------------------------------------------------------
def la_kernel(x_ref, pool_ref, sel_ref, wt_ref, wmean_ref, f2wc_ref, gc_ref,
              scal_ref, o_ref):
    f1_b = scal_ref[0]            # f1 bias
    vw0 = scal_ref[1]             # v weight (mean branch)
    vw1 = scal_ref[2]             # v weight (max branch)
    C = x_ref.shape[1]
    c_ph = C // NUM_HEADS

    # single load of the x block; reused by both branches and the epilogue
    xf = x_ref[...]
    if xf.dtype != jnp.float32:
        xf = xf.astype(jnp.float32)                                   # (Bt, C, 729)

    # ---- mean branch fused with the f1 1x1 conv ---------------------------
    # wmean[c] = f1_w[head(c)] / (9 * c_ph); POOL sums each 3x3 patch.
    mean_cs = jnp.sum(xf * wmean_ref[...][None, :, :], axis=1)        # (Bt, 729)
    hmean = jnp.dot(mean_cs, pool_ref[...],
                    preferred_element_type=jnp.float32) + f1_b        # (Bt, 81)
    rm = jnp.maximum(hmean, 0.0)

    # ---- max branch, fully in-kernel (no second HBM read of x) ------------
    # 2x2 top-left max of every 3x3 patch via statically shifted slices of the
    # resident block; garbage produced in the top lanes never reaches a patch
    # corner lane (<= 672), and is zeroed by the SEL matmul anyway.
    mcol = jnp.maximum(xf[:, :, :S27 - 1], xf[:, :, 1:])              # (Bt, C, 728)
    m22 = jnp.maximum(mcol[:, :, :S_M], mcol[:, :, SP:SP + S_M])      # (Bt, C, 701)

    # per-head cross-channel max fused with the f1 head contraction
    hmax = None
    for h in range(NUM_HEADS):
        seg = jnp.max(m22[:, h * c_ph:(h + 1) * c_ph, :], axis=1)     # (Bt, 701)
        part = seg * scal_ref[3 + h]                                  # * f1_w[h]
        hmax = part if hmax is None else hmax + part
    rx_all = jnp.maximum(hmax + f1_b, 0.0)                            # (Bt, 701)
    # gather the 81 patch-corner lanes with a 0/1 selection matmul (MXU idle)
    rx = jnp.dot(rx_all, sel_ref[...],
                 preferred_element_type=jnp.float32)                  # (Bt, 81)

    # ---- v fusion + bilinear 9x9 -> 27x27 upsample of the shared profile ---
    t = vw0 * rm + vw1 * rx                                           # (Bt, 81)
    t27 = jnp.dot(t, wt_ref[...],
                  preferred_element_type=jnp.float32)                 # (Bt, 729)

    # ---- per-channel sigmoid gate + residual, one lane-dense store ---------
    # (for very large c_ph a per-head sigmoid + head->channel expansion would
    #  cut EUP work; per-channel keeps the epilogue one vectorized FMA/store)
    gate = jax.nn.sigmoid(f2wc_ref[...][None, :, :] * t27[:, None, :]
                          + gc_ref[...][None, :, :])                  # (Bt, C, 729)
    o_ref[...] = (xf * (1.0 + gate)).astype(o_ref.dtype)              # x*sig + x


# ---------------------------------------------------------------------------
# generation-aware tiling helpers
# ---------------------------------------------------------------------------
def _tpu_vmem_bytes():
    """Physical VMEM of the current TPU generation (fallback: v7x's 64 MiB)."""
    try:
        info = pltpu.get_tpu_info()
        for attr in ("vmem_capacity_bytes", "vmem_bytes", "vmem_size_bytes"):
            v = getattr(info, attr, None)
            if v:
                return int(v)
    except Exception:
        pass
    return 64 * 1024 * 1024


def _vmem_budget_bytes():
    phys = _tpu_vmem_bytes()
    # v5e/v6e: 128 MiB physical, raising the scoped limit to 64 MiB is free and
    # lets blocks grow to HBM-roofline sizes.  v7x: only 64 MiB per TensorCore,
    # stay around the 40 MiB mark.
    return (64 if phys >= 96 * 1024 * 1024 else 40) * 1024 * 1024


def _pick_block_b(B, C, itemsize):
    """Batch tile sized from bytes (not a fixed element count)."""
    budget = _vmem_budget_bytes()
    fixed = 8 * 1024 * 1024                 # pool/sel/wt constants + slack
    # per batch element: double-buffered in+out blocks + ~6 f32 block temps
    per_b = C * S27 * (4 * itemsize + 24)
    bt = int(max(1, min(B, (budget - fixed) // per_b)))
    # keep >= 2 grid steps when B allows: gives the pipeline something to
    # overlap and lets v7x shard the 'parallel' batch axis over both TCs
    if bt >= B and B > 1:
        bt = (B + 1) // 2
    # cdiv tiling: balance the tile across the steps (minimal tail padding)
    steps = -(-B // bt)
    bt = -(-B // steps)
    # prefer a nearby exact divisor of B so no tail-padding copy is needed
    if B % bt:
        for d in range(bt, max(1, (3 * bt) // 4) - 1, -1):
            if B % d == 0:
                return d
    return bt


# ---------------------------------------------------------------------------
# wrapper
# ---------------------------------------------------------------------------
def la_forward(x, params, block_b=None):
    B, C, H, Wd = x.shape
    assert H == SP and Wd == SP and C % NUM_HEADS == 0
    c_ph = C // NUM_HEADS
    f1_w, f1_b, f2_w, f2_b, v_w, v_b = params

    x_flat = x.reshape(B, C, S27)                         # free, lane-dense view

    # small per-channel / per-head parameter vectors (head -> channel expansion
    # done here so the kernel epilogue is a plain shape-matched FMA)
    f1_w32 = f1_w.astype(jnp.float32)
    wmean = (jnp.repeat(f1_w32, c_ph) / (9.0 * c_ph)).reshape(C, 1)        # (C,1)
    f2wc = jnp.repeat(f2_w.astype(jnp.float32), c_ph).reshape(C, 1)        # (C,1)
    g_head = f2_b.astype(jnp.float32) * (v_w[0] + v_w[1]) + v_b[0]         # (16,)
    gc = jnp.repeat(g_head, c_ph).reshape(C, 1)                            # (C,1)
    scal = jnp.concatenate(
        [jnp.stack([f1_b[0], v_w[0], v_w[1]]), f1_w32]).astype(jnp.float32)  # (19,)

    pool = jnp.asarray(_POOL)                                              # (729, 81)
    sel = jnp.asarray(_SEL)                                                # (701, 81)
    wt = jnp.asarray(_WT_BIG)                                              # (81, 729)

    Bt = block_b if block_b is not None else _pick_block_b(B, C, x.dtype.itemsize)
    grid_b = -(-B // Bt)
    B_pad = grid_b * Bt
    if B_pad != B:                         # cdiv tiling: pad the ragged tail
        x_flat = jnp.pad(x_flat, ((0, B_pad - B), (0, 0), (0, 0)))

    out_flat = pl.pallas_call(
        la_kernel,
        out_shape=jax.ShapeDtypeStruct((B_pad, C, S27), x.dtype),
        grid_spec=pltpu.PrefetchScalarGridSpec(
            num_scalar_prefetch=0,
            grid=(grid_b,),
            in_specs=[
                pl.BlockSpec((Bt, C, S27), lambda i: (i, 0, 0)),       # x block
                pl.BlockSpec((S27, S9), lambda i: (0, 0)),             # POOL
                pl.BlockSpec((S_M, S9), lambda i: (0, 0)),             # SEL
                pl.BlockSpec((S9, S27), lambda i: (0, 0)),             # bilinear
                pl.BlockSpec((C, 1), lambda i: (0, 0)),                # wmean
                pl.BlockSpec((C, 1), lambda i: (0, 0)),                # f2w per chan
                pl.BlockSpec((C, 1), lambda i: (0, 0)),                # g per chan
                pl.BlockSpec(memory_space=pltpu.MemorySpace.SMEM),     # scalars
            ],
            out_specs=pl.BlockSpec((Bt, C, S27), lambda i: (i, 0, 0)),
        ),
        compiler_params=pltpu.CompilerParams(
            dimension_semantics=("parallel",),
            vmem_limit_bytes=int(_vmem_budget_bytes())),
    )(x_flat, pool, sel, wt, wmean, f2wc, gc, scal)

    return out_flat[:B].reshape(B, C, SP, SP)


# ---------------------------------------------------------------------------
# pure-JAX reference (mirrors the PyTorch module)
# ---------------------------------------------------------------------------
def la_reference(x, params):
    B, C, _, _ = x.shape
    c_ph = C // NUM_HEADS
    f1_w, f1_b, f2_w, f2_b, v_w, v_b = params
    W = jnp.asarray(_W1D)
    hp = jax.lax.Precision.HIGHEST

    x6 = x.reshape(B, NUM_HEADS, c_ph, 9, 3, 9, 3)
    means = x6.mean(axis=(2, 4, 6))                              # (B,16,9,9)
    maxs = x6[:, :, :, :, 0:2, :, 0:2].max(axis=(2, 4, 6))       # (B,16,9,9)

    def mlp(f):
        h = jnp.einsum('p,bpij->bij', f1_w, f, precision=hp) + f1_b[0]
        h = jnp.maximum(h, 0.0)
        return (f2_w[None, :, None, None] * h[:, None, :, :]
                + f2_b[None, :, None, None])

    mf = mlp(means)
    xfm = mlp(maxs)
    fusion9 = v_w[0] * mf + v_w[1] * xfm + v_b[0]                # (B,16,9,9)
    fusion27 = jnp.einsum('oi,bhij,pj->bhop', W, fusion9, W, precision=hp)
    gate = jax.nn.sigmoid(fusion27)
    out = x.reshape(B, NUM_HEADS, c_ph, SP, SP) * (1.0 + gate[:, :, None])
    return out.reshape(B, C, SP, SP)


if __name__ == "__main__":
    key = jax.random.PRNGKey(0)
    ks = jax.random.split(key, 7)
    B, C = 2, 32                                   # C must be a multiple of 16
    x = jax.random.normal(ks[0], (B, C, SP, SP), jnp.float32)

    f1_w = jax.random.normal(ks[1], (NUM_HEADS,), jnp.float32) * 0.25
    f1_b = jax.random.normal(ks[2], (1,), jnp.float32) * 0.1
    f2_w = jax.random.normal(ks[3], (NUM_HEADS,), jnp.float32) * 0.25
    f2_b = jax.random.normal(ks[4], (NUM_HEADS,), jnp.float32) * 0.1
    v_w = jax.random.normal(ks[5], (2,), jnp.float32) * 0.25
    v_b = jax.random.normal(ks[6], (1,), jnp.float32) * 0.1
    params = (f1_w, f1_b, f2_w, f2_b, v_w, v_b)

    out = jax.block_until_ready(jax.jit(la_forward)(x, params))
    ref = la_reference(x, params)

    assert out.shape == x.shape
    max_err = float(jnp.max(jnp.abs(out - ref)))
    # small margin over exact f32 for transcendental / matmul-pass differences
    assert max_err < 2e-4, f"max abs error too large: {max_err}"
    print("KERNEL_OK")
</pallas_src>

<mosaic_0001>
module attributes {stable_mosaic.version = 11 : i64} {
  func.func @la_kernel(%arg0: i32, %arg1: memref<1x32x729xf32, #tpu.memory_space<vmem>>, %arg2: memref<729x81xf32, #tpu.memory_space<vmem>>, %arg3: memref<701x81xf32, #tpu.memory_space<vmem>>, %arg4: memref<81x729xf32, #tpu.memory_space<vmem>>, %arg5: memref<32x1xf32, #tpu.memory_space<vmem>>, %arg6: memref<32x1xf32, #tpu.memory_space<vmem>>, %arg7: memref<32x1xf32, #tpu.memory_space<vmem>>, %arg8: memref<19xf32, #tpu.memory_space<smem>>, %arg9: memref<1x32x729xf32, #tpu.memory_space<vmem>>) attributes {dimension_semantics = [#tpu.dimension_semantics<parallel>], iteration_bounds = array<i64: 2>, scalar_prefetch = 0 : i64, scratch_operands = 0 : i64, tpu.core_type = #tpu.core_type<tc>, window_params = [{transform_indices = @transform_0, window_bounds = array<i64: 1, 32, 729>}, {pipeline_mode = #tpu.pipeline_mode<synchronous>, transform_indices = @transform_1, window_bounds = array<i64: 729, 81>}, {pipeline_mode = #tpu.pipeline_mode<synchronous>, transform_indices = @transform_2, window_bounds = array<i64: 701, 81>}, {pipeline_mode = #tpu.pipeline_mode<synchronous>, transform_indices = @transform_3, window_bounds = array<i64: 81, 729>}, {pipeline_mode = #tpu.pipeline_mode<synchronous>, transform_indices = @transform_4, window_bounds = array<i64: 32, 1>}, {pipeline_mode = #tpu.pipeline_mode<synchronous>, transform_indices = @transform_5, window_bounds = array<i64: 32, 1>}, {pipeline_mode = #tpu.pipeline_mode<synchronous>, transform_indices = @transform_6, window_bounds = array<i64: 32, 1>}, {transform_indices = @transform_7, window_bounds = array<i64: 19>}, {transform_indices = @transform_8, window_bounds = array<i64: 1, 32, 729>}]} {
    %c0 = arith.constant 0 : index
    %0 = memref.load %arg8[%c0] : memref<19xf32, #tpu.memory_space<smem>>
    %c1 = arith.constant 1 : index
    %1 = memref.load %arg8[%c1] : memref<19xf32, #tpu.memory_space<smem>>
    %c2 = arith.constant 2 : index
    %2 = memref.load %arg8[%c2] : memref<19xf32, #tpu.memory_space<smem>>
    %c0_0 = arith.constant 0 : index
    %c0_1 = arith.constant 0 : index
    %c0_2 = arith.constant 0 : index
    %3 = vector.load %arg1[%c0_0, %c0_1, %c0_2] : memref<1x32x729xf32, #tpu.memory_space<vmem>>, vector<1x32x729xf32>
    %c0_3 = arith.constant 0 : index
    %c0_4 = arith.constant 0 : index
    %4 = vector.load %arg5[%c0_3, %c0_4] : memref<32x1xf32, #tpu.memory_space<vmem>>, vector<32x1xf32>
    %5 = vector.shape_cast %4 : vector<32x1xf32> to vector<1x32x1xf32>
    %6 = vector.broadcast %5 : vector<1x32x1xf32> to vector<1x32x729xf32>
    %7 = arith.mulf %3, %6 : vector<1x32x729xf32>
    %cst = arith.constant dense<0.000000e+00> : vector<1x729xf32>
    %8 = vector.multi_reduction <add>, %7, %cst [1] : vector<1x32x729xf32> to vector<1x729xf32>
    %c0_5 = arith.constant 0 : index
    %c0_6 = arith.constant 0 : index
    %9 = vector.load %arg2[%c0_5, %c0_6] : memref<729x81xf32, #tpu.memory_space<vmem>>, vector<729x81xf32>
    %cst_7 = arith.constant dense<0.000000e+00> : vector<1x81xf32>
    %10 = tpu.matmul %8, %9, %cst_7 {dimension_numbers = #tpu.dot_dimension_numbers<[1], [0], [0], [1], [0, 0, 1, 1], [], []>} : vector<1x729xf32>, vector<729x81xf32>, vector<1x81xf32> -> vector<1x81xf32>
    %11 = vector.broadcast %0 : f32 to vector<1x81xf32>
    %12 = arith.addf %10, %11 : vector<1x81xf32>
    %cst_8 = arith.constant 0.000000e+00 : f32
    %13 = vector.broadcast %cst_8 : f32 to vector<1x81xf32>
    %14 = arith.maximumf %12, %13 : vector<1x81xf32>
    %15 = vector.extract_strided_slice %3 {offsets = [0, 0, 0], sizes = [1, 32, 728], strides = [1, 1, 1]} : vector<1x32x729xf32> to vector<1x32x728xf32>
    %16 = vector.extract_strided_slice %3 {offsets = [0, 0, 1], sizes = [1, 32, 728], strides = [1, 1, 1]} : vector<1x32x729xf32> to vector<1x32x728xf32>
    %17 = arith.maximumf %15, %16 : vector<1x32x728xf32>
    %18 = vector.extract_strided_slice %17 {offsets = [0, 0, 0], sizes = [1, 32, 701], strides = [1, 1, 1]} : vector<1x32x728xf32> to vector<1x32x701xf32>
    %19 = vector.extract_strided_slice %17 {offsets = [0, 0, 27], sizes = [1, 32, 701], strides = [1, 1, 1]} : vector<1x32x728xf32> to vector<1x32x701xf32>
    %20 = arith.maximumf %18, %19 : vector<1x32x701xf32>
    %21 = vector.extract_strided_slice %20 {offsets = [0, 0, 0], sizes = [1, 2, 701], strides = [1, 1, 1]} : vector<1x32x701xf32> to vector<1x2x701xf32>
    %cst_9 = arith.constant dense<0xFF800000> : vector<1x701xf32>
    %22 = vector.multi_reduction <maximumf>, %21, %cst_9 [1] : vector<1x2x701xf32> to vector<1x701xf32>
    %c3 = arith.constant 3 : index
    %23 = memref.load %arg8[%c3] : memref<19xf32, #tpu.memory_space<smem>>
    %24 = vector.broadcast %23 : f32 to vector<1x701xf32>
    %25 = arith.mulf %22, %24 : vector<1x701xf32>
    %26 = vector.extract_strided_slice %20 {offsets = [0, 2, 0], sizes = [1, 2, 701], strides = [1, 1, 1]} : vector<1x32x701xf32> to vector<1x2x701xf32>
    %cst_10 = arith.constant dense<0xFF800000> : vector<1x701xf32>
    %27 = vector.multi_reduction <maximumf>, %26, %cst_10 [1] : vector<1x2x701xf32> to vector<1x701xf32>
    %c4 = arith.constant 4 : index
    %28 = memref.load %arg8[%c4] : memref<19xf32, #tpu.memory_space<smem>>
    %29 = vector.broadcast %28 : f32 to vector<1x701xf32>
    %30 = arith.mulf %27, %29 : vector<1x701xf32>
    %31 = arith.addf %25, %30 : vector<1x701xf32>
    %32 = vector.extract_strided_slice %20 {offsets = [0, 4, 0], sizes = [1, 2, 701], strides = [1, 1, 1]} : vector<1x32x701xf32> to vector<1x2x701xf32>
    %cst_11 = arith.constant dense<0xFF800000> : vector<1x701xf32>
    %33 = vector.multi_reduction <maximumf>, %32, %cst_11 [1] : vector<1x2x701xf32> to vector<1x701xf32>
    %c5 = arith.constant 5 : index
    %34 = memref.load %arg8[%c5] : memref<19xf32, #tpu.memory_space<smem>>
    %35 = vector.broadcast %34 : f32 to vector<1x701xf32>
    %36 = arith.mulf %33, %35 : vector<1x701xf32>
    %37 = arith.addf %31, %36 : vector<1x701xf32>
    %38 = vector.extract_strided_slice %20 {offsets = [0, 6, 0], sizes = [1, 2, 701], strides = [1, 1, 1]} : vector<1x32x701xf32> to vector<1x2x701xf32>
    %cst_12 = arith.constant dense<0xFF800000> : vector<1x701xf32>
    %39 = vector.multi_reduction <maximumf>, %38, %cst_12 [1] : vector<1x2x701xf32> to vector<1x701xf32>
    %c6 = arith.constant 6 : index
    %40 = memref.load %arg8[%c6] : memref<19xf32, #tpu.memory_space<smem>>
    %41 = vector.broadcast %40 : f32 to vector<1x701xf32>
    %42 = arith.mulf %39, %41 : vector<1x701xf32>
    %43 = arith.addf %37, %42 : vector<1x701xf32>
    %44 = vector.extract_strided_slice %20 {offsets = [0, 8, 0], sizes = [1, 2, 701], strides = [1, 1, 1]} : vector<1x32x701xf32> to vector<1x2x701xf32>
    %cst_13 = arith.constant dense<0xFF800000> : vector<1x701xf32>
    %45 = vector.multi_reduction <maximumf>, %44, %cst_13 [1] : vector<1x2x701xf32> to vector<1x701xf32>
    %c7 = arith.constant 7 : index
    %46 = memref.load %arg8[%c7] : memref<19xf32, #tpu.memory_space<smem>>
    %47 = vector.broadcast %46 : f32 to vector<1x701xf32>
    %48 = arith.mulf %45, %47 : vector<1x701xf32>
    %49 = arith.addf %43, %48 : vector<1x701xf32>
    %50 = vector.extract_strided_slice %20 {offsets = [0, 10, 0], sizes = [1, 2, 701], strides = [1, 1, 1]} : vector<1x32x701xf32> to vector<1x2x701xf32>
    %cst_14 = arith.constant dense<0xFF800000> : vector<1x701xf32>
    %51 = vector.multi_reduction <maximumf>, %50, %cst_14 [1] : vector<1x2x701xf32> to vector<1x701xf32>
    %c8 = arith.constant 8 : index
    %52 = memref.load %arg8[%c8] : memref<19xf32, #tpu.memory_space<smem>>
    %53 = vector.broadcast %52 : f32 to vector<1x701xf32>
    %54 = arith.mulf %51, %53 : vector<1x701xf32>
    %55 = arith.addf %49, %54 : vector<1x701xf32>
    %56 = vector.extract_strided_slice %20 {offsets = [0, 12, 0], sizes = [1, 2, 701], strides = [1, 1, 1]} : vector<1x32x701xf32> to vector<1x2x701xf32>
    %cst_15 = arith.constant dense<0xFF800000> : vector<1x701xf32>
    %57 = vector.multi_reduction <maximumf>, %56, %cst_15 [1] : vector<1x2x701xf32> to vector<1x701xf32>
    %c9 = arith.constant 9 : index
    %58 = memref.load %arg8[%c9] : memref<19xf32, #tpu.memory_space<smem>>
    %59 = vector.broadcast %58 : f32 to vector<1x701xf32>
    %60 = arith.mulf %57, %59 : vector<1x701xf32>
    %61 = arith.addf %55, %60 : vector<1x701xf32>
    %62 = vector.extract_strided_slice %20 {offsets = [0, 14, 0], sizes = [1, 2, 701], strides = [1, 1, 1]} : vector<1x32x701xf32> to vector<1x2x701xf32>
    %cst_16 = arith.constant dense<0xFF800000> : vector<1x701xf32>
    %63 = vector.multi_reduction <maximumf>, %62, %cst_16 [1] : vector<1x2x701xf32> to vector<1x701xf32>
    %c10 = arith.constant 10 : index
    %64 = memref.load %arg8[%c10] : memref<19xf32, #tpu.memory_space<smem>>
    %65 = vector.broadcast %64 : f32 to vector<1x701xf32>
    %66 = arith.mulf %63, %65 : vector<1x701xf32>
    %67 = arith.addf %61, %66 : vector<1x701xf32>
    %68 = vector.extract_strided_slice %20 {offsets = [0, 16, 0], sizes = [1, 2, 701], strides = [1, 1, 1]} : vector<1x32x701xf32> to vector<1x2x701xf32>
    %cst_17 = arith.constant dense<0xFF800000> : vector<1x701xf32>
    %69 = vector.multi_reduction <maximumf>, %68, %cst_17 [1] : vector<1x2x701xf32> to vector<1x701xf32>
    %c11 = arith.constant 11 : index
    %70 = memref.load %arg8[%c11] : memref<19xf32, #tpu.memory_space<smem>>
    %71 = vector.broadcast %70 : f32 to vector<1x701xf32>
    %72 = arith.mulf %69, %71 : vector<1x701xf32>
    %73 = arith.addf %67, %72 : vector<1x701xf32>
    %74 = vector.extract_strided_slice %20 {offsets = [0, 18, 0], sizes = [1, 2, 701], strides = [1, 1, 1]} : vector<1x32x701xf32> to vector<1x2x701xf32>
    %cst_18 = arith.constant dense<0xFF800000> : vector<1x701xf32>
    %75 = vector.multi_reduction <maximumf>, %74, %cst_18 [1] : vector<1x2x701xf32> to vector<1x701xf32>
    %c12 = arith.constant 12 : index
    %76 = memref.load %arg8[%c12] : memref<19xf32, #tpu.memory_space<smem>>
    %77 = vector.broadcast %76 : f32 to vector<1x701xf32>
    %78 = arith.mulf %75, %77 : vector<1x701xf32>
    %79 = arith.addf %73, %78 : vector<1x701xf32>
    %80 = vector.extract_strided_slice %20 {offsets = [0, 20, 0], sizes = [1, 2, 701], strides = [1, 1, 1]} : vector<1x32x701xf32> to vector<1x2x701xf32>
    %cst_19 = arith.constant dense<0xFF800000> : vector<1x701xf32>
    %81 = vector.multi_reduction <maximumf>, %80, %cst_19 [1] : vector<1x2x701xf32> to vector<1x701xf32>
    %c13 = arith.constant 13 : index
    %82 = memref.load %arg8[%c13] : memref<19xf32, #tpu.memory_space<smem>>
    %83 = vector.broadcast %82 : f32 to vector<1x701xf32>
    %84 = arith.mulf %81, %83 : vector<1x701xf32>
    %85 = arith.addf %79, %84 : vector<1x701xf32>
    %86 = vector.extract_strided_slice %20 {offsets = [0, 22, 0], sizes = [1, 2, 701], strides = [1, 1, 1]} : vector<1x32x701xf32> to vector<1x2x701xf32>
    %cst_20 = arith.constant dense<0xFF800000> : vector<1x701xf32>
    %87 = vector.multi_reduction <maximumf>, %86, %cst_20 [1] : vector<1x2x701xf32> to vector<1x701xf32>
    %c14 = arith.constant 14 : index
    %88 = memref.load %arg8[%c14] : memref<19xf32, #tpu.memory_space<smem>>
    %89 = vector.broadcast %88 : f32 to vector<1x701xf32>
    %90 = arith.mulf %87, %89 : vector<1x701xf32>
    %91 = arith.addf %85, %90 : vector<1x701xf32>
    %92 = vector.extract_strided_slice %20 {offsets = [0, 24, 0], sizes = [1, 2, 701], strides = [1, 1, 1]} : vector<1x32x701xf32> to vector<1x2x701xf32>
    %cst_21 = arith.constant dense<0xFF800000> : vector<1x701xf32>
    %93 = vector.multi_reduction <maximumf>, %92, %cst_21 [1] : vector<1x2x701xf32> to vector<1x701xf32>
    %c15 = arith.constant 15 : index
    %94 = memref.load %arg8[%c15] : memref<19xf32, #tpu.memory_space<smem>>
    %95 = vector.broadcast %94 : f32 to vector<1x701xf32>
    %96 = arith.mulf %93, %95 : vector<1x701xf32>
    %97 = arith.addf %91, %96 : vector<1x701xf32>
    %98 = vector.extract_strided_slice %20 {offsets = [0, 26, 0], sizes = [1, 2, 701], strides = [1, 1, 1]} : vector<1x32x701xf32> to vector<1x2x701xf32>
    %cst_22 = arith.constant dense<0xFF800000> : vector<1x701xf32>
    %99 = vector.multi_reduction <maximumf>, %98, %cst_22 [1] : vector<1x2x701xf32> to vector<1x701xf32>
    %c16 = arith.constant 16 : index
    %100 = memref.load %arg8[%c16] : memref<19xf32, #tpu.memory_space<smem>>
    %101 = vector.broadcast %100 : f32 to vector<1x701xf32>
    %102 = arith.mulf %99, %101 : vector<1x701xf32>
    %103 = arith.addf %97, %102 : vector<1x701xf32>
    %104 = vector.extract_strided_slice %20 {offsets = [0, 28, 0], sizes = [1, 2, 701], strides = [1, 1, 1]} : vector<1x32x701xf32> to vector<1x2x701xf32>
    %cst_23 = arith.constant dense<0xFF800000> : vector<1x701xf32>
    %105 = vector.multi_reduction <maximumf>, %104, %cst_23 [1] : vector<1x2x701xf32> to vector<1x701xf32>
    %c17 = arith.constant 17 : index
    %106 = memref.load %arg8[%c17] : memref<19xf32, #tpu.memory_space<smem>>
    %107 = vector.broadcast %106 : f32 to vector<1x701xf32>
    %108 = arith.mulf %105, %107 : vector<1x701xf32>
    %109 = arith.addf %103, %108 : vector<1x701xf32>
    %110 = vector.extract_strided_slice %20 {offsets = [0, 30, 0], sizes = [1, 2, 701], strides = [1, 1, 1]} : vector<1x32x701xf32> to vector<1x2x701xf32>
    %cst_24 = arith.constant dense<0xFF800000> : vector<1x701xf32>
    %111 = vector.multi_reduction <maximumf>, %110, %cst_24 [1] : vector<1x2x701xf32> to vector<1x701xf32>
    %c18 = arith.constant 18 : index
    %112 = memref.load %arg8[%c18] : memref<19xf32, #tpu.memory_space<smem>>
    %113 = vector.broadcast %112 : f32 to vector<1x701xf32>
    %114 = arith.mulf %111, %113 : vector<1x701xf32>
    %115 = arith.addf %109, %114 : vector<1x701xf32>
    %116 = vector.broadcast %0 : f32 to vector<1x701xf32>
    %117 = arith.addf %115, %116 : vector<1x701xf32>
    %cst_25 = arith.constant 0.000000e+00 : f32
    %118 = vector.broadcast %cst_25 : f32 to vector<1x701xf32>
    %119 = arith.maximumf %117, %118 : vector<1x701xf32>
    %c0_26 = arith.constant 0 : index
    %c0_27 = arith.constant 0 : index
    %120 = vector.load %arg3[%c0_26, %c0_27] : memref<701x81xf32, #tpu.memory_space<vmem>>, vector<701x81xf32>
    %cst_28 = arith.constant dense<0.000000e+00> : vector<1x81xf32>
    %121 = tpu.matmul %119, %120, %cst_28 {dimension_numbers = #tpu.dot_dimension_numbers<[1], [0], [0], [1], [0, 0, 1, 1], [], []>} : vector<1x701xf32>, vector<701x81xf32>, vector<1x81xf32> -> vector<1x81xf32>
    %122 = vector.broadcast %1 : f32 to vector<1x81xf32>
    %123 = arith.mulf %122, %14 : vector<1x81xf32>
    %124 = vector.broadcast %2 : f32 to vector<1x81xf32>
    %125 = arith.mulf %124, %121 : vector<1x81xf32>
    %126 = arith.addf %123, %125 : vector<1x81xf32>
    %c0_29 = arith.constant 0 : index
    %c0_30 = arith.constant 0 : index
    %127 = vector.load %arg4[%c0_29, %c0_30] : memref<81x729xf32, #tpu.memory_space<vmem>>, vector<81x729xf32>
    %cst_31 = arith.constant dense<0.000000e+00> : vector<1x729xf32>
    %128 = tpu.matmul %126, %127, %cst_31 {dimension_numbers = #tpu.dot_dimension_numbers<[1], [0], [0], [1], [0, 0, 1, 1], [], []>} : vector<1x81xf32>, vector<81x729xf32>, vector<1x729xf32> -> vector<1x729xf32>
    %c0_32 = arith.constant 0 : index
    %c0_33 = arith.constant 0 : index
    %129 = vector.load %arg6[%c0_32, %c0_33] : memref<32x1xf32, #tpu.memory_space<vmem>>, vector<32x1xf32>
    %130 = vector.shape_cast %129 : vector<32x1xf32> to vector<1x32x1xf32>
    %131 = vector.shape_cast %128 : vector<1x729xf32> to vector<1x1x729xf32>
    %132 = vector.broadcast %130 : vector<1x32x1xf32> to vector<1x32x729xf32>
    %133 = vector.broadcast %131 : vector<1x1x729xf32> to vector<1x32x729xf32>
    %134 = arith.mulf %132, %133 : vector<1x32x729xf32>
    %c0_34 = arith.constant 0 : index
    %c0_35 = arith.constant 0 : index
    %135 = vector.load %arg7[%c0_34, %c0_35] : memref<32x1xf32, #tpu.memory_space<vmem>>, vector<32x1xf32>
    %136 = vector.shape_cast %135 : vector<32x1xf32> to vector<1x32x1xf32>
    %137 = vector.broadcast %136 : vector<1x32x1xf32> to vector<1x32x729xf32>
    %138 = arith.addf %134, %137 : vector<1x32x729xf32>
    %139 = arith.negf %138 : vector<1x32x729xf32>
    %140 = math.exp %139 : vector<1x32x729xf32>
    %cst_36 = arith.constant 1.000000e+00 : f32
    %141 = vector.broadcast %cst_36 : f32 to vector<1x32x729xf32>
    %142 = arith.addf %141, %140 : vector<1x32x729xf32>
    %143 = arith.divf %141, %142 : vector<1x32x729xf32>
    %cst_37 = arith.constant 1.000000e+00 : f32
    %144 = vector.broadcast %cst_37 : f32 to vector<1x32x729xf32>
    %145 = arith.addf %144, %143 : vector<1x32x729xf32>
    %146 = arith.mulf %3, %145 : vector<1x32x729xf32>
    %c0_38 = arith.constant 0 : index
    %c0_39 = arith.constant 0 : index
    %c0_40 = arith.constant 0 : index
    %147 = vector.load %arg9[%c0_38, %c0_39, %c0_40] : memref<1x32x729xf32, #tpu.memory_space<vmem>>, vector<1x32x729xf32>
    tpu.vector_store %arg9[%c0_38, %c0_39, %c0_40], %146 {strides = array<i32>} : memref<1x32x729xf32, #tpu.memory_space<vmem>>, vector<1x32x729xf32>,
    return
  }
  func.func @transform_0(%arg0: i32) -> (i32, i32, i32) {
    %c0_i32 = arith.constant 0 : i32
    %c0_i32_0 = arith.constant 0 : i32
    %c0_i32_1 = arith.constant 0 : i32
    return %arg0, %c0_i32, %c0_i32_0 : i32, i32, i32
  }
  func.func @transform_1(%arg0: i32) -> (i32, i32) {
    %c0_i32 = arith.constant 0 : i32
    %c0_i32_0 = arith.constant 0 : i32
    %c0_i32_1 = arith.constant 0 : i32
    return %c0_i32, %c0_i32_0 : i32, i32
  }
  func.func @transform_2(%arg0: i32) -> (i32, i32) {
    %c0_i32 = arith.constant 0 : i32
    %c0_i32_0 = arith.constant 0 : i32
    %c0_i32_1 = arith.constant 0 : i32
    return %c0_i32, %c0_i32_0 : i32, i32
  }
  func.func @transform_3(%arg0: i32) -> (i32, i32) {
    %c0_i32 = arith.constant 0 : i32
    %c0_i32_0 = arith.constant 0 : i32
    %c0_i32_1 = arith.constant 0 : i32
    return %c0_i32, %c0_i32_0 : i32, i32
  }
  func.func @transform_4(%arg0: i32) -> (i32, i32) {
    %c0_i32 = arith.constant 0 : i32
    %c0_i32_0 = arith.constant 0 : i32
    %c0_i32_1 = arith.constant 0 : i32
    return %c0_i32, %c0_i32_0 : i32, i32
  }
  func.func @transform_5(%arg0: i32) -> (i32, i32) {
    %c0_i32 = arith.constant 0 : i32
    %c0_i32_0 = arith.constant 0 : i32
    %c0_i32_1 = arith.constant 0 : i32
    return %c0_i32, %c0_i32_0 : i32, i32
  }
  func.func @transform_6(%arg0: i32) -> (i32, i32) {
    %c0_i32 = arith.constant 0 : i32
    %c0_i32_0 = arith.constant 0 : i32
    %c0_i32_1 = arith.constant 0 : i32
    return %c0_i32, %c0_i32_0 : i32, i32
  }
  func.func @transform_7(%arg0: i32) -> i32 {
    %c0_i32 = arith.constant 0 : i32
    %c0_i32_0 = arith.constant 0 : i32
    return %c0_i32 : i32
  }
  func.func @transform_8(%arg0: i32) -> (i32, i32, i32) {
    %c0_i32 = arith.constant 0 : i32
    %c0_i32_0 = arith.constant 0 : i32
    %c0_i32_1 = arith.constant 0 : i32
    return %arg0, %c0_i32, %c0_i32_0 : i32, i32, i32
  }
}

</mosaic_0001>

<llo_original>
// kernel: la_forward.1
$region0: #{la_forward.1}
  #allocation0 [shape = 'u32[]', space=smem, size = 0x4, offset = 0x4, fixed_abs, tag = 'smem constant byte address 0x4 - core index']
  #allocation1 [shape = 'u32[144,128]{1,0:T(1,128)}', space=vmem, size = 0x12000, scoped, tag = 'internal scratch']
  %s0 = inlined_call_operand.vmem [shape: f32[2,32,729], index: 0, kind: input, shape index: {}]
  %s1 = inlined_call_operand.vmem [shape: f32[729,81], index: 1, kind: input, shape index: {}]
  %s2 = inlined_call_operand.vmem [shape: f32[701,81], index: 2, kind: input, shape index: {}]
  %s3 = inlined_call_operand.vmem [shape: f32[81,729], index: 3, kind: input, shape index: {}]
  %s4 = inlined_call_operand.vmem [shape: f32[32,1], index: 4, kind: input, shape index: {}]
  %s5 = inlined_call_operand.vmem [shape: f32[32,1], index: 5, kind: input, shape index: {}]
  %s6 = inlined_call_operand.vmem [shape: f32[32,1], index: 6, kind: input, shape index: {}]
  %s7 = inlined_call_operand.vmem [shape: f32[19], index: 7, kind: input, shape index: {}]
  %s8 = inlined_call_operand.vmem [shape: f32[2,32,729], index: 8, kind: output, shape index: {}]
  %s9 = sld [smem:[#allocation0]]
  $region69: #{la_forward.1} parent=0
    _
  %s11 = ssub.s32 1, %s9
  %s12 = scalar_select 0, %s11, %s9
  $region1: #{la_forward.1} parent=0
    #allocation2 [shape = 'u8[512]{0}', space=smem, size = 0x200, scoped, tag = 'input window, operand 7, single buffered']
    #allocation3 [shape = 's32[2]{0}', space=sflag, size = 0x8, scoped, tag = 'scoped memory for la_forward.1']
    %13 = vsyncpa [#allocation3], 0
    loop: start=0, step=1, limit=4
    $region2: #{la_forward.1} parent=1 // loop_pre_header
      _
    $region3: #{la_forward.1} parent=1 // loop_header
      %s15 = sphi 0, %s19
      %p16 = scmp.ge.s32.totalorder %s15, 4
      %s25 = sphi 0, %s27
      %s28 = sphi 0, %s25
      %s29 = sphi 0, %s28
      %s45 = sphi 0, %s29
      %s49 = sphi 0, %s49
      %s51 = sphi 0, %s49
      %s52 = sphi 0, %s51
      %s66 = sphi 0, %s52
      %s70 = sphi 0, %s70
      %s72 = sphi 0, %s70
      %s73 = sphi 0, %s72
      %s87 = sphi 0, %s73
      %s91 = sphi 0, %s91
      %s93 = sphi 0, %s91
      %s94 = sphi 0, %s93
      %s108 = sphi 0, %s94
      %s112 = sphi 0, %s112
      %s114 = sphi 0, %s112
      %s115 = sphi 0, %s114
      %s129 = sphi 0, %s115
      %s133 = sphi 0, %s133
      %s135 = sphi 0, %s133
      %s136 = sphi 0, %s135
      %s150 = sphi 0, %s136
      %s154 = sphi 0, %s154
      %s156 = sphi 0, %s154
      %s157 = sphi 0, %s156
      %s171 = sphi 0, %s157
      %s175 = sphi 0, %s175
      %s177 = sphi 0, %s175
      %s178 = sphi 0, %s177
      %s192 = sphi 0, %s178
      %s198 = sphi 0, %s200
      %s201 = sphi 0, %s198
      %s202 = sphi 0, %s201
      %s218 = sphi 0, %s202
    $region4: #{la_forward.1} parent=1 // loop_header_branch
      %18 = sbr.rel (%p16) target = $region8
    $region5: #{la_forward.1} parent=1 // loop_body
      %s20 = ssub.s32 %s15, 1
      %s21 = ssub.s32 %s15, 2
      %s22 = sadd.s32 %s15, 1
      %s23 = ssub.s32 %s15, %s22
      %p24 = scmp.eq.s32.totalorder %s23, 0
      %s26 = sadd.s32 %s25, 1
      %s27 = scalar_select %p24, %s25, %s26
      %p30 = pneg %p24
      %p31 = scmp.eq.s32.totalorder %s15, 1
      %p32 = por %p30, %p31
      %p33 = scmp.ne.s32.totalorder %s25, %s28
      %p34 = scmp.eq.s32.totalorder %s15, 0
      %p35 = por %p33, %p34
      %p36 = scmp.ne.s32.totalorder %s25, %s28
      %p37 = scmp.eq.s32.totalorder %s20, 1
      %p38 = por %p36, %p37
      %p39 = scmp.ne.s32.totalorder %s28, %s29
      %p40 = scmp.eq.s32.totalorder %s20, 0
      %p41 = por %p39, %p40
      %p42 = scmp.ne.s32.totalorder %s28, %s29
      %p43 = scmp.eq.s32.totalorder %s21, 1
      %p44 = por %p42, %p43
      %p46 = scmp.ne.s32.totalorder %s29, %s45
      %p47 = scmp.eq.s32.totalorder %s21, 0
      %p48 = por %p46, %p47
      %s50 = sadd.s32 %s49, 1
      %p53 = scmp.eq.s32.totalorder %s15, 1
      %p54 = scmp.ne.s32.totalorder %s49, %s51
      %p55 = scmp.eq.s32.totalorder %s15, 0
      %p56 = por %p54, %p55
      %p57 = scmp.ne.s32.totalorder %s49, %s51
      %p58 = scmp.eq.s32.totalorder %s20, 1
      %p59 = por %p57, %p58
      %p60 = scmp.ne.s32.totalorder %s51, %s52
      %p61 = scmp.eq.s32.totalorder %s20, 0
      %p62 = por %p60, %p61
      %p63 = scmp.ne.s32.totalorder %s51, %s52
      %p64 = scmp.eq.s32.totalorder %s21, 1
      %p65 = por %p63, %p64
      %p67 = scmp.ne.s32.totalorder %s52, %s66
      %p68 = scmp.eq.s32.totalorder %s21, 0
      %p69 = por %p67, %p68
      %s71 = sadd.s32 %s70, 1
      %p74 = scmp.eq.s32.totalorder %s15, 1
      %p75 = scmp.ne.s32.totalorder %s70, %s72
      %p76 = scmp.eq.s32.totalorder %s15, 0
      %p77 = por %p75, %p76
      %p78 = scmp.ne.s32.totalorder %s70, %s72
      %p79 = scmp.eq.s32.totalorder %s20, 1
      %p80 = por %p78, %p79
      %p81 = scmp.ne.s32.totalorder %s72, %s73
      %p82 = scmp.eq.s32.totalorder %s20, 0
      %p83 = por %p81, %p82
      %p84 = scmp.ne.s32.totalorder %s72, %s73
      %p85 = scmp.eq.s32.totalorder %s21, 1
      %p86 = por %p84, %p85
      %p88 = scmp.ne.s32.totalorder %s73, %s87
      %p89 = scmp.eq.s32.totalorder %s21, 0
      %p90 = por %p88, %p89
      %s92 = sadd.s32 %s91, 1
      %p95 = scmp.eq.s32.totalorder %s15, 1
      %p96 = scmp.ne.s32.totalorder %s91, %s93
      %p97 = scmp.eq.s32.totalorder %s15, 0
      %p98 = por %p96, %p97
      %p99 = scmp.ne.s32.totalorder %s91, %s93
      %p100 = scmp.eq.s32.totalorder %s20, 1
      %p101 = por %p99, %p100
      %p102 = scmp.ne.s32.totalorder %s93, %s94
      %p103 = scmp.eq.s32.totalorder %s20, 0
      %p104 = por %p102, %p103
      %p105 = scmp.ne.s32.totalorder %s93, %s94
      %p106 = scmp.eq.s32.totalorder %s21, 1
      %p107 = por %p105, %p106
      %p109 = scmp.ne.s32.totalorder %s94, %s108
      %p110 = scmp.eq.s32.totalorder %s21, 0
      %p111 = por %p109, %p110
      %s113 = sadd.s32 %s112, 1
      %p116 = scmp.eq.s32.totalorder %s15, 1
      %p117 = scmp.ne.s32.totalorder %s112, %s114
      %p118 = scmp.eq.s32.totalorder %s15, 0
      %p119 = por %p117, %p118
      %p120 = scmp.ne.s32.totalorder %s112, %s114
      %p121 = scmp.eq.s32.totalorder %s20, 1
      %p122 = por %p120, %p121
      %p123 = scmp.ne.s32.totalorder %s114, %s115
      %p124 = scmp.eq.s32.totalorder %s20, 0
      %p125 = por %p123, %p124
      %p126 = scmp.ne.s32.totalorder %s114, %s115
      %p127 = scmp.eq.s32.totalorder %s21, 1
      %p128 = por %p126, %p127
      %p130 = scmp.ne.s32.totalorder %s115, %s129
      %p131 = scmp.eq.s32.totalorder %s21, 0
      %p132 = por %p130, %p131
      %s134 = sadd.s32 %s133, 1
      %p137 = scmp.eq.s32.totalorder %s15, 1
      %p138 = scmp.ne.s32.totalorder %s133, %s135
      %p139 = scmp.eq.s32.totalorder %s15, 0
      %p140 = por %p138, %p139
      %p141 = scmp.ne.s32.totalorder %s133, %s135
      %p142 = scmp.eq.s32.totalorder %s20, 1
      %p143 = por %p141, %p142
      %p144 = scmp.ne.s32.totalorder %s135, %s136
      %p145 = scmp.eq.s32.totalorder %s20, 0
      %p146 = por %p144, %p145
      %p147 = scmp.ne.s32.totalorder %s135, %s136
      %p148 = scmp.eq.s32.totalorder %s21, 1
      %p149 = por %p147, %p148
      %p151 = scmp.ne.s32.totalorder %s136, %s150
      %p152 = scmp.eq.s32.totalorder %s21, 0
      %p153 = por %p151, %p152
      %s155 = sadd.s32 %s154, 1
      %p158 = scmp.eq.s32.totalorder %s15, 1
      %p159 = scmp.ne.s32.totalorder %s154, %s156
      %p160 = scmp.eq.s32.totalorder %s15, 0
      %p161 = por %p159, %p160
      %p162 = scmp.ne.s32.totalorder %s154, %s156
      %p163 = scmp.eq.s32.totalorder %s20, 1
      %p164 = por %p162, %p163
      %p165 = scmp.ne.s32.totalorder %s156, %s157
      %p166 = scmp.eq.s32.totalorder %s20, 0
      %p167 = por %p165, %p166
      %p168 = scmp.ne.s32.totalorder %s156, %s157
      %p169 = scmp.eq.s32.totalorder %s21, 1
      %p170 = por %p168, %p169
      %p172 = scmp.ne.s32.totalorder %s157, %s171
      %p173 = scmp.eq.s32.totalorder %s21, 0
      %p174 = por %p172, %p173
      %s176 = sadd.s32 %s175, 1
      %p179 = scmp.eq.s32.totalorder %s15, 1
      %p180 = scmp.ne.s32.totalorder %s175, %s177
      %p181 = scmp.eq.s32.totalorder %s15, 0
      %p182 = por %p180, %p181
      %p183 = scmp.ne.s32.totalorder %s175, %s177
      %p184 = scmp.eq.s32.totalorder %s20, 1
      %p185 = por %p183, %p184
      %p186 = scmp.ne.s32.totalorder %s177, %s178
      %p187 = scmp.eq.s32.totalorder %s20, 0
      %p188 = por %p186, %p187
      %p189 = scmp.ne.s32.totalorder %s177, %s178
      %p190 = scmp.eq.s32.totalorder %s21, 1
      %p191 = por %p189, %p190
      %p193 = scmp.ne.s32.totalorder %s178, %s192
      %p194 = scmp.eq.s32.totalorder %s21, 0
      %p195 = por %p193, %p194
      %s196 = ssub.s32 %s15, %s22
      %p197 = scmp.eq.s32.totalorder %s196, 0
      %s199 = sadd.s32 %s198, 1
      %s200 = scalar_select %p197, %s198, %s199
      %p203 = pneg %p197
      %p204 = scmp.eq.s32.totalorder %s15, 1
      %p205 = por %p203, %p204
      %p206 = scmp.ne.s32.totalorder %s198, %s201
      %p207 = scmp.eq.s32.totalorder %s15, 0
      %p208 = por %p206, %p207
      %p209 = scmp.ne.s32.totalorder %s198, %s201
      %p210 = scmp.eq.s32.totalorder %s20, 1
      %p211 = por %p209, %p210
      %p212 = scmp.ne.s32.totalorder %s201, %s202
      %p213 = scmp.eq.s32.totalorder %s20, 0
      %p214 = por %p212, %p213
      %p215 = scmp.ne.s32.totalorder %s201, %s202
      %p216 = scmp.eq.s32.totalorder %s21, 1
      %p217 = por %p215, %p216
      %p219 = scmp.ne.s32.totalorder %s202, %s218
      %p220 = scmp.eq.s32.totalorder %s21, 0
      %p221 = por %p219, %p220
      %p222 = scmp.le.s32.totalorder 1, %s15
      %p223 = scmp.lt.s32.totalorder %s15, 3
      %p224 = pnand %p222, %p223
      %p225 = pneg %p224
      // Predicated region
      $region9: #{la_forward.1} parent=5 // pred_check
        _
      $region10: #{la_forward.1} parent=5 // pred_check_branch
        %227 = sbr.rel (%p224) target = $region12
      $region11: #{la_forward.1} parent=5 // pred_region
        %s228 = ssub.s32 %s15, 1
        // Predicated region
        $region13: #{la_forward.1} parent=11 // pred_check
          %p229 = pneg %p62
        $region14: #{la_forward.1} parent=11 // pred_check_branch
          %231 = sbr.rel (%p229) target = $region16
        $region15: #{la_forward.1} parent=11 // pred_region
          _
        $region16: #{la_forward.1} parent=11 // pred_fallthru
          _
        // Predicated region
        $region17: #{la_forward.1} parent=11 // pred_check
          %p232 = pneg %p83
        $region18: #{la_forward.1} parent=11 // pred_check_branch
          %234 = sbr.rel (%p232) target = $region20
        $region19: #{la_forward.1} parent=11 // pred_region
          _
        $region20: #{la_forward.1} parent=11 // pred_fallthru
          _
        // Predicated region
        $region21: #{la_forward.1} parent=11 // pred_check
          %p235 = pneg %p104
        $region22: #{la_forward.1} parent=11 // pred_check_branch
          %237 = sbr.rel (%p235) target = $region24
        $region23: #{la_forward.1} parent=11 // pred_region
          _
        $region24: #{la_forward.1} parent=11 // pred_fallthru
          _
        // Predicated region
        $region25: #{la_forward.1} parent=11 // pred_check
          %p238 = pneg %p125
        $region26: #{la_forward.1} parent=11 // pred_check_branch
          %240 = sbr.rel (%p238) target = $region28
        $region27: #{la_forward.1} parent=11 // pred_region
          _
        $region28: #{la_forward.1} parent=11 // pred_fallthru
          _
        // Predicated region
        $region29: #{la_forward.1} parent=11 // pred_check
          %p241 = pneg %p146
        $region30: #{la_forward.1} parent=11 // pred_check_branch
          %243 = sbr.rel (%p241) target = $region32
        $region31: #{la_forward.1} parent=11 // pred_region
          _
        $region32: #{la_forward.1} parent=11 // pred_fallthru
          _
        // Predicated region
        $region33: #{la_forward.1} parent=11 // pred_check
          %p244 = pneg %p167
        $region34: #{la_forward.1} parent=11 // pred_check_branch
          %246 = sbr.rel (%p244) target = $region36
        $region35: #{la_forward.1} parent=11 // pred_region
          _
        $region36: #{la_forward.1} parent=11 // pred_fallthru
          _
        // Predicated region
        $region37: #{la_forward.1} parent=11 // pred_check
          %p247 = pneg %p188
        $region38: #{la_forward.1} parent=11 // pred_check_branch
          %249 = sbr.rel (%p247) target = $region40
        $region39: #{la_forward.1} parent=11 // pred_region
          %s251 = ssub.s32 16, 16
          %252 = vsyncadd [#allocation3], %s251
          %s254 = sshll.u32 %s7, 4
          %s255 = int_to_ptr.vmem [resolvable:$true] %s254
          %257 = dma.vmem_to_smem %s255, 16, [#allocation2], [#allocation3]
        $region40: #{la_forward.1} parent=11 // pred_fallthru
          _
      $region12: #{la_forward.1} parent=5 // pred_fallthru
        _
      %p258 = scmp.lt.s32.totalorder %s15, 2
      // Predicated region
      $region41: #{la_forward.1} parent=5 // pred_check
        %p259 = pneg %p258
      $region42: #{la_forward.1} parent=5 // pred_check_branch
        %261 = sbr.rel (%p259) target = $region44
      $region43: #{la_forward.1} parent=5 // pred_region
        // Predicated region
        $region45: #{la_forward.1} parent=43 // pred_check
          %p262 = pneg %p35
        $region46: #{la_forward.1} parent=43 // pred_check_branch
          %264 = sbr.rel (%p262) target = $region48
        $region47: #{la_forward.1} parent=43 // pred_region
          %p265 = scmp.lt.s32.totalorder %s15, 1
          %s266 = scalar_select %p265, %s15, 1
          %s267 = smul.addr %s266, 24
          %s268 = smul.addr %s267, 8
          %s269 = scalar_lea.vmem %s0, %s268
        $region48: #{la_forward.1} parent=43 // pred_fallthru
          _
      $region44: #{la_forward.1} parent=5 // pred_fallthru
        _
      %p270 = scmp.le.s32.totalorder 1, %s15
      %p271 = scmp.lt.s32.totalorder %s15, 3
      %p272 = pnand %p270, %p271
      %p273 = pneg %p272
      // Predicated region
      $region49: #{la_forward.1} parent=5 // pred_check
        _
      $region50: #{la_forward.1} parent=5 // pred_check_branch
        %275 = sbr.rel (%p272) target = $region52
      $region51: #{la_forward.1} parent=5 // pred_region
        %s276 = ssub.s32 %s15, 1
        // Predicated region
        $region53: #{la_forward.1} parent=51 // pred_check
          %p277 = pneg %p188
        $region54: #{la_forward.1} parent=51 // pred_check_branch
          %279 = sbr.rel (%p277) target = $region56
        $region55: #{la_forward.1} parent=51 // pred_region
          %280 = dma.done [#allocation3], 16
        $region56: #{la_forward.1} parent=51 // pred_fallthru
          _
        %281 = sfence
        %p282 = scmp.lt.s32.totalorder %s20, 1
        %s283 = scalar_select %p282, %s20, 1
        %s284 = smul.addr %s283, 24
        %s285 = smul.addr %s284, 8
        %s286 = scalar_lea.vmem %s0, %s285
        %p287 = pneg %p41
        %p288 = pneg %p38
        %p289 = pneg %p62
        %p290 = pneg %p59
        %p291 = pneg %p83
        %p292 = pneg %p80
        %p293 = pneg %p104
        %p294 = pneg %p101
        %p295 = pneg %p125
        %p296 = pneg %p122
        %p297 = pneg %p146
        %p298 = pneg %p143
        %p299 = pneg %p167
        %p300 = pneg %p164
        %p301 = pneg %p188
        %p302 = pneg %p185
        %p303 = pneg %p214
        %p304 = pneg %p211
        %p305 = scmp.lt.s32.totalorder %s20, 1
        %s306 = scalar_select %p305, %s20, 1
        %s307 = smul.addr %s306, 24
        %s308 = smul.addr %s307, 8
        %s309 = scalar_lea.vmem %s8, %s308
        %p310 = scmp.lt.s32.totalorder %s20, 1
        %s311 = scalar_select %p310, %s20, 1
        %s312 = smul.addr %s311, 24
        %s313 = smul.addr %s312, 8
        %s314 = scalar_lea.vmem %s0, %s313
        %p315 = scmp.lt.s32.totalorder %s20, 1
        %s316 = scalar_select %p315, %s20, 1
        %s317 = smul.addr %s316, 24
        %s318 = smul.addr %s317, 8
        %s319 = scalar_lea.vmem %s8, %s318
        %s320 = sld [smem:[#allocation2]]
        %s321 = sld [smem:[#allocation2 + $0x1]]
        %s322 = sld [smem:[#allocation2 + $0x2]]
        %v323 = vld [vmem:[%s314] sm:$0xff]
        %v324 = vld [vmem:[%s314 + $0x8] sm:$0xff]
        %v325 = vld [vmem:[%s314 + $0x10] sm:$0xff]
        %v326 = vld [vmem:[%s314 + $0x18] sm:$0xff]
        %v327 = vld [vmem:[%s314 + $0x20] sm:$0xff]
        %v328 = vld [vmem:[%s314 + $0x28] sm:$0xff]
        %v329 = vld [vmem:[%s314 + $0x30] sm:$0xff]
        %v330 = vld [vmem:[%s314 + $0x38] sm:$0xff]
        %v331 = vld [vmem:[%s314 + $0x40] sm:$0xff]
        %v332 = vld [vmem:[%s314 + $0x48] sm:$0xff]
        %v333 = vld [vmem:[%s314 + $0x50] sm:$0xff]
        %v334 = vld [vmem:[%s314 + $0x58] sm:$0xff]
        %v335 = vld [vmem:[%s314 + $0x60] sm:$0xff]
        %v336 = vld [vmem:[%s314 + $0x68] sm:$0xff]
        %v337 = vld [vmem:[%s314 + $0x70] sm:$0xff]
        %v338 = vld [vmem:[%s314 + $0x78] sm:$0xff]
        %v339 = vld [vmem:[%s314 + $0x80] sm:$0xff]
        %v340 = vld [vmem:[%s314 + $0x88] sm:$0xff]
        %v341 = vld [vmem:[%s314 + $0x90] sm:$0xff]
        %v342 = vld [vmem:[%s314 + $0x98] sm:$0xff]
        %v343 = vld [vmem:[%s314 + $0xa0] sm:$0xff]
        %v344 = vld [vmem:[%s314 + $0xa8] sm:$0xff]
        %v345 = vld [vmem:[%s314 + $0xb0] sm:$0xff]
        %v346 = vld [vmem:[%s314 + $0xb8] sm:$0xff]
        %v347 = vld [vmem:[%s4] sm:$0xff]
        %v348 = vld [vmem:[%s4 + $0x8] sm:$0xff]
        %v349 = vld [vmem:[%s4 + $0x10] sm:$0xff]
        %v350 = vld [vmem:[%s4 + $0x18] sm:$0xff]
        %352 = vset.pattern.permute.xlu0 0
        %353 = vperm.xlu0 %352, %v347
        %v354 = vpop.permute.xlu0 %353
        %357 = vset.pattern.permute.xlu0 0
        %358 = vperm.xlu0 %357, %v348
        %v359 = vpop.permute.xlu0 %358
        %362 = vset.pattern.permute.xlu0 0
        %363 = vperm.xlu0 %362, %v349
        %v364 = vpop.permute.xlu0 %363
        %367 = vset.pattern.permute.xlu0 0
        %368 = vperm.xlu0 %367, %v350
        %v369 = vpop.permute.xlu0 %368
        %v371 = vmul.f32 %v323, %v354
        %v372 = vmul.f32 %v324, %v354
        %v373 = vmul.f32 %v325, %v354
        %v374 = vmul.f32 %v326, %v354
        %v375 = vmul.f32 %v327, %v354
        %v376 = vmul.f32 %v328, %v354
        %v377 = vmul.f32 %v329, %v359
        %v378 = vmul.f32 %v330, %v359
        %v379 = vmul.f32 %v331, %v359
        %v380 = vmul.f32 %v332, %v359
        %v381 = vmul.f32 %v333, %v359
        %v382 = vmul.f32 %v334, %v359
        %v383 = vmul.f32 %v335, %v364
        %v384 = vmul.f32 %v336, %v364
        %v385 = vmul.f32 %v337, %v364
        %v386 = vmul.f32 %v338, %v364
        %v387 = vmul.f32 %v339, %v364
        %v388 = vmul.f32 %v340, %v364
        %v389 = vmul.f32 %v341, %v369
        %v390 = vmul.f32 %v342, %v369
        %v391 = vmul.f32 %v343, %v369
        %v392 = vmul.f32 %v344, %v369
        %v393 = vmul.f32 %v345, %v369
        %v394 = vmul.f32 %v346, %v369
        %v395 = vadd.f32 %v371, %v377
        %v396 = vadd.f32 %v395, %v383
        %v397 = vadd.f32 %v396, %v389
        %v398 = vrot.slane %v397, 4
        %v399 = vadd.f32 %v397, %v398
        %v400 = vrot.slane %v399, 2
        %v401 = vadd.f32 %v399, %v400
        %v402 = vrot.slane %v401, 1
        %v403 = vadd.f32 %v401, %v402
        %v404 = vadd.f32 %v372, %v378
        %v405 = vadd.f32 %v404, %v384
        %v406 = vadd.f32 %v405, %v390
        %v407 = vrot.slane %v406, 4
        %v408 = vadd.f32 %v406, %v407
        %v409 = vrot.slane %v408, 2
        %v410 = vadd.f32 %v408, %v409
        %v411 = vrot.slane %v410, 1
        %v412 = vadd.f32 %v410, %v411
        %v413 = vadd.f32 %v373, %v379
        %v414 = vadd.f32 %v413, %v385
        %v415 = vadd.f32 %v414, %v391
        %v416 = vrot.slane %v415, 4
        %v417 = vadd.f32 %v415, %v416
        %v418 = vrot.slane %v417, 2
        %v419 = vadd.f32 %v417, %v418
        %v420 = vrot.slane %v419, 1
        %v421 = vadd.f32 %v419, %v420
        %v422 = vadd.f32 %v374, %v380
        %v423 = vadd.f32 %v422, %v386
        %v424 = vadd.f32 %v423, %v392
        %v425 = vrot.slane %v424, 4
        %v426 = vadd.f32 %v424, %v425
        %v427 = vrot.slane %v426, 2
        %v428 = vadd.f32 %v426, %v427
        %v429 = vrot.slane %v428, 1
        %v430 = vadd.f32 %v428, %v429
        %v431 = vadd.f32 %v375, %v381
        %v432 = vadd.f32 %v431, %v387
        %v433 = vadd.f32 %v432, %v393
        %v434 = vrot.slane %v433, 4
        %v435 = vadd.f32 %v433, %v434
        %v436 = vrot.slane %v435, 2
        %v437 = vadd.f32 %v435, %v436
        %v438 = vrot.slane %v437, 1
        %v439 = vadd.f32 %v437, %v438
        %vm440 = vcmask 728064
        %v441 = vsel %vm440, %v376, 0.0
        %v442 = vsel %vm440, %v382, 0.0
        %v443 = vadd.f32 %v441, %v442
        %v444 = vsel %vm440, %v388, 0.0
        %v445 = vadd.f32 %v443, %v444
        %v446 = vsel %vm440, %v394, 0.0
        %v447 = vadd.f32 %v445, %v446
        %v448 = vrot.slane %v447, 4
        %v449 = vadd.f32 %v447, %v448
        %v450 = vrot.slane %v449, 2
        %v451 = vadd.f32 %v449, %v450
        %v452 = vrot.slane %v451, 1
        %v453 = vadd.f32 %v451, %v452
        %v454 = vld [vmem:[%s1] sm:$0xff]
        %v455 = vld [vmem:[%s1 + $0x8] sm:$0xff]
        %v456 = vld [vmem:[%s1 + $0x10] sm:$0xff]
        %v457 = vld [vmem:[%s1 + $0x18] sm:$0xff]
        %v458 = vld [vmem:[%s1 + $0x20] sm:$0xff]
        %v459 = vld [vmem:[%s1 + $0x28] sm:$0xff]
        %v460 = vld [vmem:[%s1 + $0x30] sm:$0xff]
        %v461 = vld [vmem:[%s1 + $0x38] sm:$0xff]
        %v462 = vld [vmem:[%s1 + $0x40] sm:$0xff]
        %v463 = vld [vmem:[%s1 + $0x48] sm:$0xff]
        %v464 = vld [vmem:[%s1 + $0x50] sm:$0xff]
        %v465 = vld [vmem:[%s1 + $0x58] sm:$0xff]
        %v466 = vld [vmem:[%s1 + $0x60] sm:$0xff]
        %v467 = vld [vmem:[%s1 + $0x68] sm:$0xff]
        %v468 = vld [vmem:[%s1 + $0x70] sm:$0xff]
        %v469 = vld [vmem:[%s1 + $0x78] sm:$0xff]
        %v470 = vld [vmem:[%s1 + $0x80] sm:$0xff]
        %v471 = vld [vmem:[%s1 + $0x88] sm:$0xff]
        %v472 = vld [vmem:[%s1 + $0x90] sm:$0xff]
        %v473 = vld [vmem:[%s1 + $0x98] sm:$0xff]
        %v474 = vld [vmem:[%s1 + $0xa0] sm:$0xff]
        %v475 = vld [vmem:[%s1 + $0xa8] sm:$0xff]
        %v476 = vld [vmem:[%s1 + $0xb0] sm:$0xff]
        %v477 = vld [vmem:[%s1 + $0xb8] sm:$0xff]
        %v478 = vld [vmem:[%s1 + $0xc0] sm:$0xff]
        %v479 = vld [vmem:[%s1 + $0xc8] sm:$0xff]
        %v480 = vld [vmem:[%s1 + $0xd0] sm:$0xff]
        %v481 = vld [vmem:[%s1 + $0xd8] sm:$0xff]
        %v482 = vld [vmem:[%s1 + $0xe0] sm:$0xff]
        %v483 = vld [vmem:[%s1 + $0xe8] sm:$0xff]
        %v484 = vld [vmem:[%s1 + $0xf0] sm:$0xff]
        %v485 = vld [vmem:[%s1 + $0xf8] sm:$0xff]
        %v486 = vld [vmem:[%s1 + $0x100] sm:$0xff]
        %v487 = vld [vmem:[%s1 + $0x108] sm:$0xff]
        %v488 = vld [vmem:[%s1 + $0x110] sm:$0xff]
        %v489 = vld [vmem:[%s1 + $0x118] sm:$0xff]
        %v490 = vld [vmem:[%s1 + $0x120] sm:$0xff]
        %v491 = vld [vmem:[%s1 + $0x128] sm:$0xff]
        %v492 = vld [vmem:[%s1 + $0x130] sm:$0xff]
        %v493 = vld [vmem:[%s1 + $0x138] sm:$0xff]
        %v494 = vld [vmem:[%s1 + $0x140] sm:$0xff]
        %v495 = vld [vmem:[%s1 + $0x148] sm:$0xff]
        %v496 = vld [vmem:[%s1 + $0x150] sm:$0xff]
        %v497 = vld [vmem:[%s1 + $0x158] sm:$0xff]
        %v498 = vld [vmem:[%s1 + $0x160] sm:$0xff]
        %v499 = vld [vmem:[%s1 + $0x168] sm:$0xff]
        %v500 = vld [vmem:[%s1 + $0x170] sm:$0xff]
        %v501 = vld [vmem:[%s1 + $0x178] sm:$0xff]
        %v502 = vld [vmem:[%s1 + $0x180] sm:$0xff]
        %v503 = vld [vmem:[%s1 + $0x188] sm:$0xff]
        %v504 = vld [vmem:[%s1 + $0x190] sm:$0xff]
        %v505 = vld [vmem:[%s1 + $0x198] sm:$0xff]
        %v506 = vld [vmem:[%s1 + $0x1a0] sm:$0xff]
        %v507 = vld [vmem:[%s1 + $0x1a8] sm:$0xff]
        %v508 = vld [vmem:[%s1 + $0x1b0] sm:$0xff]
        %v509 = vld [vmem:[%s1 + $0x1b8] sm:$0xff]
        %v510 = vld [vmem:[%s1 + $0x1c0] sm:$0xff]
        %v511 = vld [vmem:[%s1 + $0x1c8] sm:$0xff]
        %v512 = vld [vmem:[%s1 + $0x1d0] sm:$0xff]
        %v513 = vld [vmem:[%s1 + $0x1d8] sm:$0xff]
        %v514 = vld [vmem:[%s1 + $0x1e0] sm:$0xff]
        %v515 = vld [vmem:[%s1 + $0x1e8] sm:$0xff]
        %v516 = vld [vmem:[%s1 + $0x1f0] sm:$0xff]
        %v517 = vld [vmem:[%s1 + $0x1f8] sm:$0xff]
        %v518 = vld [vmem:[%s1 + $0x200] sm:$0xff]
        %v519 = vld [vmem:[%s1 + $0x208] sm:$0xff]
        %v520 = vld [vmem:[%s1 + $0x210] sm:$0xff]
        %v521 = vld [vmem:[%s1 + $0x218] sm:$0xff]
        %v522 = vld [vmem:[%s1 + $0x220] sm:$0xff]
        %v523 = vld [vmem:[%s1 + $0x228] sm:$0xff]
        %v524 = vld [vmem:[%s1 + $0x230] sm:$0xff]
        %v525 = vld [vmem:[%s1 + $0x238] sm:$0xff]
        %v526 = vld [vmem:[%s1 + $0x240] sm:$0xff]
        %v527 = vld [vmem:[%s1 + $0x248] sm:$0xff]
        %v528 = vld [vmem:[%s1 + $0x250] sm:$0xff]
        %v529 = vld [vmem:[%s1 + $0x258] sm:$0xff]
        %v530 = vld [vmem:[%s1 + $0x260] sm:$0xff]
        %v531 = vld [vmem:[%s1 + $0x268] sm:$0xff]
        %v532 = vld [vmem:[%s1 + $0x270] sm:$0xff]
        %v533 = vld [vmem:[%s1 + $0x278] sm:$0xff]
        %v534 = vld [vmem:[%s1 + $0x280] sm:$0xff]
        %v535 = vld [vmem:[%s1 + $0x288] sm:$0xff]
        %v536 = vld [vmem:[%s1 + $0x290] sm:$0xff]
        %v537 = vld [vmem:[%s1 + $0x298] sm:$0xff]
        %v538 = vld [vmem:[%s1 + $0x2a0] sm:$0xff]
        %v539 = vld [vmem:[%s1 + $0x2a8] sm:$0xff]
        %v540 = vld [vmem:[%s1 + $0x2b0] sm:$0xff]
        %v541 = vld [vmem:[%s1 + $0x2b8] sm:$0xff]
        %v542 = vld [vmem:[%s1 + $0x2c0] sm:$0xff]
        %v543 = vld [vmem:[%s1 + $0x2c8] sm:$0xff]
        %v544 = vld [vmem:[%s1 + $0x2d0] sm:$0xff]
        %v545 = vld [vmem:[%s1 + $0x2d8] sm:$0x1]
        %v546 = vstv %s320
        %v548 = vsel %vm440, %v453, 0
        %vm550 = vcmask 1040384
        %v552 = vsel %vm550, %v545, 0
        %554 = vmatprep.subr.mxu0 0.0
        %555 = vmatpush1.msra.mxu0 %v469
        %556 = vmatprep.subr.mxu0 0.0
        %557 = vmatpush1.msra.mxu0 %v468
        %558 = vmatprep.subr.mxu0 0.0
        %559 = vmatpush1.msra.mxu0 %v467
        %560 = vmatprep.subr.mxu0 0.0
        %561 = vmatpush1.msra.mxu0 %v466
        %562 = vmatprep.subr.mxu0 0.0
        %563 = vmatpush1.msra.mxu0 %v465
        %564 = vmatprep.subr.mxu0 0.0
        %565 = vmatpush1.msra.mxu0 %v464
        %566 = vmatprep.subr.mxu0 0.0
        %567 = vmatpush1.msra.mxu0 %v463
        %568 = vmatprep.subr.mxu0 0.0
        %569 = vmatpush1.msra.mxu0 %v462
        %570 = vmatprep.subr.mxu0 0.0
        %571 = vmatpush1.msra.mxu0 %v461
        %572 = vmatprep.subr.mxu0 0.0
        %573 = vmatpush1.msra.mxu0 %v460
        %574 = vmatprep.subr.mxu0 0.0
        %575 = vmatpush1.msra.mxu0 %v459
        %576 = vmatprep.subr.mxu0 0.0
        %577 = vmatpush1.msra.mxu0 %v458
        %578 = vmatprep.subr.mxu0 0.0
        %579 = vmatpush1.msra.mxu0 %v457
        %580 = vmatprep.subr.mxu0 0.0
        %581 = vmatpush1.msra.mxu0 %v456
        %582 = vmatprep.subr.mxu0 0.0
        %583 = vmatpush1.msra.mxu0 %v455
        %584 = vmatprep.subr.mxu0 0.0
        %585 = vmatpush1.msra.mxu0 %v454
        %586 = vmatprep.subr.mxu0 0.0
        %587 = vmatpush2.msra.mxu0 %v485
        %588 = vmatprep.subr.mxu0 0.0
        %589 = vmatpush2.msra.mxu0 %v484
        %590 = vmatprep.subr.mxu0 0.0
        %591 = vmatpush2.msra.mxu0 %v483
        %592 = vmatprep.subr.mxu0 0.0
        %593 = vmatpush2.msra.mxu0 %v482
        %594 = vmatprep.subr.mxu0 0.0
        %595 = vmatpush2.msra.mxu0 %v481
        %596 = vmatprep.subr.mxu0 0.0
        %597 = vmatpush2.msra.mxu0 %v480
        %598 = vmatprep.subr.mxu0 0.0
        %599 = vmatpush2.msra.mxu0 %v479
        %600 = vmatprep.subr.mxu0 0.0
        %601 = vmatpush2.msra.mxu0 %v478
        %602 = vmatprep.subr.mxu0 0.0
        %603 = vmatpush2.msra.mxu0 %v477
        %604 = vmatprep.subr.mxu0 0.0
        %605 = vmatpush2.msra.mxu0 %v476
        %606 = vmatprep.subr.mxu0 0.0
        %607 = vmatpush2.msra.mxu0 %v475
        %608 = vmatprep.subr.mxu0 0.0
        %609 = vmatpush2.msra.mxu0 %v474
        %610 = vmatprep.subr.mxu0 0.0
        %611 = vmatpush2.msra.mxu0 %v473
        %612 = vmatprep.subr.mxu0 0.0
        %613 = vmatpush2.msra.mxu0 %v472
        %614 = vmatprep.subr.mxu0 0.0
        %615 = vmatpush2.msra.mxu0 %v471
        %616 = vmatprep.subr.mxu0 0.0
        %617 = vmatpush2.msra.mxu0 %v470
        %618 = vmatprep.mubr.f32.mxu0 %v412
        %619 = vmatmul.mubr.f32.gmra.mxu0 %v403
        %v620 = vpop.f32.mrf.mxu0
        %v621 = vadd.f32 %v546, %v620
        %v622 = vpop.f32.mrf.mxu0
        %623 = vdwg.mxu0
        %624 = vmatprep.subr.mxu0 0.0
        %625 = vmatpush1.msra.mxu0 %v501
        %626 = vmatprep.subr.mxu0 0.0
        %627 = vmatpush1.msra.mxu0 %v500
        %628 = vmatprep.subr.mxu0 0.0
        %629 = vmatpush1.msra.mxu0 %v499
        %630 = vmatprep.subr.mxu0 0.0
        %631 = vmatpush1.msra.mxu0 %v498
        %632 = vmatprep.subr.mxu0 0.0
        %633 = vmatpush1.msra.mxu0 %v497
        %634 = vmatprep.subr.mxu0 0.0
        %635 = vmatpush1.msra.mxu0 %v496
        %636 = vmatprep.subr.mxu0 0.0
        %637 = vmatpush1.msra.mxu0 %v495
        %638 = vmatprep.subr.mxu0 0.0
        %639 = vmatpush1.msra.mxu0 %v494
        %640 = vmatprep.subr.mxu0 0.0
        %641 = vmatpush1.msra.mxu0 %v493
        %642 = vmatprep.subr.mxu0 0.0
        %643 = vmatpush1.msra.mxu0 %v492
        %644 = vmatprep.subr.mxu0 0.0
        %645 = vmatpush1.msra.mxu0 %v491
        %646 = vmatprep.subr.mxu0 0.0
        %647 = vmatpush1.msra.mxu0 %v490
        %648 = vmatprep.subr.mxu0 0.0
        %649 = vmatpush1.msra.mxu0 %v489
        %650 = vmatprep.subr.mxu0 0.0
        %651 = vmatpush1.msra.mxu0 %v488
        %652 = vmatprep.subr.mxu0 0.0
        %653 = vmatpush1.msra.mxu0 %v487
        %654 = vmatprep.subr.mxu0 0.0
        %655 = vmatpush1.msra.mxu0 %v486
        %656 = vmatprep.subr.mxu0 0.0
        %657 = vmatpush2.msra.mxu0 %v517
        %658 = vmatprep.subr.mxu0 0.0
        %659 = vmatpush2.msra.mxu0 %v516
        %660 = vmatprep.subr.mxu0 0.0
        %661 = vmatpush2.msra.mxu0 %v515
        %662 = vmatprep.subr.mxu0 0.0
        %663 = vmatpush2.msra.mxu0 %v514
        %664 = vmatprep.subr.mxu0 0.0
        %665 = vmatpush2.msra.mxu0 %v513
        %666 = vmatprep.subr.mxu0 0.0
        %667 = vmatpush2.msra.mxu0 %v512
        %668 = vmatprep.subr.mxu0 0.0
        %669 = vmatpush2.msra.mxu0 %v511
        %670 = vmatprep.subr.mxu0 0.0
        %671 = vmatpush2.msra.mxu0 %v510
        %672 = vmatprep.subr.mxu0 0.0
        %673 = vmatpush2.msra.mxu0 %v509
        %674 = vmatprep.subr.mxu0 0.0
        %675 = vmatpush2.msra.mxu0 %v508
        %676 = vmatprep.subr.mxu0 0.0
        %677 = vmatpush2.msra.mxu0 %v507
        %678 = vmatprep.subr.mxu0 0.0
        %679 = vmatpush2.msra.mxu0 %v506
        %680 = vmatprep.subr.mxu0 0.0
        %681 = vmatpush2.msra.mxu0 %v505
        %682 = vmatprep.subr.mxu0 0.0
        %683 = vmatpush2.msra.mxu0 %v504
        %684 = vmatprep.subr.mxu0 0.0
        %685 = vmatpush2.msra.mxu0 %v503
        %686 = vmatprep.subr.mxu0 0.0
        %687 = vmatpush2.msra.mxu0 %v502
        %688 = vmatprep.mubr.f32.mxu0 %v430
        %689 = vmatmul.mubr.f32.gmra.mxu0 %v421
        %v690 = vpop.f32.mrf.mxu0
        %v691 = vadd.f32 %v621, %v690
        %v692 = vpop.f32.mrf.mxu0
        %693 = vdwg.mxu0
        %694 = vmatprep.subr.mxu0 0.0
        %695 = vmatpush1.msra.mxu0 %v533
        %696 = vmatprep.subr.mxu0 0.0
        %697 = vmatpush1.msra.mxu0 %v532
        %698 = vmatprep.subr.mxu0 0.0
        %699 = vmatpush1.msra.mxu0 %v531
        %700 = vmatprep.subr.mxu0 0.0
        %701 = vmatpush1.msra.mxu0 %v530
        %702 = vmatprep.subr.mxu0 0.0
        %703 = vmatpush1.msra.mxu0 %v529
        %704 = vmatprep.subr.mxu0 0.0
        %705 = vmatpush1.msra.mxu0 %v528
        %706 = vmatprep.subr.mxu0 0.0
        %707 = vmatpush1.msra.mxu0 %v527
        %708 = vmatprep.subr.mxu0 0.0
        %709 = vmatpush1.msra.mxu0 %v526
        %710 = vmatprep.subr.mxu0 0.0
        %711 = vmatpush1.msra.mxu0 %v525
        %712 = vmatprep.subr.mxu0 0.0
        %713 = vmatpush1.msra.mxu0 %v524
        %714 = vmatprep.subr.mxu0 0.0
        %715 = vmatpush1.msra.mxu0 %v523
        %716 = vmatprep.subr.mxu0 0.0
        %717 = vmatpush1.msra.mxu0 %v522
        %718 = vmatprep.subr.mxu0 0.0
        %719 = vmatpush1.msra.mxu0 %v521
        %720 = vmatprep.subr.mxu0 0.0
        %721 = vmatpush1.msra.mxu0 %v520
        %722 = vmatprep.subr.mxu0 0.0
        %723 = vmatpush1.msra.mxu0 %v519
        %724 = vmatprep.subr.mxu0 0.0
        %725 = vmatpush1.msra.mxu0 %v518
        %726 = vmatprep.subr.mxu0 0.0
        %727 = vmatpush2.msra.mxu0 0.0
        %728 = vmatprep.subr.mxu0 0.0
        %729 = vmatpush2.msra.mxu0 0.0
        %730 = vmatprep.subr.mxu0 0.0
        %731 = vmatpush2.msra.mxu0 0.0
        %732 = vmatprep.subr.mxu0 0.0
        %733 = vmatpush2.msra.mxu0 0.0
        %734 = vmatprep.subr.mxu0 0.0
        %735 = vmatpush2.msra.mxu0 %v552
        %736 = vmatprep.subr.mxu0 0.0
        %737 = vmatpush2.msra.mxu0 %v544
        %738 = vmatprep.subr.mxu0 0.0
        %739 = vmatpush2.msra.mxu0 %v543
        %740 = vmatprep.subr.mxu0 0.0
        %741 = vmatpush2.msra.mxu0 %v542
        %742 = vmatprep.subr.mxu0 0.0
        %743 = vmatpush2.msra.mxu0 %v541
        %744 = vmatprep.subr.mxu0 0.0
        %745 = vmatpush2.msra.mxu0 %v540
        %746 = vmatprep.subr.mxu0 0.0
        %747 = vmatpush2.msra.mxu0 %v539
        %748 = vmatprep.subr.mxu0 0.0
        %749 = vmatpush2.msra.mxu0 %v538
        %750 = vmatprep.subr.mxu0 0.0
        %751 = vmatpush2.msra.mxu0 %v537
        %752 = vmatprep.subr.mxu0 0.0
        %753 = vmatpush2.msra.mxu0 %v536
        %754 = vmatprep.subr.mxu0 0.0
        %755 = vmatpush2.msra.mxu0 %v535
        %756 = vmatprep.subr.mxu0 0.0
        %757 = vmatpush2.msra.mxu0 %v534
        %758 = vmatprep.mubr.f32.mxu0 %v548
        %759 = vmatmul.mubr.f32.gmra.mxu0 %v439
        %v760 = vpop.f32.mrf.mxu0
        %v761 = vadd.f32 %v691, %v760
        %v762 = vpop.f32.mrf.mxu0
        %763 = vdwg.mxu0
        %v764 = vmax.f32 %v761, 0.0
        %789 = vrot.lane.b32.xlu0 %v323, 127
        %v790 = vpop.permute.xlu0 %789
        %791 = vrot.lane.b32.xlu0 %v324, 127
        %v792 = vpop.permute.xlu0 %791
        %793 = vrot.lane.b32.xlu0 %v325, 127
        %v794 = vpop.permute.xlu0 %793
        %795 = vrot.lane.b32.xlu0 %v326, 127
        %v796 = vpop.permute.xlu0 %795
        %797 = vrot.lane.b32.xlu0 %v327, 127
        %v798 = vpop.permute.xlu0 %797
        %799 = vrot.lane.b32.xlu0 %v328, 127
        %v800 = vpop.permute.xlu0 %799
        %801 = vrot.lane.b32.xlu0 %v329, 127
        %v802 = vpop.permute.xlu0 %801
        %803 = vrot.lane.b32.xlu0 %v330, 127
        %v804 = vpop.permute.xlu0 %803
        %805 = vrot.lane.b32.xlu0 %v331, 127
        %v806 = vpop.permute.xlu0 %805
        %807 = vrot.lane.b32.xlu0 %v332, 127
        %v808 = vpop.permute.xlu0 %807
        %809 = vrot.lane.b32.xlu0 %v333, 127
        %v810 = vpop.permute.xlu0 %809
        %811 = vrot.lane.b32.xlu0 %v334, 127
        %v812 = vpop.permute.xlu0 %811
        %813 = vrot.lane.b32.xlu0 %v335, 127
        %v814 = vpop.permute.xlu0 %813
        %815 = vrot.lane.b32.xlu0 %v336, 127
        %v816 = vpop.permute.xlu0 %815
        %817 = vrot.lane.b32.xlu0 %v337, 127
        %v818 = vpop.permute.xlu0 %817
        %819 = vrot.lane.b32.xlu0 %v338, 127
        %v820 = vpop.permute.xlu0 %819
        %821 = vrot.lane.b32.xlu0 %v339, 127
        %v822 = vpop.permute.xlu0 %821
        %823 = vrot.lane.b32.xlu0 %v340, 127
        %v824 = vpop.permute.xlu0 %823
        %825 = vrot.lane.b32.xlu0 %v341, 127
        %v826 = vpop.permute.xlu0 %825
        %827 = vrot.lane.b32.xlu0 %v342, 127
        %v828 = vpop.permute.xlu0 %827
        %829 = vrot.lane.b32.xlu0 %v343, 127
        %v830 = vpop.permute.xlu0 %829
        %831 = vrot.lane.b32.xlu0 %v344, 127
        %v832 = vpop.permute.xlu0 %831
        %833 = vrot.lane.b32.xlu0 %v345, 127
        %v834 = vpop.permute.xlu0 %833
        %835 = vrot.lane.b32.xlu0 %v346, 127
        %v836 = vpop.permute.xlu0 %835
        %vm837 = vcmask 1039360
        %v838 = vsel %vm837, %v790, %v792
        %v839 = vsel %vm837, %v792, %v794
        %v840 = vsel %vm837, %v794, %v796
        %v841 = vsel %vm837, %v796, %v798
        %v842 = vsel %vm837, %v798, %v800
        %v843 = vsel %vm837, %v802, %v804
        %v844 = vsel %vm837, %v804, %v806
        %v845 = vsel %vm837, %v806, %v808
        %v846 = vsel %vm837, %v808, %v810
        %v847 = vsel %vm837, %v810, %v812
        %v848 = vsel %vm837, %v814, %v816
        %v849 = vsel %vm837, %v816, %v818
        %v850 = vsel %vm837, %v818, %v820
        %v851 = vsel %vm837, %v820, %v822
        %v852 = vsel %vm837, %v822, %v824
        %v853 = vsel %vm837, %v826, %v828
        %v854 = vsel %vm837, %v828, %v830
        %v855 = vsel %vm837, %v830, %v832
        %v856 = vsel %vm837, %v832, %v834
        %v857 = vsel %vm837, %v834, %v836
        %v882 = vmax.f32 %v323, %v838
        %v883 = vmax.f32 %v324, %v839
        %v884 = vmax.f32 %v325, %v840
        %v885 = vmax.f32 %v326, %v841
        %v886 = vmax.f32 %v327, %v842
        %v887 = vmax.f32 %v328, %v800
        %v888 = vmax.f32 %v329, %v843
        %v889 = vmax.f32 %v330, %v844
        %v890 = vmax.f32 %v331, %v845
        %v891 = vmax.f32 %v332, %v846
        %v892 = vmax.f32 %v333, %v847
        %v893 = vmax.f32 %v334, %v812
        %v894 = vmax.f32 %v335, %v848
        %v895 = vmax.f32 %v336, %v849
        %v896 = vmax.f32 %v337, %v850
        %v897 = vmax.f32 %v338, %v851
        %v898 = vmax.f32 %v339, %v852
        %v899 = vmax.f32 %v340, %v824
        %v900 = vmax.f32 %v341, %v853
        %v901 = vmax.f32 %v342, %v854
        %v902 = vmax.f32 %v343, %v855
        %v903 = vmax.f32 %v344, %v856
        %v904 = vmax.f32 %v345, %v857
        %v905 = vmax.f32 %v346, %v836
        %930 = vrot.lane.b32.xlu0 %v882, 101
        %v931 = vpop.permute.xlu0 %930
        %932 = vrot.lane.b32.xlu0 %v883, 101
        %v933 = vpop.permute.xlu0 %932
        %934 = vrot.lane.b32.xlu0 %v884, 101
        %v935 = vpop.permute.xlu0 %934
        %936 = vrot.lane.b32.xlu0 %v885, 101
        %v937 = vpop.permute.xlu0 %936
        %938 = vrot.lane.b32.xlu0 %v886, 101
        %v939 = vpop.permute.xlu0 %938
        %940 = vrot.lane.b32.xlu0 %v887, 101
        %v941 = vpop.permute.xlu0 %940
        %942 = vrot.lane.b32.xlu0 %v888, 101
        %v943 = vpop.permute.xlu0 %942
        %944 = vrot.lane.b32.xlu0 %v889, 101
        %v945 = vpop.permute.xlu0 %944
        %946 = vrot.lane.b32.xlu0 %v890, 101
        %v947 = vpop.permute.xlu0 %946
        %948 = vrot.lane.b32.xlu0 %v891, 101
        %v949 = vpop.permute.xlu0 %948
        %950 = vrot.lane.b32.xlu0 %v892, 101
        %v951 = vpop.permute.xlu0 %950
        %952 = vrot.lane.b32.xlu0 %v893, 101
        %v953 = vpop.permute.xlu0 %952
        %954 = vrot.lane.b32.xlu0 %v894, 101
        %v955 = vpop.permute.xlu0 %954
        %956 = vrot.lane.b32.xlu0 %v895, 101
        %v957 = vpop.permute.xlu0 %956
        %958 = vrot.lane.b32.xlu0 %v896, 101
        %v959 = vpop.permute.xlu0 %958
        %960 = vrot.lane.b32.xlu0 %v897, 101
        %v961 = vpop.permute.xlu0 %960
        %962 = vrot.lane.b32.xlu0 %v898, 101
        %v963 = vpop.permute.xlu0 %962
        %964 = vrot.lane.b32.xlu0 %v899, 101
        %v965 = vpop.permute.xlu0 %964
        %966 = vrot.lane.b32.xlu0 %v900, 101
        %v967 = vpop.permute.xlu0 %966
        %968 = vrot.lane.b32.xlu0 %v901, 101
        %v969 = vpop.permute.xlu0 %968
        %970 = vrot.lane.b32.xlu0 %v902, 101
        %v971 = vpop.permute.xlu0 %970
        %972 = vrot.lane.b32.xlu0 %v903, 101
        %v973 = vpop.permute.xlu0 %972
        %974 = vrot.lane.b32.xlu0 %v904, 101
        %v975 = vpop.permute.xlu0 %974
        %976 = vrot.lane.b32.xlu0 %v905, 101
        %v977 = vpop.permute.xlu0 %976
        %vm978 = vcmask 826368
        %v979 = vsel %vm978, %v931, %v933
        %v980 = vsel %vm978, %v933, %v935
        %v981 = vsel %vm978, %v935, %v937
        %v982 = vsel %vm978, %v937, %v939
        %v983 = vsel %vm978, %v939, %v941
        %v984 = vsel %vm978, %v943, %v945
        %v985 = vsel %vm978, %v945, %v947
        %v986 = vsel %vm978, %v947, %v949
        %v987 = vsel %vm978, %v949, %v951
        %v988 = vsel %vm978, %v951, %v953
        %v989 = vsel %vm978, %v955, %v957
        %v990 = vsel %vm978, %v957, %v959
        %v991 = vsel %vm978, %v959, %v961
        %v992 = vsel %vm978, %v961, %v963
        %v993 = vsel %vm978, %v963, %v965
        %v994 = vsel %vm978, %v967, %v969
        %v995 = vsel %vm978, %v969, %v971
        %v996 = vsel %vm978, %v971, %v973
        %v997 = vsel %vm978, %v973, %v975
        %v998 = vsel %vm978, %v975, %v977
        %v1023 = vmax.f32 %v882, %v979
        %v1024 = vmax.f32 %v883, %v980
        %v1025 = vmax.f32 %v884, %v981
        %v1026 = vmax.f32 %v885, %v982
        %v1027 = vmax.f32 %v886, %v983
        %v1028 = vmax.f32 %v887, %v941
        %v1029 = vmax.f32 %v888, %v984
        %v1030 = vmax.f32 %v889, %v985
        %v1031 = vmax.f32 %v890, %v986
        %v1032 = vmax.f32 %v891, %v987
        %v1033 = vmax.f32 %v892, %v988
        %v1034 = vmax.f32 %v893, %v953
        %v1035 = vmax.f32 %v894, %v989
        %v1036 = vmax.f32 %v895, %v990
        %v1037 = vmax.f32 %v896, %v991
        %v1038 = vmax.f32 %v897, %v992
        %v1039 = vmax.f32 %v898, %v993
        %v1040 = vmax.f32 %v899, %v965
        %v1041 = vmax.f32 %v900, %v994
        %v1042 = vmax.f32 %v901, %v995
        %v1043 = vmax.f32 %v902, %v996
        %v1044 = vmax.f32 %v903, %v997
        %v1045 = vmax.f32 %v904, %v998
        %v1046 = vmax.f32 %v905, %v977
        %vm1047 = vcmask 1041408
        %v1048 = vsel %vm1047, %v1023, -inf
        %v1049 = vrot.slane %v1048, 4
        %v1050 = vmax.f32 %v1048, %v1049
        %v1051 = vrot.slane %v1050, 2
        %v1052 = vmax.f32 %v1050, %v1051
        %v1053 = vrot.slane %v1052, 1
        %v1054 = vmax.f32 %v1052, %v1053
        %v1055 = vsel %vm1047, %v1024, -inf
        %v1056 = vrot.slane %v1055, 4
        %v1057 = vmax.f32 %v1055, %v1056
        %v1058 = vrot.slane %v1057, 2
        %v1059 = vmax.f32 %v1057, %v1058
        %v1060 = vrot.slane %v1059, 1
        %v1061 = vmax.f32 %v1059, %v1060
        %v1062 = vsel %vm1047, %v1025, -inf
        %v1063 = vrot.slane %v1062, 4
        %v1064 = vmax.f32 %v1062, %v1063
        %v1065 = vrot.slane %v1064, 2
        %v1066 = vmax.f32 %v1064, %v1065
        %v1067 = vrot.slane %v1066, 1
        %v1068 = vmax.f32 %v1066, %v1067
        %v1069 = vsel %vm1047, %v1026, -inf
        %v1070 = vrot.slane %v1069, 4
        %v1071 = vmax.f32 %v1069, %v1070
        %v1072 = vrot.slane %v1071, 2
        %v1073 = vmax.f32 %v1071, %v1072
        %v1074 = vrot.slane %v1073, 1
        %v1075 = vmax.f32 %v1073, %v1074
        %v1076 = vsel %vm1047, %v1027, -inf
        %v1077 = vrot.slane %v1076, 4
        %v1078 = vmax.f32 %v1076, %v1077
        %v1079 = vrot.slane %v1078, 2
        %v1080 = vmax.f32 %v1078, %v1079
        %v1081 = vrot.slane %v1080, 1
        %v1082 = vmax.f32 %v1080, %v1081
        %vm1083 = vcmask 492544
        %v1084 = vsel %vm1083, %v1028, -inf
        %v1085 = vrot.slane %v1084, 4
        %v1086 = vmax.f32 %v1084, %v1085
        %v1087 = vrot.slane %v1086, 2
        %v1088 = vmax.f32 %v1086, %v1087
        %v1089 = vrot.slane %v1088, 1
        %v1090 = vmax.f32 %v1088, %v1089
        %s1091 = sld [smem:[#allocation2 + $0x3]]
        %v1092 = vstv %s1091
        %v1093 = vmul.f32 %v1054, %v1092
        %v1094 = vmul.f32 %v1061, %v1092
        %v1095 = vmul.f32 %v1068, %v1092
        %v1096 = vmul.f32 %v1075, %v1092
        %v1097 = vmul.f32 %v1082, %v1092
        %v1098 = vmul.f32 %v1090, %v1092
        %vm1099 = vcmask 1043458
        %v1100 = vsel %vm1099, %v1023, -inf
        %v1101 = vrot.slane %v1100, 4
        %v1102 = vmax.f32 %v1100, %v1101
        %v1103 = vrot.slane %v1102, 2
        %v1104 = vmax.f32 %v1102, %v1103
        %v1105 = vrot.slane %v1104, 1
        %v1106 = vmax.f32 %v1104, %v1105
        %v1107 = vsel %vm1099, %v1024, -inf
        %v1108 = vrot.slane %v1107, 4
        %v1109 = vmax.f32 %v1107, %v1108
        %v1110 = vrot.slane %v1109, 2
        %v1111 = vmax.f32 %v1109, %v1110
        %v1112 = vrot.slane %v1111, 1
        %v1113 = vmax.f32 %v1111, %v1112
        %v1114 = vsel %vm1099, %v1025, -inf
        %v1115 = vrot.slane %v1114, 4
        %v1116 = vmax.f32 %v1114, %v1115
        %v1117 = vrot.slane %v1116, 2
        %v1118 = vmax.f32 %v1116, %v1117
        %v1119 = vrot.slane %v1118, 1
        %v1120 = vmax.f32 %v1118, %v1119
        %v1121 = vsel %vm1099, %v1026, -inf
        %v1122 = vrot.slane %v1121, 4
        %v1123 = vmax.f32 %v1121, %v1122
        %v1124 = vrot.slane %v1123, 2
        %v1125 = vmax.f32 %v1123, %v1124
        %v1126 = vrot.slane %v1125, 1
        %v1127 = vmax.f32 %v1125, %v1126
        %v1128 = vsel %vm1099, %v1027, -inf
        %v1129 = vrot.slane %v1128, 4
        %v1130 = vmax.f32 %v1128, %v1129
        %v1131 = vrot.slane %v1130, 2
        %v1132 = vmax.f32 %v1130, %v1131
        %v1133 = vrot.slane %v1132, 1
        %v1134 = vmax.f32 %v1132, %v1133
        %vm1135 = vcmask 494594
        %v1136 = vsel %vm1135, %v1028, -inf
        %v1137 = vrot.slane %v1136, 4
        %v1138 = vmax.f32 %v1136, %v1137
        %v1139 = vrot.slane %v1138, 2
        %v1140 = vmax.f32 %v1138, %v1139
        %v1141 = vrot.slane %v1140, 1
        %v1142 = vmax.f32 %v1140, %v1141
        %s1143 = sld [smem:[#allocation2 + $0x4]]
        %v1144 = vstv %s1143
        %v1145 = vmul.f32 %v1106, %v1144
        %v1146 = vmul.f32 %v1113, %v1144
        %v1147 = vmul.f32 %v1120, %v1144
        %v1148 = vmul.f32 %v1127, %v1144
        %v1149 = vmul.f32 %v1134, %v1144
        %v1150 = vmul.f32 %v1142, %v1144
        %v1151 = vadd.f32 %v1093, %v1145
        %v1152 = vadd.f32 %v1094, %v1146
        %v1153 = vadd.f32 %v1095, %v1147
        %v1154 = vadd.f32 %v1096, %v1148
        %v1155 = vadd.f32 %v1097, %v1149
        %v1156 = vadd.f32 %v1098, %v1150
        %vm1157 = vcmask 1045508
        %v1158 = vsel %vm1157, %v1023, -inf
        %v1159 = vrot.slane %v1158, 4
        %v1160 = vmax.f32 %v1158, %v1159
        %v1161 = vrot.slane %v1160, 2
        %v1162 = vmax.f32 %v1160, %v1161
        %v1163 = vrot.slane %v1162, 1
        %v1164 = vmax.f32 %v1162, %v1163
        %v1165 = vsel %vm1157, %v1024, -inf
        %v1166 = vrot.slane %v1165, 4
        %v1167 = vmax.f32 %v1165, %v1166
        %v1168 = vrot.slane %v1167, 2
        %v1169 = vmax.f32 %v1167, %v1168
        %v1170 = vrot.slane %v1169, 1
        %v1171 = vmax.f32 %v1169, %v1170
        %v1172 = vsel %vm1157, %v1025, -inf
        %v1173 = vrot.slane %v1172, 4
        %v1174 = vmax.f32 %v1172, %v1173
        %v1175 = vrot.slane %v1174, 2
        %v1176 = vmax.f32 %v1174, %v1175
        %v1177 = vrot.slane %v1176, 1
        %v1178 = vmax.f32 %v1176, %v1177
        %v1179 = vsel %vm1157, %v1026, -inf
        %v1180 = vrot.slane %v1179, 4
        %v1181 = vmax.f32 %v1179, %v1180
        %v1182 = vrot.slane %v1181, 2
        %v1183 = vmax.f32 %v1181, %v1182
        %v1184 = vrot.slane %v1183, 1
        %v1185 = vmax.f32 %v1183, %v1184
        %v1186 = vsel %vm1157, %v1027, -inf
        %v1187 = vrot.slane %v1186, 4
        %v1188 = vmax.f32 %v1186, %v1187
        %v1189 = vrot.slane %v1188, 2
        %v1190 = vmax.f32 %v1188, %v1189
        %v1191 = vrot.slane %v1190, 1
        %v1192 = vmax.f32 %v1190, %v1191
        %vm1193 = vcmask 496644
        %v1194 = vsel %vm1193, %v1028, -inf
        %v1195 = vrot.slane %v1194, 4
        %v1196 = vmax.f32 %v1194, %v1195
        %v1197 = vrot.slane %v1196, 2
        %v1198 = vmax.f32 %v1196, %v1197
        %v1199 = vrot.slane %v1198, 1
        %v1200 = vmax.f32 %v1198, %v1199
        %s1201 = sld [smem:[#allocation2 + $0x5]]
        %v1202 = vstv %s1201
        %v1203 = vmul.f32 %v1164, %v1202
        %v1204 = vmul.f32 %v1171, %v1202
        %v1205 = vmul.f32 %v1178, %v1202
        %v1206 = vmul.f32 %v1185, %v1202
        %v1207 = vmul.f32 %v1192, %v1202
        %v1208 = vmul.f32 %v1200, %v1202
        %v1209 = vadd.f32 %v1151, %v1203
        %v1210 = vadd.f32 %v1152, %v1204
        %v1211 = vadd.f32 %v1153, %v1205
        %v1212 = vadd.f32 %v1154, %v1206
        %v1213 = vadd.f32 %v1155, %v1207
        %v1214 = vadd.f32 %v1156, %v1208
        %vm1215 = vcmask 1047558
        %v1216 = vsel %vm1215, %v1023, -inf
        %v1217 = vrot.slane %v1216, 4
        %v1218 = vmax.f32 %v1216, %v1217
        %v1219 = vrot.slane %v1218, 2
        %v1220 = vmax.f32 %v1218, %v1219
        %v1221 = vrot.slane %v1220, 1
        %v1222 = vmax.f32 %v1220, %v1221
        %v1223 = vsel %vm1215, %v1024, -inf
        %v1224 = vrot.slane %v1223, 4
        %v1225 = vmax.f32 %v1223, %v1224
        %v1226 = vrot.slane %v1225, 2
        %v1227 = vmax.f32 %v1225, %v1226
        %v1228 = vrot.slane %v1227, 1
        %v1229 = vmax.f32 %v1227, %v1228
        %v1230 = vsel %vm1215, %v1025, -inf
        %v1231 = vrot.slane %v1230, 4
        %v1232 = vmax.f32 %v1230, %v1231
        %v1233 = vrot.slane %v1232, 2
        %v1234 = vmax.f32 %v1232, %v1233
        %v1235 = vrot.slane %v1234, 1
        %v1236 = vmax.f32 %v1234, %v1235
        %v1237 = vsel %vm1215, %v1026, -inf
        %v1238 = vrot.slane %v1237, 4
        %v1239 = vmax.f32 %v1237, %v1238
        %v1240 = vrot.slane %v1239, 2
        %v1241 = vmax.f32 %v1239, %v1240
        %v1242 = vrot.slane %v1241, 1
        %v1243 = vmax.f32 %v1241, %v1242
        %v1244 = vsel %vm1215, %v1027, -inf
        %v1245 = vrot.slane %v1244, 4
        %v1246 = vmax.f32 %v1244, %v1245
        %v1247 = vrot.slane %v1246, 2
        %v1248 = vmax.f32 %v1246, %v1247
        %v1249 = vrot.slane %v1248, 1
        %v1250 = vmax.f32 %v1248, %v1249
        %vm1251 = vcmask 498694
        %v1252 = vsel %vm1251, %v1028, -inf
        %v1253 = vrot.slane %v1252, 4
        %v1254 = vmax.f32 %v1252, %v1253
        %v1255 = vrot.slane %v1254, 2
        %v1256 = vmax.f32 %v1254, %v1255
        %v1257 = vrot.slane %v1256, 1
        %v1258 = vmax.f32 %v1256, %v1257
        %s1259 = sld [smem:[#allocation2 + $0x6]]
        %v1260 = vstv %s1259
        %v1261 = vmul.f32 %v1222, %v1260
        %v1262 = vmul.f32 %v1229, %v1260
        %v1263 = vmul.f32 %v1236, %v1260
        %v1264 = vmul.f32 %v1243, %v1260
        %v1265 = vmul.f32 %v1250, %v1260
        %v1266 = vmul.f32 %v1258, %v1260
        %v1267 = vadd.f32 %v1209, %v1261
        %v1268 = vadd.f32 %v1210, %v1262
        %v1269 = vadd.f32 %v1211, %v1263
        %v1270 = vadd.f32 %v1212, %v1264
        %v1271 = vadd.f32 %v1213, %v1265
        %v1272 = vadd.f32 %v1214, %v1266
        %v1273 = vsel %vm1047, %v1029, -inf
        %v1274 = vrot.slane %v1273, 4
        %v1275 = vmax.f32 %v1273, %v1274
        %v1276 = vrot.slane %v1275, 2
        %v1277 = vmax.f32 %v1275, %v1276
        %v1278 = vrot.slane %v1277, 1
        %v1279 = vmax.f32 %v1277, %v1278
        %v1280 = vsel %vm1047, %v1030, -inf
        %v1281 = vrot.slane %v1280, 4
        %v1282 = vmax.f32 %v1280, %v1281
        %v1283 = vrot.slane %v1282, 2
        %v1284 = vmax.f32 %v1282, %v1283
        %v1285 = vrot.slane %v1284, 1
        %v1286 = vmax.f32 %v1284, %v1285
        %v1287 = vsel %vm1047, %v1031, -inf
        %v1288 = vrot.slane %v1287, 4
        %v1289 = vmax.f32 %v1287, %v1288
        %v1290 = vrot.slane %v1289, 2
        %v1291 = vmax.f32 %v1289, %v1290
        %v1292 = vrot.slane %v1291, 1
        %v1293 = vmax.f32 %v1291, %v1292
        %v1294 = vsel %vm1047, %v1032, -inf
        %v1295 = vrot.slane %v1294, 4
        %v1296 = vmax.f32 %v1294, %v1295
        %v1297 = vrot.slane %v1296, 2
        %v1298 = vmax.f32 %v1296, %v1297
        %v1299 = vrot.slane %v1298, 1
        %v1300 = vmax.f32 %v1298, %v1299
        %v1301 = vsel %vm1047, %v1033, -inf
        %v1302 = vrot.slane %v1301, 4
        %v1303 = vmax.f32 %v1301, %v1302
        %v1304 = vrot.slane %v1303, 2
        %v1305 = vmax.f32 %v1303, %v1304
        %v1306 = vrot.slane %v1305, 1
        %v1307 = vmax.f32 %v1305, %v1306
        %v1308 = vsel %vm1083, %v1034, -inf
        %v1309 = vrot.slane %v1308, 4
        %v1310 = vmax.f32 %v1308, %v1309
        %v1311 = vrot.slane %v1310, 2
        %v1312 = vmax.f32 %v1310, %v1311
        %v1313 = vrot.slane %v1312, 1
        %v1314 = vmax.f32 %v1312, %v1313
        %s1315 = sld [smem:[#allocation2 + $0x7]]
        %v1316 = vstv %s1315
        %v1317 = vmul.f32 %v1279, %v1316
        %v1318 = vmul.f32 %v1286, %v1316
        %v1319 = vmul.f32 %v1293, %v1316
        %v1320 = vmul.f32 %v1300, %v1316
        %v1321 = vmul.f32 %v1307, %v1316
        %v1322 = vmul.f32 %v1314, %v1316
        %v1323 = vadd.f32 %v1267, %v1317
        %v1324 = vadd.f32 %v1268, %v1318
        %v1325 = vadd.f32 %v1269, %v1319
        %v1326 = vadd.f32 %v1270, %v1320
        %v1327 = vadd.f32 %v1271, %v1321
        %v1328 = vadd.f32 %v1272, %v1322
        %v1329 = vsel %vm1099, %v1029, -inf
        %v1330 = vrot.slane %v1329, 4
        %v1331 = vmax.f32 %v1329, %v1330
        %v1332 = vrot.slane %v1331, 2
        %v1333 = vmax.f32 %v1331, %v1332
        %v1334 = vrot.slane %v1333, 1
        %v1335 = vmax.f32 %v1333, %v1334
        %v1336 = vsel %vm1099, %v1030, -inf
        %v1337 = vrot.slane %v1336, 4
        %v1338 = vmax.f32 %v1336, %v1337
        %v1339 = vrot.slane %v1338, 2
        %v1340 = vmax.f32 %v1338, %v1339
        %v1341 = vrot.slane %v1340, 1
        %v1342 = vmax.f32 %v1340, %v1341
        %v1343 = vsel %vm1099, %v1031, -inf
        %v1344 = vrot.slane %v1343, 4
        %v1345 = vmax.f32 %v1343, %v1344
        %v1346 = vrot.slane %v1345, 2
        %v1347 = vmax.f32 %v1345, %v1346
        %v1348 = vrot.slane %v1347, 1
        %v1349 = vmax.f32 %v1347, %v1348
        %v1350 = vsel %vm1099, %v1032, -inf
        %v1351 = vrot.slane %v1350, 4
        %v1352 = vmax.f32 %v1350, %v1351
        %v1353 = vrot.slane %v1352, 2
        %v1354 = vmax.f32 %v1352, %v1353
        %v1355 = vrot.slane %v1354, 1
        %v1356 = vmax.f32 %v1354, %v1355
        %v1357 = vsel %vm1099, %v1033, -inf
        %v1358 = vrot.slane %v1357, 4
        %v1359 = vmax.f32 %v1357, %v1358
        %v1360 = vrot.slane %v1359, 2
        %v1361 = vmax.f32 %v1359, %v1360
        %v1362 = vrot.slane %v1361, 1
        %v1363 = vmax.f32 %v1361, %v1362
        %v1364 = vsel %vm1135, %v1034, -inf
        %v1365 = vrot.slane %v1364, 4
        %v1366 = vmax.f32 %v1364, %v1365
        %v1367 = vrot.slane %v1366, 2
        %v1368 = vmax.f32 %v1366, %v1367
        %v1369 = vrot.slane %v1368, 1
        %v1370 = vmax.f32 %v1368, %v1369
        %s1371 = sld [smem:[#allocation2 + $0x8]]
        %v1372 = vstv %s1371
        %v1373 = vmul.f32 %v1335, %v1372
        %v1374 = vmul.f32 %v1342, %v1372
        %v1375 = vmul.f32 %v1349, %v1372
        %v1376 = vmul.f32 %v1356, %v1372
        %v1377 = vmul.f32 %v1363, %v1372
        %v1378 = vmul.f32 %v1370, %v1372
        %v1379 = vadd.f32 %v1323, %v1373
        %v1380 = vadd.f32 %v1324, %v1374
        %v1381 = vadd.f32 %v1325, %v1375
        %v1382 = vadd.f32 %v1326, %v1376
        %v1383 = vadd.f32 %v1327, %v1377
        %v1384 = vadd.f32 %v1328, %v1378
        %v1385 = vsel %vm1157, %v1029, -inf
        %v1386 = vrot.slane %v1385, 4
        %v1387 = vmax.f32 %v1385, %v1386
        %v1388 = vrot.slane %v1387, 2
        %v1389 = vmax.f32 %v1387, %v1388
        %v1390 = vrot.slane %v1389, 1
        %v1391 = vmax.f32 %v1389, %v1390
        %v1392 = vsel %vm1157, %v1030, -inf
        %v1393 = vrot.slane %v1392, 4
        %v1394 = vmax.f32 %v1392, %v1393
        %v1395 = vrot.slane %v1394, 2
        %v1396 = vmax.f32 %v1394, %v1395
        %v1397 = vrot.slane %v1396, 1
        %v1398 = vmax.f32 %v1396, %v1397
        %v1399 = vsel %vm1157, %v1031, -inf
        %v1400 = vrot.slane %v1399, 4
        %v1401 = vmax.f32 %v1399, %v1400
        %v1402 = vrot.slane %v1401, 2
        %v1403 = vmax.f32 %v1401, %v1402
        %v1404 = vrot.slane %v1403, 1
        %v1405 = vmax.f32 %v1403, %v1404
        %v1406 = vsel %vm1157, %v1032, -inf
        %v1407 = vrot.slane %v1406, 4
        %v1408 = vmax.f32 %v1406, %v1407
        %v1409 = vrot.slane %v1408, 2
        %v1410 = vmax.f32 %v1408, %v1409
        %v1411 = vrot.slane %v1410, 1
        %v1412 = vmax.f32 %v1410, %v1411
        %v1413 = vsel %vm1157, %v1033, -inf
        %v1414 = vrot.slane %v1413, 4
        %v1415 = vmax.f32 %v1413, %v1414
        %v1416 = vrot.slane %v1415, 2
        %v1417 = vmax.f32 %v1415, %v1416
        %v1418 = vrot.slane %v1417, 1
        %v1419 = vmax.f32 %v1417, %v1418
        %v1420 = vsel %vm1193, %v1034, -inf
        %v1421 = vrot.slane %v1420, 4
        %v1422 = vmax.f32 %v1420, %v1421
        %v1423 = vrot.slane %v1422, 2
        %v1424 = vmax.f32 %v1422, %v1423
        %v1425 = vrot.slane %v1424, 1
        %v1426 = vmax.f32 %v1424, %v1425
        %s1427 = sld [smem:[#allocation2 + $0x9]]
        %v1428 = vstv %s1427
        %v1429 = vmul.f32 %v1391, %v1428
        %v1430 = vmul.f32 %v1398, %v1428
        %v1431 = vmul.f32 %v1405, %v1428
        %v1432 = vmul.f32 %v1412, %v1428
        %v1433 = vmul.f32 %v1419, %v1428
        %v1434 = vmul.f32 %v1426, %v1428
        %v1435 = vadd.f32 %v1379, %v1429
        %v1436 = vadd.f32 %v1380, %v1430
        %v1437 = vadd.f32 %v1381, %v1431
        %v1438 = vadd.f32 %v1382, %v1432
        %v1439 = vadd.f32 %v1383, %v1433
        %v1440 = vadd.f32 %v1384, %v1434
        %v1441 = vsel %vm1215, %v1029, -inf
        %v1442 = vrot.slane %v1441, 4
        %v1443 = vmax.f32 %v1441, %v1442
        %v1444 = vrot.slane %v1443, 2
        %v1445 = vmax.f32 %v1443, %v1444
        %v1446 = vrot.slane %v1445, 1
        %v1447 = vmax.f32 %v1445, %v1446
        %v1448 = vsel %vm1215, %v1030, -inf
        %v1449 = vrot.slane %v1448, 4
        %v1450 = vmax.f32 %v1448, %v1449
        %v1451 = vrot.slane %v1450, 2
        %v1452 = vmax.f32 %v1450, %v1451
        %v1453 = vrot.slane %v1452, 1
        %v1454 = vmax.f32 %v1452, %v1453
        %v1455 = vsel %vm1215, %v1031, -inf
        %v1456 = vrot.slane %v1455, 4
        %v1457 = vmax.f32 %v1455, %v1456
        %v1458 = vrot.slane %v1457, 2
        %v1459 = vmax.f32 %v1457, %v1458
        %v1460 = vrot.slane %v1459, 1
        %v1461 = vmax.f32 %v1459, %v1460
        %v1462 = vsel %vm1215, %v1032, -inf
        %v1463 = vrot.slane %v1462, 4
        %v1464 = vmax.f32 %v1462, %v1463
        %v1465 = vrot.slane %v1464, 2
        %v1466 = vmax.f32 %v1464, %v1465
        %v1467 = vrot.slane %v1466, 1
        %v1468 = vmax.f32 %v1466, %v1467
        %v1469 = vsel %vm1215, %v1033, -inf
        %v1470 = vrot.slane %v1469, 4
        %v1471 = vmax.f32 %v1469, %v1470
        %v1472 = vrot.slane %v1471, 2
        %v1473 = vmax.f32 %v1471, %v1472
        %v1474 = vrot.slane %v1473, 1
        %v1475 = vmax.f32 %v1473, %v1474
        %v1476 = vsel %vm1251, %v1034, -inf
        %v1477 = vrot.slane %v1476, 4
        %v1478 = vmax.f32 %v1476, %v1477
        %v1479 = vrot.slane %v1478, 2
        %v1480 = vmax.f32 %v1478, %v1479
        %v1481 = vrot.slane %v1480, 1
        %v1482 = vmax.f32 %v1480, %v1481
        %s1483 = sld [smem:[#allocation2 + $0xa]]
        %v1484 = vstv %s1483
        %v1485 = vmul.f32 %v1447, %v1484
        %v1486 = vmul.f32 %v1454, %v1484
        %v1487 = vmul.f32 %v1461, %v1484
        %v1488 = vmul.f32 %v1468, %v1484
        %v1489 = vmul.f32 %v1475, %v1484
        %v1490 = vmul.f32 %v1482, %v1484
        %v1491 = vadd.f32 %v1435, %v1485
        %v1492 = vadd.f32 %v1436, %v1486
        %v1493 = vadd.f32 %v1437, %v1487
        %v1494 = vadd.f32 %v1438, %v1488
        %v1495 = vadd.f32 %v1439, %v1489
        %v1496 = vadd.f32 %v1440, %v1490
        %v1497 = vsel %vm1047, %v1035, -inf
        %v1498 = vrot.slane %v1497, 4
        %v1499 = vmax.f32 %v1497, %v1498
        %v1500 = vrot.slane %v1499, 2
        %v1501 = vmax.f32 %v1499, %v1500
        %v1502 = vrot.slane %v1501, 1
        %v1503 = vmax.f32 %v1501, %v1502
        %v1504 = vsel %vm1047, %v1036, -inf
        %v1505 = vrot.slane %v1504, 4
        %v1506 = vmax.f32 %v1504, %v1505
        %v1507 = vrot.slane %v1506, 2
        %v1508 = vmax.f32 %v1506, %v1507
        %v1509 = vrot.slane %v1508, 1
        %v1510 = vmax.f32 %v1508, %v1509
        %v1511 = vsel %vm1047, %v1037, -inf
        %v1512 = vrot.slane %v1511, 4
        %v1513 = vmax.f32 %v1511, %v1512
        %v1514 = vrot.slane %v1513, 2
        %v1515 = vmax.f32 %v1513, %v1514
        %v1516 = vrot.slane %v1515, 1
        %v1517 = vmax.f32 %v1515, %v1516
        %v1518 = vsel %vm1047, %v1038, -inf
        %v1519 = vrot.slane %v1518, 4
        %v1520 = vmax.f32 %v1518, %v1519
        %v1521 = vrot.slane %v1520, 2
        %v1522 = vmax.f32 %v1520, %v1521
        %v1523 = vrot.slane %v1522, 1
        %v1524 = vmax.f32 %v1522, %v1523
        %v1525 = vsel %vm1047, %v1039, -inf
        %v1526 = vrot.slane %v1525, 4
        %v1527 = vmax.f32 %v1525, %v1526
        %v1528 = vrot.slane %v1527, 2
        %v1529 = vmax.f32 %v1527, %v1528
        %v1530 = vrot.slane %v1529, 1
        %v1531 = vmax.f32 %v1529, %v1530
        %v1532 = vsel %vm1083, %v1040, -inf
        %v1533 = vrot.slane %v1532, 4
        %v1534 = vmax.f32 %v1532, %v1533
        %v1535 = vrot.slane %v1534, 2
        %v1536 = vmax.f32 %v1534, %v1535
        %v1537 = vrot.slane %v1536, 1
        %v1538 = vmax.f32 %v1536, %v1537
        %s1539 = sld [smem:[#allocation2 + $0xb]]
        %v1540 = vstv %s1539
        %v1541 = vmul.f32 %v1503, %v1540
        %v1542 = vmul.f32 %v1510, %v1540
        %v1543 = vmul.f32 %v1517, %v1540
        %v1544 = vmul.f32 %v1524, %v1540
        %v1545 = vmul.f32 %v1531, %v1540
        %v1546 = vmul.f32 %v1538, %v1540
        %v1547 = vadd.f32 %v1491, %v1541
        %v1548 = vadd.f32 %v1492, %v1542
        %v1549 = vadd.f32 %v1493, %v1543
        %v1550 = vadd.f32 %v1494, %v1544
        %v1551 = vadd.f32 %v1495, %v1545
        %v1552 = vadd.f32 %v1496, %v1546
        %v1553 = vsel %vm1099, %v1035, -inf
        %v1554 = vrot.slane %v1553, 4
        %v1555 = vmax.f32 %v1553, %v1554
        %v1556 = vrot.slane %v1555, 2
        %v1557 = vmax.f32 %v1555, %v1556
        %v1558 = vrot.slane %v1557, 1
        %v1559 = vmax.f32 %v1557, %v1558
        %v1560 = vsel %vm1099, %v1036, -inf
        %v1561 = vrot.slane %v1560, 4
        %v1562 = vmax.f32 %v1560, %v1561
        %v1563 = vrot.slane %v1562, 2
        %v1564 = vmax.f32 %v1562, %v1563
        %v1565 = vrot.slane %v1564, 1
        %v1566 = vmax.f32 %v1564, %v1565
        %v1567 = vsel %vm1099, %v1037, -inf
        %v1568 = vrot.slane %v1567, 4
        %v1569 = vmax.f32 %v1567, %v1568
        %v1570 = vrot.slane %v1569, 2
        %v1571 = vmax.f32 %v1569, %v1570
        %v1572 = vrot.slane %v1571, 1
        %v1573 = vmax.f32 %v1571, %v1572
        %v1574 = vsel %vm1099, %v1038, -inf
        %v1575 = vrot.slane %v1574, 4
        %v1576 = vmax.f32 %v1574, %v1575
        %v1577 = vrot.slane %v1576, 2
        %v1578 = vmax.f32 %v1576, %v1577
        %v1579 = vrot.slane %v1578, 1
        %v1580 = vmax.f32 %v1578, %v1579
        %v1581 = vsel %vm1099, %v1039, -inf
        %v1582 = vrot.slane %v1581, 4
        %v1583 = vmax.f32 %v1581, %v1582
        %v1584 = vrot.slane %v1583, 2
        %v1585 = vmax.f32 %v1583, %v1584
        %v1586 = vrot.slane %v1585, 1
        %v1587 = vmax.f32 %v1585, %v1586
        %v1588 = vsel %vm1135, %v1040, -inf
        %v1589 = vrot.slane %v1588, 4
        %v1590 = vmax.f32 %v1588, %v1589
        %v1591 = vrot.slane %v1590, 2
        %v1592 = vmax.f32 %v1590, %v1591
        %v1593 = vrot.slane %v1592, 1
        %v1594 = vmax.f32 %v1592, %v1593
        %s1595 = sld [smem:[#allocation2 + $0xc]]
        %v1596 = vstv %s1595
        %v1597 = vmul.f32 %v1559, %v1596
        %v1598 = vmul.f32 %v1566, %v1596
        %v1599 = vmul.f32 %v1573, %v1596
        %v1600 = vmul.f32 %v1580, %v1596
        %v1601 = vmul.f32 %v1587, %v1596
        %v1602 = vmul.f32 %v1594, %v1596
        %v1603 = vadd.f32 %v1547, %v1597
        %v1604 = vadd.f32 %v1548, %v1598
        %v1605 = vadd.f32 %v1549, %v1599
        %v1606 = vadd.f32 %v1550, %v1600
        %v1607 = vadd.f32 %v1551, %v1601
        %v1608 = vadd.f32 %v1552, %v1602
        %v1609 = vsel %vm1157, %v1035, -inf
        %v1610 = vrot.slane %v1609, 4
        %v1611 = vmax.f32 %v1609, %v1610
        %v1612 = vrot.slane %v1611, 2
        %v1613 = vmax.f32 %v1611, %v1612
        %v1614 = vrot.slane %v1613, 1
        %v1615 = vmax.f32 %v1613, %v1614
        %v1616 = vsel %vm1157, %v1036, -inf
        %v1617 = vrot.slane %v1616, 4
        %v1618 = vmax.f32 %v1616, %v1617
        %v1619 = vrot.slane %v1618, 2
        %v1620 = vmax.f32 %v1618, %v1619
        %v1621 = vrot.slane %v1620, 1
        %v1622 = vmax.f32 %v1620, %v1621
        %v1623 = vsel %vm1157, %v1037, -inf
        %v1624 = vrot.slane %v1623, 4
        %v1625 = vmax.f32 %v1623, %v1624
        %v1626 = vrot.slane %v1625, 2
        %v1627 = vmax.f32 %v1625, %v1626
        %v1628 = vrot.slane %v1627, 1
        %v1629 = vmax.f32 %v1627, %v1628
        %v1630 = vsel %vm1157, %v1038, -inf
        %v1631 = vrot.slane %v1630, 4
        %v1632 = vmax.f32 %v1630, %v1631
        %v1633 = vrot.slane %v1632, 2
        %v1634 = vmax.f32 %v1632, %v1633
        %v1635 = vrot.slane %v1634, 1
        %v1636 = vmax.f32 %v1634, %v1635
        %v1637 = vsel %vm1157, %v1039, -inf
        %v1638 = vrot.slane %v1637, 4
        %v1639 = vmax.f32 %v1637, %v1638
        %v1640 = vrot.slane %v1639, 2
        %v1641 = vmax.f32 %v1639, %v1640
        %v1642 = vrot.slane %v1641, 1
        %v1643 = vmax.f32 %v1641, %v1642
        %v1644 = vsel %vm1193, %v1040, -inf
        %v1645 = vrot.slane %v1644, 4
        %v1646 = vmax.f32 %v1644, %v1645
        %v1647 = vrot.slane %v1646, 2
        %v1648 = vmax.f32 %v1646, %v1647
        %v1649 = vrot.slane %v1648, 1
        %v1650 = vmax.f32 %v1648, %v1649
        %s1651 = sld [smem:[#allocation2 + $0xd]]
        %v1652 = vstv %s1651
        %v1653 = vmul.f32 %v1615, %v1652
        %v1654 = vmul.f32 %v1622, %v1652
        %v1655 = vmul.f32 %v1629, %v1652
        %v1656 = vmul.f32 %v1636, %v1652
        %v1657 = vmul.f32 %v1643, %v1652
        %v1658 = vmul.f32 %v1650, %v1652
        %v1659 = vadd.f32 %v1603, %v1653
        %v1660 = vadd.f32 %v1604, %v1654
        %v1661 = vadd.f32 %v1605, %v1655
        %v1662 = vadd.f32 %v1606, %v1656
        %v1663 = vadd.f32 %v1607, %v1657
        %v1664 = vadd.f32 %v1608, %v1658
        %v1665 = vsel %vm1215, %v1035, -inf
        %v1666 = vrot.slane %v1665, 4
        %v1667 = vmax.f32 %v1665, %v1666
        %v1668 = vrot.slane %v1667, 2
        %v1669 = vmax.f32 %v1667, %v1668
        %v1670 = vrot.slane %v1669, 1
        %v1671 = vmax.f32 %v1669, %v1670
        %v1672 = vsel %vm1215, %v1036, -inf
        %v1673 = vrot.slane %v1672, 4
        %v1674 = vmax.f32 %v1672, %v1673
        %v1675 = vrot.slane %v1674, 2
        %v1676 = vmax.f32 %v1674, %v1675
        %v1677 = vrot.slane %v1676, 1
        %v1678 = vmax.f32 %v1676, %v1677
        %v1679 = vsel %vm1215, %v1037, -inf
        %v1680 = vrot.slane %v1679, 4
        %v1681 = vmax.f32 %v1679, %v1680
        %v1682 = vrot.slane %v1681, 2
        %v1683 = vmax.f32 %v1681, %v1682
        %v1684 = vrot.slane %v1683, 1
        %v1685 = vmax.f32 %v1683, %v1684
        %v1686 = vsel %vm1215, %v1038, -inf
        %v1687 = vrot.slane %v1686, 4
        %v1688 = vmax.f32 %v1686, %v1687
        %v1689 = vrot.slane %v1688, 2
        %v1690 = vmax.f32 %v1688, %v1689
        %v1691 = vrot.slane %v1690, 1
        %v1692 = vmax.f32 %v1690, %v1691
        %v1693 = vsel %vm1215, %v1039, -inf
        %v1694 = vrot.slane %v1693, 4
        %v1695 = vmax.f32 %v1693, %v1694
        %v1696 = vrot.slane %v1695, 2
        %v1697 = vmax.f32 %v1695, %v1696
        %v1698 = vrot.slane %v1697, 1
        %v1699 = vmax.f32 %v1697, %v1698
        %v1700 = vsel %vm1251, %v1040, -inf
        %v1701 = vrot.slane %v1700, 4
        %v1702 = vmax.f32 %v1700, %v1701
        %v1703 = vrot.slane %v1702, 2
        %v1704 = vmax.f32 %v1702, %v1703
        %v1705 = vrot.slane %v1704, 1
        %v1706 = vmax.f32 %v1704, %v1705
        %s1707 = sld [smem:[#allocation2 + $0xe]]
        %v1708 = vstv %s1707
        %v1709 = vmul.f32 %v1671, %v1708
        %v1710 = vmul.f32 %v1678, %v1708
        %v1711 = vmul.f32 %v1685, %v1708
        %v1712 = vmul.f32 %v1692, %v1708
        %v1713 = vmul.f32 %v1699, %v1708
        %v1714 = vmul.f32 %v1706, %v1708
        %v1715 = vadd.f32 %v1659, %v1709
        %v1716 = vadd.f32 %v1660, %v1710
        %v1717 = vadd.f32 %v1661, %v1711
        %v1718 = vadd.f32 %v1662, %v1712
        %v1719 = vadd.f32 %v1663, %v1713
        %v1720 = vadd.f32 %v1664, %v1714
        %v1721 = vsel %vm1047, %v1041, -inf
        %v1722 = vrot.slane %v1721, 4
        %v1723 = vmax.f32 %v1721, %v1722
        %v1724 = vrot.slane %v1723, 2
        %v1725 = vmax.f32 %v1723, %v1724
        %v1726 = vrot.slane %v1725, 1
        %v1727 = vmax.f32 %v1725, %v1726
        %v1728 = vsel %vm1047, %v1042, -inf
        %v1729 = vrot.slane %v1728, 4
        %v1730 = vmax.f32 %v1728, %v1729
        %v1731 = vrot.slane %v1730, 2
        %v1732 = vmax.f32 %v1730, %v1731
        %v1733 = vrot.slane %v1732, 1
        %v1734 = vmax.f32 %v1732, %v1733
        %v1735 = vsel %vm1047, %v1043, -inf
        %v1736 = vrot.slane %v1735, 4
        %v1737 = vmax.f32 %v1735, %v1736
        %v1738 = vrot.slane %v1737, 2
        %v1739 = vmax.f32 %v1737, %v1738
        %v1740 = vrot.slane %v1739, 1
        %v1741 = vmax.f32 %v1739, %v1740
        %v1742 = vsel %vm1047, %v1044, -inf
        %v1743 = vrot.slane %v1742, 4
        %v1744 = vmax.f32 %v1742, %v1743
        %v1745 = vrot.slane %v1744, 2
        %v1746 = vmax.f32 %v1744, %v1745
        %v1747 = vrot.slane %v1746, 1
        %v1748 = vmax.f32 %v1746, %v1747
        %v1749 = vsel %vm1047, %v1045, -inf
        %v1750 = vrot.slane %v1749, 4
        %v1751 = vmax.f32 %v1749, %v1750
        %v1752 = vrot.slane %v1751, 2
        %v1753 = vmax.f32 %v1751, %v1752
        %v1754 = vrot.slane %v1753, 1
        %v1755 = vmax.f32 %v1753, %v1754
        %v1756 = vsel %vm1083, %v1046, -inf
        %v1757 = vrot.slane %v1756, 4
        %v1758 = vmax.f32 %v1756, %v1757
        %v1759 = vrot.slane %v1758, 2
        %v1760 = vmax.f32 %v1758, %v1759
        %v1761 = vrot.slane %v1760, 1
        %v1762 = vmax.f32 %v1760, %v1761
        %s1763 = sld [smem:[#allocation2 + $0xf]]
        %v1764 = vstv %s1763
        %v1765 = vmul.f32 %v1727, %v1764
        %v1766 = vmul.f32 %v1734, %v1764
        %v1767 = vmul.f32 %v1741, %v1764
        %v1768 = vmul.f32 %v1748, %v1764
        %v1769 = vmul.f32 %v1755, %v1764
        %v1770 = vmul.f32 %v1762, %v1764
        %v1771 = vadd.f32 %v1715, %v1765
        %v1772 = vadd.f32 %v1716, %v1766
        %v1773 = vadd.f32 %v1717, %v1767
        %v1774 = vadd.f32 %v1718, %v1768
        %v1775 = vadd.f32 %v1719, %v1769
        %v1776 = vadd.f32 %v1720, %v1770
        %v1777 = vsel %vm1099, %v1041, -inf
        %v1778 = vrot.slane %v1777, 4
        %v1779 = vmax.f32 %v1777, %v1778
        %v1780 = vrot.slane %v1779, 2
        %v1781 = vmax.f32 %v1779, %v1780
        %v1782 = vrot.slane %v1781, 1
        %v1783 = vmax.f32 %v1781, %v1782
        %v1784 = vsel %vm1099, %v1042, -inf
        %v1785 = vrot.slane %v1784, 4
        %v1786 = vmax.f32 %v1784, %v1785
        %v1787 = vrot.slane %v1786, 2
        %v1788 = vmax.f32 %v1786, %v1787
        %v1789 = vrot.slane %v1788, 1
        %v1790 = vmax.f32 %v1788, %v1789
        %v1791 = vsel %vm1099, %v1043, -inf
        %v1792 = vrot.slane %v1791, 4
        %v1793 = vmax.f32 %v1791, %v1792
        %v1794 = vrot.slane %v1793, 2
        %v1795 = vmax.f32 %v1793, %v1794
        %v1796 = vrot.slane %v1795, 1
        %v1797 = vmax.f32 %v1795, %v1796
        %v1798 = vsel %vm1099, %v1044, -inf
        %v1799 = vrot.slane %v1798, 4
        %v1800 = vmax.f32 %v1798, %v1799
        %v1801 = vrot.slane %v1800, 2
        %v1802 = vmax.f32 %v1800, %v1801
        %v1803 = vrot.slane %v1802, 1
        %v1804 = vmax.f32 %v1802, %v1803
        %v1805 = vsel %vm1099, %v1045, -inf
        %v1806 = vrot.slane %v1805, 4
        %v1807 = vmax.f32 %v1805, %v1806
        %v1808 = vrot.slane %v1807, 2
        %v1809 = vmax.f32 %v1807, %v1808
        %v1810 = vrot.slane %v1809, 1
        %v1811 = vmax.f32 %v1809, %v1810
        %v1812 = vsel %vm1135, %v1046, -inf
        %v1813 = vrot.slane %v1812, 4
        %v1814 = vmax.f32 %v1812, %v1813
        %v1815 = vrot.slane %v1814, 2
        %v1816 = vmax.f32 %v1814, %v1815
        %v1817 = vrot.slane %v1816, 1
        %v1818 = vmax.f32 %v1816, %v1817
        %s1819 = sld [smem:[#allocation2 + $0x10]]
        %v1820 = vstv %s1819
        %v1821 = vmul.f32 %v1783, %v1820
        %v1822 = vmul.f32 %v1790, %v1820
        %v1823 = vmul.f32 %v1797, %v1820
        %v1824 = vmul.f32 %v1804, %v1820
        %v1825 = vmul.f32 %v1811, %v1820
        %v1826 = vmul.f32 %v1818, %v1820
        %v1827 = vadd.f32 %v1771, %v1821
        %v1828 = vadd.f32 %v1772, %v1822
        %v1829 = vadd.f32 %v1773, %v1823
        %v1830 = vadd.f32 %v1774, %v1824
        %v1831 = vadd.f32 %v1775, %v1825
        %v1832 = vadd.f32 %v1776, %v1826
        %v1833 = vsel %vm1157, %v1041, -inf
        %v1834 = vrot.slane %v1833, 4
        %v1835 = vmax.f32 %v1833, %v1834
        %v1836 = vrot.slane %v1835, 2
        %v1837 = vmax.f32 %v1835, %v1836
        %v1838 = vrot.slane %v1837, 1
        %v1839 = vmax.f32 %v1837, %v1838
        %v1840 = vsel %vm1157, %v1042, -inf
        %v1841 = vrot.slane %v1840, 4
        %v1842 = vmax.f32 %v1840, %v1841
        %v1843 = vrot.slane %v1842, 2
        %v1844 = vmax.f32 %v1842, %v1843
        %v1845 = vrot.slane %v1844, 1
        %v1846 = vmax.f32 %v1844, %v1845
        %v1847 = vsel %vm1157, %v1043, -inf
        %v1848 = vrot.slane %v1847, 4
        %v1849 = vmax.f32 %v1847, %v1848
        %v1850 = vrot.slane %v1849, 2
        %v1851 = vmax.f32 %v1849, %v1850
        %v1852 = vrot.slane %v1851, 1
        %v1853 = vmax.f32 %v1851, %v1852
        %v1854 = vsel %vm1157, %v1044, -inf
        %v1855 = vrot.slane %v1854, 4
        %v1856 = vmax.f32 %v1854, %v1855
        %v1857 = vrot.slane %v1856, 2
        %v1858 = vmax.f32 %v1856, %v1857
        %v1859 = vrot.slane %v1858, 1
        %v1860 = vmax.f32 %v1858, %v1859
        %v1861 = vsel %vm1157, %v1045, -inf
        %v1862 = vrot.slane %v1861, 4
        %v1863 = vmax.f32 %v1861, %v1862
        %v1864 = vrot.slane %v1863, 2
        %v1865 = vmax.f32 %v1863, %v1864
        %v1866 = vrot.slane %v1865, 1
        %v1867 = vmax.f32 %v1865, %v1866
        %v1868 = vsel %vm1193, %v1046, -inf
        %v1869 = vrot.slane %v1868, 4
        %v1870 = vmax.f32 %v1868, %v1869
        %v1871 = vrot.slane %v1870, 2
        %v1872 = vmax.f32 %v1870, %v1871
        %v1873 = vrot.slane %v1872, 1
        %v1874 = vmax.f32 %v1872, %v1873
        %s1875 = sld [smem:[#allocation2 + $0x11]]
        %v1876 = vstv %s1875
        %v1877 = vmul.f32 %v1839, %v1876
        %v1878 = vmul.f32 %v1846, %v1876
        %v1879 = vmul.f32 %v1853, %v1876
        %v1880 = vmul.f32 %v1860, %v1876
        %v1881 = vmul.f32 %v1867, %v1876
        %v1882 = vmul.f32 %v1874, %v1876
        %v1883 = vadd.f32 %v1827, %v1877
        %v1884 = vadd.f32 %v1828, %v1878
        %v1885 = vadd.f32 %v1829, %v1879
        %v1886 = vadd.f32 %v1830, %v1880
        %v1887 = vadd.f32 %v1831, %v1881
        %v1888 = vadd.f32 %v1832, %v1882
        %v1889 = vsel %vm1215, %v1041, -inf
        %v1890 = vrot.slane %v1889, 4
        %v1891 = vmax.f32 %v1889, %v1890
        %v1892 = vrot.slane %v1891, 2
        %v1893 = vmax.f32 %v1891, %v1892
        %v1894 = vrot.slane %v1893, 1
        %v1895 = vmax.f32 %v1893, %v1894
        %v1896 = vsel %vm1215, %v1042, -inf
        %v1897 = vrot.slane %v1896, 4
        %v1898 = vmax.f32 %v1896, %v1897
        %v1899 = vrot.slane %v1898, 2
        %v1900 = vmax.f32 %v1898, %v1899
        %v1901 = vrot.slane %v1900, 1
        %v1902 = vmax.f32 %v1900, %v1901
        %v1903 = vsel %vm1215, %v1043, -inf
        %v1904 = vrot.slane %v1903, 4
        %v1905 = vmax.f32 %v1903, %v1904
        %v1906 = vrot.slane %v1905, 2
        %v1907 = vmax.f32 %v1905, %v1906
        %v1908 = vrot.slane %v1907, 1
        %v1909 = vmax.f32 %v1907, %v1908
        %v1910 = vsel %vm1215, %v1044, -inf
        %v1911 = vrot.slane %v1910, 4
        %v1912 = vmax.f32 %v1910, %v1911
        %v1913 = vrot.slane %v1912, 2
        %v1914 = vmax.f32 %v1912, %v1913
        %v1915 = vrot.slane %v1914, 1
        %v1916 = vmax.f32 %v1914, %v1915
        %v1917 = vsel %vm1215, %v1045, -inf
        %v1918 = vrot.slane %v1917, 4
        %v1919 = vmax.f32 %v1917, %v1918
        %v1920 = vrot.slane %v1919, 2
        %v1921 = vmax.f32 %v1919, %v1920
        %v1922 = vrot.slane %v1921, 1
        %v1923 = vmax.f32 %v1921, %v1922
        %v1924 = vsel %vm1251, %v1046, -inf
        %v1925 = vrot.slane %v1924, 4
        %v1926 = vmax.f32 %v1924, %v1925
        %v1927 = vrot.slane %v1926, 2
        %v1928 = vmax.f32 %v1926, %v1927
        %v1929 = vrot.slane %v1928, 1
        %v1930 = vmax.f32 %v1928, %v1929
        %s1931 = sld [smem:[#allocation2 + $0x12]]
        %v1932 = vstv %s1931
        %v1933 = vmul.f32 %v1895, %v1932
        %v1934 = vmul.f32 %v1902, %v1932
        %v1935 = vmul.f32 %v1909, %v1932
        %v1936 = vmul.f32 %v1916, %v1932
        %v1937 = vmul.f32 %v1923, %v1932
        %v1938 = vmul.f32 %v1930, %v1932
        %v1939 = vadd.f32 %v1883, %v1933
        %v1940 = vadd.f32 %v1884, %v1934
        %v1941 = vadd.f32 %v1885, %v1935
        %v1942 = vadd.f32 %v1886, %v1936
        %v1943 = vadd.f32 %v1887, %v1937
        %v1944 = vadd.f32 %v1888, %v1938
        %v1945 = vadd.f32 %v1939, %v546
        %v1946 = vadd.f32 %v1940, %v546
        %v1947 = vadd.f32 %v1941, %v546
        %v1948 = vadd.f32 %v1942, %v546
        %v1949 = vadd.f32 %v1943, %v546
        %v1950 = vadd.f32 %v1944, %v546
        %v1951 = vmax.f32 %v1945, 0.0
        %v1952 = vmax.f32 %v1946, 0.0
        %v1953 = vmax.f32 %v1947, 0.0
        %v1954 = vmax.f32 %v1948, 0.0
        %v1955 = vmax.f32 %v1949, 0.0
        %v1956 = vmax.f32 %v1950, 0.0
        %v1957 = vld [vmem:[%s2] sm:$0xff]
        %v1958 = vld [vmem:[%s2 + $0x8] sm:$0xff]
        %v1959 = vld [vmem:[%s2 + $0x10] sm:$0xff]
        %v1960 = vld [vmem:[%s2 + $0x18] sm:$0xff]
        %v1961 = vld [vmem:[%s2 + $0x20] sm:$0xff]
        %v1962 = vld [vmem:[%s2 + $0x28] sm:$0xff]
        %v1963 = vld [vmem:[%s2 + $0x30] sm:$0xff]
        %v1964 = vld [vmem:[%s2 + $0x38] sm:$0xff]
        %v1965 = vld [vmem:[%s2 + $0x40] sm:$0xff]
        %v1966 = vld [vmem:[%s2 + $0x48] sm:$0xff]
        %v1967 = vld [vmem:[%s2 + $0x50] sm:$0xff]
        %v1968 = vld [vmem:[%s2 + $0x58] sm:$0xff]
        %v1969 = vld [vmem:[%s2 + $0x60] sm:$0xff]
        %v1970 = vld [vmem:[%s2 + $0x68] sm:$0xff]
        %v1971 = vld [vmem:[%s2 + $0x70] sm:$0xff]
        %v1972 = vld [vmem:[%s2 + $0x78] sm:$0xff]
        %v1973 = vld [vmem:[%s2 + $0x80] sm:$0xff]
        %v1974 = vld [vmem:[%s2 + $0x88] sm:$0xff]
        %v1975 = vld [vmem:[%s2 + $0x90] sm:$0xff]
        %v1976 = vld [vmem:[%s2 + $0x98] sm:$0xff]
        %v1977 = vld [vmem:[%s2 + $0xa0] sm:$0xff]
        %v1978 = vld [vmem:[%s2 + $0xa8] sm:$0xff]
        %v1979 = vld [vmem:[%s2 + $0xb0] sm:$0xff]
        %v1980 = vld [vmem:[%s2 + $0xb8] sm:$0xff]
        %v1981 = vld [vmem:[%s2 + $0xc0] sm:$0xff]
        %v1982 = vld [vmem:[%s2 + $0xc8] sm:$0xff]
        %v1983 = vld [vmem:[%s2 + $0xd0] sm:$0xff]
        %v1984 = vld [vmem:[%s2 + $0xd8] sm:$0xff]
        %v1985 = vld [vmem:[%s2 + $0xe0] sm:$0xff]
        %v1986 = vld [vmem:[%s2 + $0xe8] sm:$0xff]
        %v1987 = vld [vmem:[%s2 + $0xf0] sm:$0xff]
        %v1988 = vld [vmem:[%s2 + $0xf8] sm:$0xff]
        %v1989 = vld [vmem:[%s2 + $0x100] sm:$0xff]
        %v1990 = vld [vmem:[%s2 + $0x108] sm:$0xff]
        %v1991 = vld [vmem:[%s2 + $0x110] sm:$0xff]
        %v1992 = vld [vmem:[%s2 + $0x118] sm:$0xff]
        %v1993 = vld [vmem:[%s2 + $0x120] sm:$0xff]
        %v1994 = vld [vmem:[%s2 + $0x128] sm:$0xff]
        %v1995 = vld [vmem:[%s2 + $0x130] sm:$0xff]
        %v1996 = vld [vmem:[%s2 + $0x138] sm:$0xff]
        %v1997 = vld [vmem:[%s2 + $0x140] sm:$0xff]
        %v1998 = vld [vmem:[%s2 + $0x148] sm:$0xff]
        %v1999 = vld [vmem:[%s2 + $0x150] sm:$0xff]
        %v2000 = vld [vmem:[%s2 + $0x158] sm:$0xff]
        %v2001 = vld [vmem:[%s2 + $0x160] sm:$0xff]
        %v2002 = vld [vmem:[%s2 + $0x168] sm:$0xff]
        %v2003 = vld [vmem:[%s2 + $0x170] sm:$0xff]
        %v2004 = vld [vmem:[%s2 + $0x178] sm:$0xff]
        %v2005 = vld [vmem:[%s2 + $0x180] sm:$0xff]
        %v2006 = vld [vmem:[%s2 + $0x188] sm:$0xff]
        %v2007 = vld [vmem:[%s2 + $0x190] sm:$0xff]
        %v2008 = vld [vmem:[%s2 + $0x198] sm:$0xff]
        %v2009 = vld [vmem:[%s2 + $0x1a0] sm:$0xff]
        %v2010 = vld [vmem:[%s2 + $0x1a8] sm:$0xff]
        %v2011 = vld [vmem:[%s2 + $0x1b0] sm:$0xff]
        %v2012 = vld [vmem:[%s2 + $0x1b8] sm:$0xff]
        %v2013 = vld [vmem:[%s2 + $0x1c0] sm:$0xff]
        %v2014 = vld [vmem:[%s2 + $0x1c8] sm:$0xff]
        %v2015 = vld [vmem:[%s2 + $0x1d0] sm:$0xff]
        %v2016 = vld [vmem:[%s2 + $0x1d8] sm:$0xff]
        %v2017 = vld [vmem:[%s2 + $0x1e0] sm:$0xff]
        %v2018 = vld [vmem:[%s2 + $0x1e8] sm:$0xff]
        %v2019 = vld [vmem:[%s2 + $0x1f0] sm:$0xff]
        %v2020 = vld [vmem:[%s2 + $0x1f8] sm:$0xff]
        %v2021 = vld [vmem:[%s2 + $0x200] sm:$0xff]
        %v2022 = vld [vmem:[%s2 + $0x208] sm:$0xff]
        %v2023 = vld [vmem:[%s2 + $0x210] sm:$0xff]
        %v2024 = vld [vmem:[%s2 + $0x218] sm:$0xff]
        %v2025 = vld [vmem:[%s2 + $0x220] sm:$0xff]
        %v2026 = vld [vmem:[%s2 + $0x228] sm:$0xff]
        %v2027 = vld [vmem:[%s2 + $0x230] sm:$0xff]
        %v2028 = vld [vmem:[%s2 + $0x238] sm:$0xff]
        %v2029 = vld [vmem:[%s2 + $0x240] sm:$0xff]
        %v2030 = vld [vmem:[%s2 + $0x248] sm:$0xff]
        %v2031 = vld [vmem:[%s2 + $0x250] sm:$0xff]
        %v2032 = vld [vmem:[%s2 + $0x258] sm:$0xff]
        %v2033 = vld [vmem:[%s2 + $0x260] sm:$0xff]
        %v2034 = vld [vmem:[%s2 + $0x268] sm:$0xff]
        %v2035 = vld [vmem:[%s2 + $0x270] sm:$0xff]
        %v2036 = vld [vmem:[%s2 + $0x278] sm:$0xff]
        %v2037 = vld [vmem:[%s2 + $0x280] sm:$0xff]
        %v2038 = vld [vmem:[%s2 + $0x288] sm:$0xff]
        %v2039 = vld [vmem:[%s2 + $0x290] sm:$0xff]
        %v2040 = vld [vmem:[%s2 + $0x298] sm:$0xff]
        %v2041 = vld [vmem:[%s2 + $0x2a0] sm:$0xff]
        %v2042 = vld [vmem:[%s2 + $0x2a8] sm:$0xff]
        %v2043 = vld [vmem:[%s2 + $0x2b0] sm:$0xff]
        %v2044 = vld [vmem:[%s2 + $0x2b8] sm:$0x1f]
        %vm2045 = vcmask 498688
        %v2047 = vsel %vm2045, %v1956, 0
        %vm2049 = vcmask 1044480
        %v2051 = vsel %vm2049, %v2044, 0
        %2053 = vmatprep.subr.mxu0 0.0
        %2054 = vmatpush1.msra.mxu0 %v1972
        %2055 = vmatprep.subr.mxu0 0.0
        %2056 = vmatpush1.msra.mxu0 %v1971
        %2057 = vmatprep.subr.mxu0 0.0
        %2058 = vmatpush1.msra.mxu0 %v1970
        %2059 = vmatprep.subr.mxu0 0.0
        %2060 = vmatpush1.msra.mxu0 %v1969
        %2061 = vmatprep.subr.mxu0 0.0
        %2062 = vmatpush1.msra.mxu0 %v1968
        %2063 = vmatprep.subr.mxu0 0.0
        %2064 = vmatpush1.msra.mxu0 %v1967
        %2065 = vmatprep.subr.mxu0 0.0
        %2066 = vmatpush1.msra.mxu0 %v1966
        %2067 = vmatprep.subr.mxu0 0.0
        %2068 = vmatpush1.msra.mxu0 %v1965
        %2069 = vmatprep.subr.mxu0 0.0
        %2070 = vmatpush1.msra.mxu0 %v1964
        %2071 = vmatprep.subr.mxu0 0.0
        %2072 = vmatpush1.msra.mxu0 %v1963
        %2073 = vmatprep.subr.mxu0 0.0
        %2074 = vmatpush1.msra.mxu0 %v1962
        %2075 = vmatprep.subr.mxu0 0.0
        %2076 = vmatpush1.msra.mxu0 %v1961
        %2077 = vmatprep.subr.mxu0 0.0
        %2078 = vmatpush1.msra.mxu0 %v1960
        %2079 = vmatprep.subr.mxu0 0.0
        %2080 = vmatpush1.msra.mxu0 %v1959
        %2081 = vmatprep.subr.mxu0 0.0
        %2082 = vmatpush1.msra.mxu0 %v1958
        %2083 = vmatprep.subr.mxu0 0.0
        %2084 = vmatpush1.msra.mxu0 %v1957
        %2085 = vmatprep.subr.mxu0 0.0
        %2086 = vmatpush2.msra.mxu0 %v1988
        %2087 = vmatprep.subr.mxu0 0.0
        %2088 = vmatpush2.msra.mxu0 %v1987
        %2089 = vmatprep.subr.mxu0 0.0
        %2090 = vmatpush2.msra.mxu0 %v1986
        %2091 = vmatprep.subr.mxu0 0.0
        %2092 = vmatpush2.msra.mxu0 %v1985
        %2093 = vmatprep.subr.mxu0 0.0
        %2094 = vmatpush2.msra.mxu0 %v1984
        %2095 = vmatprep.subr.mxu0 0.0
        %2096 = vmatpush2.msra.mxu0 %v1983
        %2097 = vmatprep.subr.mxu0 0.0
        %2098 = vmatpush2.msra.mxu0 %v1982
        %2099 = vmatprep.subr.mxu0 0.0
        %2100 = vmatpush2.msra.mxu0 %v1981
        %2101 = vmatprep.subr.mxu0 0.0
        %2102 = vmatpush2.msra.mxu0 %v1980
        %2103 = vmatprep.subr.mxu0 0.0
        %2104 = vmatpush2.msra.mxu0 %v1979
        %2105 = vmatprep.subr.mxu0 0.0
        %2106 = vmatpush2.msra.mxu0 %v1978
        %2107 = vmatprep.subr.mxu0 0.0
        %2108 = vmatpush2.msra.mxu0 %v1977
        %2109 = vmatprep.subr.mxu0 0.0
        %2110 = vmatpush2.msra.mxu0 %v1976
        %2111 = vmatprep.subr.mxu0 0.0
        %2112 = vmatpush2.msra.mxu0 %v1975
        %2113 = vmatprep.subr.mxu0 0.0
        %2114 = vmatpush2.msra.mxu0 %v1974
        %2115 = vmatprep.subr.mxu0 0.0
        %2116 = vmatpush2.msra.mxu0 %v1973
        %2117 = vmatprep.mubr.f32.mxu0 %v1952
        %2118 = vmatmul.mubr.f32.gmra.mxu0 %v1951
        %v2119 = vpop.f32.mrf.mxu0
        %v2120 = vadd.f32 0.0, %v2119
        %v2121 = vpop.f32.mrf.mxu0
        %2122 = vdwg.mxu0
        %2123 = vmatprep.subr.mxu0 0.0
        %2124 = vmatpush1.msra.mxu0 %v2004
        %2125 = vmatprep.subr.mxu0 0.0
        %2126 = vmatpush1.msra.mxu0 %v2003
        %2127 = vmatprep.subr.mxu0 0.0
        %2128 = vmatpush1.msra.mxu0 %v2002
        %2129 = vmatprep.subr.mxu0 0.0
        %2130 = vmatpush1.msra.mxu0 %v2001
        %2131 = vmatprep.subr.mxu0 0.0
        %2132 = vmatpush1.msra.mxu0 %v2000
        %2133 = vmatprep.subr.mxu0 0.0
        %2134 = vmatpush1.msra.mxu0 %v1999
        %2135 = vmatprep.subr.mxu0 0.0
        %2136 = vmatpush1.msra.mxu0 %v1998
        %2137 = vmatprep.subr.mxu0 0.0
        %2138 = vmatpush1.msra.mxu0 %v1997
        %2139 = vmatprep.subr.mxu0 0.0
        %2140 = vmatpush1.msra.mxu0 %v1996
        %2141 = vmatprep.subr.mxu0 0.0
        %2142 = vmatpush1.msra.mxu0 %v1995
        %2143 = vmatprep.subr.mxu0 0.0
        %2144 = vmatpush1.msra.mxu0 %v1994
        %2145 = vmatprep.subr.mxu0 0.0
        %2146 = vmatpush1.msra.mxu0 %v1993
        %2147 = vmatprep.subr.mxu0 0.0
        %2148 = vmatpush1.msra.mxu0 %v1992
        %2149 = vmatprep.subr.mxu0 0.0
        %2150 = vmatpush1.msra.mxu0 %v1991
        %2151 = vmatprep.subr.mxu0 0.0
        %2152 = vmatpush1.msra.mxu0 %v1990
        %2153 = vmatprep.subr.mxu0 0.0
        %2154 = vmatpush1.msra.mxu0 %v1989
        %2155 = vmatprep.subr.mxu0 0.0
        %2156 = vmatpush2.msra.mxu0 %v2020
        %2157 = vmatprep.subr.mxu0 0.0
        %2158 = vmatpush2.msra.mxu0 %v2019
        %2159 = vmatprep.subr.mxu0 0.0
        %2160 = vmatpush2.msra.mxu0 %v2018
        %2161 = vmatprep.subr.mxu0 0.0
        %2162 = vmatpush2.msra.mxu0 %v2017
        %2163 = vmatprep.subr.mxu0 0.0
        %2164 = vmatpush2.msra.mxu0 %v2016
        %2165 = vmatprep.subr.mxu0 0.0
        %2166 = vmatpush2.msra.mxu0 %v2015
        %2167 = vmatprep.subr.mxu0 0.0
        %2168 = vmatpush2.msra.mxu0 %v2014
        %2169 = vmatprep.subr.mxu0 0.0
        %2170 = vmatpush2.msra.mxu0 %v2013
        %2171 = vmatprep.subr.mxu0 0.0
        %2172 = vmatpush2.msra.mxu0 %v2012
        %2173 = vmatprep.subr.mxu0 0.0
        %2174 = vmatpush2.msra.mxu0 %v2011
        %2175 = vmatprep.subr.mxu0 0.0
        %2176 = vmatpush2.msra.mxu0 %v2010
        %2177 = vmatprep.subr.mxu0 0.0
        %2178 = vmatpush2.msra.mxu0 %v2009
        %2179 = vmatprep.subr.mxu0 0.0
        %2180 = vmatpush2.msra.mxu0 %v2008
        %2181 = vmatprep.subr.mxu0 0.0
        %2182 = vmatpush2.msra.mxu0 %v2007
        %2183 = vmatprep.subr.mxu0 0.0
        %2184 = vmatpush2.msra.mxu0 %v2006
        %2185 = vmatprep.subr.mxu0 0.0
        %2186 = vmatpush2.msra.mxu0 %v2005
        %2187 = vmatprep.mubr.f32.mxu0 %v1954
        %2188 = vmatmul.mubr.f32.gmra.mxu0 %v1953
        %v2189 = vpop.f32.mrf.mxu0
        %v2190 = vadd.f32 %v2120, %v2189
        %v2191 = vpop.f32.mrf.mxu0
        %2192 = vdwg.mxu0
        %2193 = vmatprep.subr.mxu0 0.0
        %2194 = vmatpush1.msra.mxu0 %v2036
        %2195 = vmatprep.subr.mxu0 0.0
        %2196 = vmatpush1.msra.mxu0 %v2035
        %2197 = vmatprep.subr.mxu0 0.0
        %2198 = vmatpush1.msra.mxu0 %v2034
        %2199 = vmatprep.subr.mxu0 0.0
        %2200 = vmatpush1.msra.mxu0 %v2033
        %2201 = vmatprep.subr.mxu0 0.0
        %2202 = vmatpush1.msra.mxu0 %v2032
        %2203 = vmatprep.subr.mxu0 0.0
        %2204 = vmatpush1.msra.mxu0 %v2031
        %2205 = vmatprep.subr.mxu0 0.0
        %2206 = vmatpush1.msra.mxu0 %v2030
        %2207 = vmatprep.subr.mxu0 0.0
        %2208 = vmatpush1.msra.mxu0 %v2029
        %2209 = vmatprep.subr.mxu0 0.0
        %2210 = vmatpush1.msra.mxu0 %v2028
        %2211 = vmatprep.subr.mxu0 0.0
        %2212 = vmatpush1.msra.mxu0 %v2027
        %2213 = vmatprep.subr.mxu0 0.0
        %2214 = vmatpush1.msra.mxu0 %v2026
        %2215 = vmatprep.subr.mxu0 0.0
        %2216 = vmatpush1.msra.mxu0 %v2025
        %2217 = vmatprep.subr.mxu0 0.0
        %2218 = vmatpush1.msra.mxu0 %v2024
        %2219 = vmatprep.subr.mxu0 0.0
        %2220 = vmatpush1.msra.mxu0 %v2023
        %2221 = vmatprep.subr.mxu0 0.0
        %2222 = vmatpush1.msra.mxu0 %v2022
        %2223 = vmatprep.subr.mxu0 0.0
        %2224 = vmatpush1.msra.mxu0 %v2021
        %2225 = vmatprep.subr.mxu0 0.0
        %2226 = vmatpush2.msra.mxu0 0.0
        %2227 = vmatprep.subr.mxu0 0.0
        %2228 = vmatpush2.msra.mxu0 0.0
        %2229 = vmatprep.subr.mxu0 0.0
        %2230 = vmatpush2.msra.mxu0 0.0
        %2231 = vmatprep.subr.mxu0 0.0
        %2232 = vmatpush2.msra.mxu0 0.0
        %2233 = vmatprep.subr.mxu0 0.0
        %2234 = vmatpush2.msra.mxu0 0.0
        %2235 = vmatprep.subr.mxu0 0.0
        %2236 = vmatpush2.msra.mxu0 0.0
        %2237 = vmatprep.subr.mxu0 0.0
        %2238 = vmatpush2.msra.mxu0 0.0
        %2239 = vmatprep.subr.mxu0 0.0
        %2240 = vmatpush2.msra.mxu0 0.0
        %2241 = vmatprep.subr.mxu0 0.0
        %2242 = vmatpush2.msra.mxu0 %v2051
        %2243 = vmatprep.subr.mxu0 0.0
        %2244 = vmatpush2.msra.mxu0 %v2043
        %2245 = vmatprep.subr.mxu0 0.0
        %2246 = vmatpush2.msra.mxu0 %v2042
        %2247 = vmatprep.subr.mxu0 0.0
        %2248 = vmatpush2.msra.mxu0 %v2041
        %2249 = vmatprep.subr.mxu0 0.0
        %2250 = vmatpush2.msra.mxu0 %v2040
        %2251 = vmatprep.subr.mxu0 0.0
        %2252 = vmatpush2.msra.mxu0 %v2039
        %2253 = vmatprep.subr.mxu0 0.0
        %2254 = vmatpush2.msra.mxu0 %v2038
        %2255 = vmatprep.subr.mxu0 0.0
        %2256 = vmatpush2.msra.mxu0 %v2037
        %2257 = vmatprep.mubr.f32.mxu0 %v2047
        %2258 = vmatmul.mubr.f32.gmra.mxu0 %v1955
        %v2259 = vpop.f32.mrf.mxu0
        %v2260 = vadd.f32 %v2190, %v2259
        %v2261 = vpop.f32.mrf.mxu0
        %2262 = vdwg.mxu0
        %v2263 = vstv %s321
        %v2264 = vmul.f32 %v2263, %v764
        %v2265 = vstv %s322
        %v2266 = vmul.f32 %v2265, %v2260
        %v2267 = vadd.f32 %v2264, %v2266
        %v2268 = vld [vmem:[%s3] sm:$0xff]
        %v2269 = vld [vmem:[%s3 + $0x8] sm:$0xff]
        %v2270 = vld [vmem:[%s3 + $0x10] sm:$0xff]
        %v2271 = vld [vmem:[%s3 + $0x18] sm:$0xff]
        %v2272 = vld [vmem:[%s3 + $0x20] sm:$0xff]
        %v2273 = vld [vmem:[%s3 + $0x28] sm:$0xff]
        %v2274 = vld [vmem:[%s3 + $0x30] sm:$0xff]
        %v2275 = vld [vmem:[%s3 + $0x38] sm:$0xff]
        %v2276 = vld [vmem:[%s3 + $0x40] sm:$0xff]
        %v2277 = vld [vmem:[%s3 + $0x48] sm:$0xff]
        %v2278 = vld [vmem:[%s3 + $0x50] sm:$0xff]
        %v2279 = vld [vmem:[%s3 + $0x58] sm:$0xff]
        %v2280 = vld [vmem:[%s3 + $0x60] sm:$0xff]
        %v2281 = vld [vmem:[%s3 + $0x68] sm:$0xff]
        %v2282 = vld [vmem:[%s3 + $0x70] sm:$0xff]
        %v2283 = vld [vmem:[%s3 + $0x78] sm:$0xff]
        %v2284 = vld [vmem:[%s3 + $0x80] sm:$0xff]
        %v2285 = vld [vmem:[%s3 + $0x88] sm:$0xff]
        %v2286 = vld [vmem:[%s3 + $0x90] sm:$0xff]
        %v2287 = vld [vmem:[%s3 + $0x98] sm:$0xff]
        %v2288 = vld [vmem:[%s3 + $0xa0] sm:$0xff]
        %v2289 = vld [vmem:[%s3 + $0xa8] sm:$0xff]
        %v2290 = vld [vmem:[%s3 + $0xb0] sm:$0xff]
        %v2291 = vld [vmem:[%s3 + $0xb8] sm:$0xff]
        %v2292 = vld [vmem:[%s3 + $0xc0] sm:$0xff]
        %v2293 = vld [vmem:[%s3 + $0xc8] sm:$0xff]
        %v2294 = vld [vmem:[%s3 + $0xd0] sm:$0xff]
        %v2295 = vld [vmem:[%s3 + $0xd8] sm:$0xff]
        %v2296 = vld [vmem:[%s3 + $0xe0] sm:$0xff]
        %v2297 = vld [vmem:[%s3 + $0xe8] sm:$0xff]
        %v2298 = vld [vmem:[%s3 + $0xf0] sm:$0xff]
        %v2299 = vld [vmem:[%s3 + $0xf8] sm:$0xff]
        %v2300 = vld [vmem:[%s3 + $0x100] sm:$0xff]
        %v2301 = vld [vmem:[%s3 + $0x108] sm:$0xff]
        %v2302 = vld [vmem:[%s3 + $0x110] sm:$0xff]
        %v2303 = vld [vmem:[%s3 + $0x118] sm:$0xff]
        %v2304 = vld [vmem:[%s3 + $0x120] sm:$0xff]
        %v2305 = vld [vmem:[%s3 + $0x128] sm:$0xff]
        %v2306 = vld [vmem:[%s3 + $0x130] sm:$0xff]
        %v2307 = vld [vmem:[%s3 + $0x138] sm:$0xff]
        %v2308 = vld [vmem:[%s3 + $0x140] sm:$0xff]
        %v2309 = vld [vmem:[%s3 + $0x148] sm:$0xff]
        %v2310 = vld [vmem:[%s3 + $0x150] sm:$0xff]
        %v2311 = vld [vmem:[%s3 + $0x158] sm:$0xff]
        %v2312 = vld [vmem:[%s3 + $0x160] sm:$0xff]
        %v2313 = vld [vmem:[%s3 + $0x168] sm:$0xff]
        %v2314 = vld [vmem:[%s3 + $0x170] sm:$0xff]
        %v2315 = vld [vmem:[%s3 + $0x178] sm:$0xff]
        %v2316 = vld [vmem:[%s3 + $0x180] sm:$0xff]
        %v2317 = vld [vmem:[%s3 + $0x188] sm:$0xff]
        %v2318 = vld [vmem:[%s3 + $0x190] sm:$0xff]
        %v2319 = vld [vmem:[%s3 + $0x198] sm:$0xff]
        %v2320 = vld [vmem:[%s3 + $0x1a0] sm:$0xff]
        %v2321 = vld [vmem:[%s3 + $0x1a8] sm:$0xff]
        %v2322 = vld [vmem:[%s3 + $0x1b0] sm:$0xff]
        %v2323 = vld [vmem:[%s3 + $0x1b8] sm:$0xff]
        %v2324 = vld [vmem:[%s3 + $0x1c0] sm:$0xff]
        %v2325 = vld [vmem:[%s3 + $0x1c8] sm:$0xff]
        %v2326 = vld [vmem:[%s3 + $0x1d0] sm:$0xff]
        %v2327 = vld [vmem:[%s3 + $0x1d8] sm:$0xff]
        %v2328 = vld [vmem:[%s3 + $0x1e0] sm:$0x1]
        %v2329 = vld [vmem:[%s3 + $0x1e8] sm:$0x1]
        %v2330 = vld [vmem:[%s3 + $0x1f0] sm:$0x1]
        %v2331 = vld [vmem:[%s3 + $0x1f8] sm:$0x1]
        %v2332 = vld [vmem:[%s3 + $0x200] sm:$0x1]
        %v2333 = vld [vmem:[%s3 + $0x208] sm:$0x1]
        %vm2334 = vcmask 662528
        %v2336 = vsel %vm2334, %v2267, 0
        %v2339 = vsel %vm550, %v2328, 0
        %v2342 = vsel %vm550, %v2329, 0
        %v2345 = vsel %vm550, %v2330, 0
        %v2348 = vsel %vm550, %v2331, 0
        %v2351 = vsel %vm550, %v2332, 0
        %v2354 = vsel %vm550, %v2333, 0
        %2356 = vmatprep.subr.mxu0 0.0
        %2357 = vmatpush1.msra.mxu0 0.0
        %2358 = vmatprep.subr.mxu0 0.0
        %2359 = vmatpush1.msra.mxu0 0.0
        %2360 = vmatprep.subr.mxu0 0.0
        %2361 = vmatpush1.msra.mxu0 0.0
        %2362 = vmatprep.subr.mxu0 0.0
        %2363 = vmatpush1.msra.mxu0 0.0
        %2364 = vmatprep.subr.mxu0 0.0
        %2365 = vmatpush1.msra.mxu0 0.0
        %2366 = vmatprep.subr.mxu0 %v2342
        %2367 = vmatpush1.msra.mxu0 %v2339
        %2368 = vmatprep.subr.mxu0 %v2323
        %2369 = vmatpush1.msra.mxu0 %v2322
        %2370 = vmatprep.subr.mxu0 %v2317
        %2371 = vmatpush1.msra.mxu0 %v2316
        %2372 = vmatprep.subr.mxu0 %v2311
        %2373 = vmatpush1.msra.mxu0 %v2310
        %2374 = vmatprep.subr.mxu0 %v2305
        %2375 = vmatpush1.msra.mxu0 %v2304
        %2376 = vmatprep.subr.mxu0 %v2299
        %2377 = vmatpush1.msra.mxu0 %v2298
        %2378 = vmatprep.subr.mxu0 %v2293
        %2379 = vmatpush1.msra.mxu0 %v2292
        %2380 = vmatprep.subr.mxu0 %v2287
        %2381 = vmatpush1.msra.mxu0 %v2286
        %2382 = vmatprep.subr.mxu0 %v2281
        %2383 = vmatpush1.msra.mxu0 %v2280
        %2384 = vmatprep.subr.mxu0 %v2275
        %2385 = vmatpush1.msra.mxu0 %v2274
        %2386 = vmatprep.subr.mxu0 %v2269
        %2387 = vmatpush1.msra.mxu0 %v2268
        %2388 = vmatprep.subr.mxu0 0.0
        %2389 = vmatpush2.msra.mxu0 0.0
        %2390 = vmatprep.subr.mxu0 0.0
        %2391 = vmatpush2.msra.mxu0 0.0
        %2392 = vmatprep.subr.mxu0 0.0
        %2393 = vmatpush2.msra.mxu0 0.0
        %2394 = vmatprep.subr.mxu0 0.0
        %2395 = vmatpush2.msra.mxu0 0.0
        %2396 = vmatprep.subr.mxu0 0.0
        %2397 = vmatpush2.msra.mxu0 0.0
        %2398 = vmatprep.subr.mxu0 0.0
        %2399 = vmatpush2.msra.mxu0 0.0
        %2400 = vmatprep.subr.mxu0 0.0
        %2401 = vmatpush2.msra.mxu0 0.0
        %2402 = vmatprep.subr.mxu0 0.0
        %2403 = vmatpush2.msra.mxu0 0.0
        %2404 = vmatprep.subr.mxu0 0.0
        %2405 = vmatpush2.msra.mxu0 0.0
        %2406 = vmatprep.subr.mxu0 0.0
        %2407 = vmatpush2.msra.mxu0 0.0
        %2408 = vmatprep.subr.mxu0 0.0
        %2409 = vmatpush2.msra.mxu0 0.0
        %2410 = vmatprep.subr.mxu0 0.0
        %2411 = vmatpush2.msra.mxu0 0.0
        %2412 = vmatprep.subr.mxu0 0.0
        %2413 = vmatpush2.msra.mxu0 0.0
        %2414 = vmatprep.subr.mxu0 0.0
        %2415 = vmatpush2.msra.mxu0 0.0
        %2416 = vmatprep.subr.mxu0 0.0
        %2417 = vmatpush2.msra.mxu0 0.0
        %2418 = vmatprep.subr.mxu0 0.0
        %2419 = vmatpush2.msra.mxu0 0.0
        %2420 = vmatprep.mubr.f32.mxu0 0.0
        %2421 = vmatmul.mubr.f32.gmra.mxu0 %v2336
        %v2422 = vpop.f32.mrf.mxu0
        %v2423 = vadd.f32 0.0, %v2422
        %v2424 = vpop.f32.mrf.mxu0
        %v2425 = vadd.f32 0.0, %v2424
        %2426 = vdwg.mxu0
        %2427 = vmatprep.subr.mxu0 0.0
        %2428 = vmatpush1.msra.mxu0 0.0
        %2429 = vmatprep.subr.mxu0 0.0
        %2430 = vmatpush1.msra.mxu0 0.0
        %2431 = vmatprep.subr.mxu0 0.0
        %2432 = vmatpush1.msra.mxu0 0.0
        %2433 = vmatprep.subr.mxu0 0.0
        %2434 = vmatpush1.msra.mxu0 0.0
        %2435 = vmatprep.subr.mxu0 0.0
        %2436 = vmatpush1.msra.mxu0 0.0
        %2437 = vmatprep.subr.mxu0 %v2348
        %2438 = vmatpush1.msra.mxu0 %v2345
        %2439 = vmatprep.subr.mxu0 %v2325
        %2440 = vmatpush1.msra.mxu0 %v2324
        %2441 = vmatprep.subr.mxu0 %v2319
        %2442 = vmatpush1.msra.mxu0 %v2318
        %2443 = vmatprep.subr.mxu0 %v2313
        %2444 = vmatpush1.msra.mxu0 %v2312
        %2445 = vmatprep.subr.mxu0 %v2307
        %2446 = vmatpush1.msra.mxu0 %v2306
        %2447 = vmatprep.subr.mxu0 %v2301
        %2448 = vmatpush1.msra.mxu0 %v2300
        %2449 = vmatprep.subr.mxu0 %v2295
        %2450 = vmatpush1.msra.mxu0 %v2294
        %2451 = vmatprep.subr.mxu0 %v2289
        %2452 = vmatpush1.msra.mxu0 %v2288
        %2453 = vmatprep.subr.mxu0 %v2283
        %2454 = vmatpush1.msra.mxu0 %v2282
        %2455 = vmatprep.subr.mxu0 %v2277
        %2456 = vmatpush1.msra.mxu0 %v2276
        %2457 = vmatprep.subr.mxu0 %v2271
        %2458 = vmatpush1.msra.mxu0 %v2270
        %2459 = vmatprep.subr.mxu0 0.0
        %2460 = vmatpush2.msra.mxu0 0.0
        %2461 = vmatprep.subr.mxu0 0.0
        %2462 = vmatpush2.msra.mxu0 0.0
        %2463 = vmatprep.subr.mxu0 0.0
        %2464 = vmatpush2.msra.mxu0 0.0
        %2465 = vmatprep.subr.mxu0 0.0
        %2466 = vmatpush2.msra.mxu0 0.0
        %2467 = vmatprep.subr.mxu0 0.0
        %2468 = vmatpush2.msra.mxu0 0.0
        %2469 = vmatprep.subr.mxu0 0.0
        %2470 = vmatpush2.msra.mxu0 0.0
        %2471 = vmatprep.subr.mxu0 0.0
        %2472 = vmatpush2.msra.mxu0 0.0
        %2473 = vmatprep.subr.mxu0 0.0
        %2474 = vmatpush2.msra.mxu0 0.0
        %2475 = vmatprep.subr.mxu0 0.0
        %2476 = vmatpush2.msra.mxu0 0.0
        %2477 = vmatprep.subr.mxu0 0.0
        %2478 = vmatpush2.msra.mxu0 0.0
        %2479 = vmatprep.subr.mxu0 0.0
        %2480 = vmatpush2.msra.mxu0 0.0
        %2481 = vmatprep.subr.mxu0 0.0
        %2482 = vmatpush2.msra.mxu0 0.0
        %2483 = vmatprep.subr.mxu0 0.0
        %2484 = vmatpush2.msra.mxu0 0.0
        %2485 = vmatprep.subr.mxu0 0.0
        %2486 = vmatpush2.msra.mxu0 0.0
        %2487 = vmatprep.subr.mxu0 0.0
        %2488 = vmatpush2.msra.mxu0 0.0
        %2489 = vmatprep.subr.mxu0 0.0
        %2490 = vmatpush2.msra.mxu0 0.0
        %2491 = vmatprep.mubr.f32.mxu0 0.0
        %2492 = vmatmul.mubr.f32.gmra.mxu0 %v2336
        %v2493 = vpop.f32.mrf.mxu0
        %v2494 = vadd.f32 0.0, %v2493
        %v2495 = vpop.f32.mrf.mxu0
        %v2496 = vadd.f32 0.0, %v2495
        %2497 = vdwg.mxu0
        %2498 = vmatprep.subr.mxu0 0.0
        %2499 = vmatpush1.msra.mxu0 0.0
        %2500 = vmatprep.subr.mxu0 0.0
        %2501 = vmatpush1.msra.mxu0 0.0
        %2502 = vmatprep.subr.mxu0 0.0
        %2503 = vmatpush1.msra.mxu0 0.0
        %2504 = vmatprep.subr.mxu0 0.0
        %2505 = vmatpush1.msra.mxu0 0.0
        %2506 = vmatprep.subr.mxu0 0.0
        %2507 = vmatpush1.msra.mxu0 0.0
        %2508 = vmatprep.subr.mxu0 %v2354
        %2509 = vmatpush1.msra.mxu0 %v2351
        %2510 = vmatprep.subr.mxu0 %v2327
        %2511 = vmatpush1.msra.mxu0 %v2326
        %2512 = vmatprep.subr.mxu0 %v2321
        %2513 = vmatpush1.msra.mxu0 %v2320
        %2514 = vmatprep.subr.mxu0 %v2315
        %2515 = vmatpush1.msra.mxu0 %v2314
        %2516 = vmatprep.subr.mxu0 %v2309
        %2517 = vmatpush1.msra.mxu0 %v2308
        %2518 = vmatprep.subr.mxu0 %v2303
        %2519 = vmatpush1.msra.mxu0 %v2302
        %2520 = vmatprep.subr.mxu0 %v2297
        %2521 = vmatpush1.msra.mxu0 %v2296
        %2522 = vmatprep.subr.mxu0 %v2291
        %2523 = vmatpush1.msra.mxu0 %v2290
        %2524 = vmatprep.subr.mxu0 %v2285
        %2525 = vmatpush1.msra.mxu0 %v2284
        %2526 = vmatprep.subr.mxu0 %v2279
        %2527 = vmatpush1.msra.mxu0 %v2278
        %2528 = vmatprep.subr.mxu0 %v2273
        %2529 = vmatpush1.msra.mxu0 %v2272
        %2530 = vmatprep.subr.mxu0 0.0
        %2531 = vmatpush2.msra.mxu0 0.0
        %2532 = vmatprep.subr.mxu0 0.0
        %2533 = vmatpush2.msra.mxu0 0.0
        %2534 = vmatprep.subr.mxu0 0.0
        %2535 = vmatpush2.msra.mxu0 0.0
        %2536 = vmatprep.subr.mxu0 0.0
        %2537 = vmatpush2.msra.mxu0 0.0
        %2538 = vmatprep.subr.mxu0 0.0
        %2539 = vmatpush2.msra.mxu0 0.0
        %2540 = vmatprep.subr.mxu0 0.0
        %2541 = vmatpush2.msra.mxu0 0.0
        %2542 = vmatprep.subr.mxu0 0.0
        %2543 = vmatpush2.msra.mxu0 0.0
        %2544 = vmatprep.subr.mxu0 0.0
        %2545 = vmatpush2.msra.mxu0 0.0
        %2546 = vmatprep.subr.mxu0 0.0
        %2547 = vmatpush2.msra.mxu0 0.0
        %2548 = vmatprep.subr.mxu0 0.0
        %2549 = vmatpush2.msra.mxu0 0.0
        %2550 = vmatprep.subr.mxu0 0.0
        %2551 = vmatpush2.msra.mxu0 0.0
        %2552 = vmatprep.subr.mxu0 0.0
        %2553 = vmatpush2.msra.mxu0 0.0
        %2554 = vmatprep.subr.mxu0 0.0
        %2555 = vmatpush2.msra.mxu0 0.0
        %2556 = vmatprep.subr.mxu0 0.0
        %2557 = vmatpush2.msra.mxu0 0.0
        %2558 = vmatprep.subr.mxu0 0.0
        %2559 = vmatpush2.msra.mxu0 0.0
        %2560 = vmatprep.subr.mxu0 0.0
        %2561 = vmatpush2.msra.mxu0 0.0
        %2562 = vmatprep.mubr.f32.mxu0 0.0
        %2563 = vmatmul.mubr.f32.gmra.mxu0 %v2336
        %v2564 = vpop.f32.mrf.mxu0
        %v2565 = vadd.f32 0.0, %v2564
        %v2566 = vpop.f32.mrf.mxu0
        %v2567 = vadd.f32 0.0, %v2566
        %2568 = vdwg.mxu0
        %v2569 = vld [vmem:[%s5] sm:$0xff]
        %v2570 = vld [vmem:[%s5 + $0x8] sm:$0xff]
        %v2571 = vld [vmem:[%s5 + $0x10] sm:$0xff]
        %v2572 = vld [vmem:[%s5 + $0x18] sm:$0xff]
        %2574 = vset.pattern.permute.xlu0 0
        %2575 = vperm.xlu0 %2574, %v2569
        %v2576 = vpop.permute.xlu0 %2575
        %2579 = vset.pattern.permute.xlu0 0
        %2580 = vperm.xlu0 %2579, %v2570
        %v2581 = vpop.permute.xlu0 %2580
        %2584 = vset.pattern.permute.xlu0 0
        %2585 = vperm.xlu0 %2584, %v2571
        %v2586 = vpop.permute.xlu0 %2585
        %2589 = vset.pattern.permute.xlu0 0
        %2590 = vperm.xlu0 %2589, %v2572
        %v2591 = vpop.permute.xlu0 %2590
        %v2593 = vlaneseq
        %v2594 = vshrl.u32 %v2593, 7
        %v2595 = vsub.s32 0, %v2594
        %v2596 = vrot.slane %v2423, %v2595
        %v2597 = vlaneseq
        %v2598 = vshrl.u32 %v2597, 7
        %v2599 = vsub.s32 0, %v2598
        %v2600 = vrot.slane %v2425, %v2599
        %v2601 = vlaneseq
        %v2602 = vshrl.u32 %v2601, 7
        %v2603 = vsub.s32 0, %v2602
        %v2604 = vrot.slane %v2494, %v2603
        %v2605 = vlaneseq
        %v2606 = vshrl.u32 %v2605, 7
        %v2607 = vsub.s32 0, %v2606
        %v2608 = vrot.slane %v2496, %v2607
        %v2609 = vlaneseq
        %v2610 = vshrl.u32 %v2609, 7
        %v2611 = vsub.s32 0, %v2610
        %v2612 = vrot.slane %v2565, %v2611
        %v2613 = vlaneseq
        %v2614 = vshrl.u32 %v2613, 7
        %v2615 = vsub.s32 0, %v2614
        %v2616 = vrot.slane %v2567, %v2615
        %v2617 = vmul.f32 %v2576, %v2596
        %v2618 = vmul.f32 %v2576, %v2600
        %v2619 = vmul.f32 %v2576, %v2604
        %v2620 = vmul.f32 %v2576, %v2608
        %v2621 = vmul.f32 %v2576, %v2612
        %v2622 = vmul.f32 %v2576, %v2616
        %v2623 = vmul.f32 %v2581, %v2596
        %v2624 = vmul.f32 %v2581, %v2600
        %v2625 = vmul.f32 %v2581, %v2604
        %v2626 = vmul.f32 %v2581, %v2608
        %v2627 = vmul.f32 %v2581, %v2612
        %v2628 = vmul.f32 %v2581, %v2616
        %v2629 = vmul.f32 %v2586, %v2596
        %v2630 = vmul.f32 %v2586, %v2600
        %v2631 = vmul.f32 %v2586, %v2604
        %v2632 = vmul.f32 %v2586, %v2608
        %v2633 = vmul.f32 %v2586, %v2612
        %v2634 = vmul.f32 %v2586, %v2616
        %v2635 = vmul.f32 %v2591, %v2596
        %v2636 = vmul.f32 %v2591, %v2600
        %v2637 = vmul.f32 %v2591, %v2604
        %v2638 = vmul.f32 %v2591, %v2608
        %v2639 = vmul.f32 %v2591, %v2612
        %v2640 = vmul.f32 %v2591, %v2616
        %v2641 = vld [vmem:[%s6] sm:$0xff]
        %v2642 = vld [vmem:[%s6 + $0x8] sm:$0xff]
        %v2643 = vld [vmem:[%s6 + $0x10] sm:$0xff]
        %v2644 = vld [vmem:[%s6 + $0x18] sm:$0xff]
        %2646 = vset.pattern.permute.xlu0 0
        %2647 = vperm.xlu0 %2646, %v2641
        %v2648 = vpop.permute.xlu0 %2647
        %2651 = vset.pattern.permute.xlu0 0
        %2652 = vperm.xlu0 %2651, %v2642
        %v2653 = vpop.permute.xlu0 %2652
        %2656 = vset.pattern.permute.xlu0 0
        %2657 = vperm.xlu0 %2656, %v2643
        %v2658 = vpop.permute.xlu0 %2657
        %2661 = vset.pattern.permute.xlu0 0
        %2662 = vperm.xlu0 %2661, %v2644
        %v2663 = vpop.permute.xlu0 %2662
        %v2665 = vadd.f32 %v2617, %v2648
        %v2666 = vadd.f32 %v2618, %v2648
        %v2667 = vadd.f32 %v2619, %v2648
        %v2668 = vadd.f32 %v2620, %v2648
        %v2669 = vadd.f32 %v2621, %v2648
        %v2670 = vadd.f32 %v2622, %v2648
        %v2671 = vadd.f32 %v2623, %v2653
        %v2672 = vadd.f32 %v2624, %v2653
        %v2673 = vadd.f32 %v2625, %v2653
        %v2674 = vadd.f32 %v2626, %v2653
        %v2675 = vadd.f32 %v2627, %v2653
        %v2676 = vadd.f32 %v2628, %v2653
        %v2677 = vadd.f32 %v2629, %v2658
        %v2678 = vadd.f32 %v2630, %v2658
        %v2679 = vadd.f32 %v2631, %v2658
        %v2680 = vadd.f32 %v2632, %v2658
        %v2681 = vadd.f32 %v2633, %v2658
        %v2682 = vadd.f32 %v2634, %v2658
        %v2683 = vadd.f32 %v2635, %v2663
        %v2684 = vadd.f32 %v2636, %v2663
        %v2685 = vadd.f32 %v2637, %v2663
        %v2686 = vadd.f32 %v2638, %v2663
        %v2687 = vadd.f32 %v2639, %v2663
        %v2688 = vadd.f32 %v2640, %v2663
        %v2689 = vxor.u32 %v2665, 2147483648
        %v2690 = vxor.u32 %v2666, 2147483648
        %v2691 = vxor.u32 %v2667, 2147483648
        %v2692 = vxor.u32 %v2668, 2147483648
        %v2693 = vxor.u32 %v2669, 2147483648
        %v2694 = vxor.u32 %v2670, 2147483648
        %v2695 = vxor.u32 %v2671, 2147483648
        %v2696 = vxor.u32 %v2672, 2147483648
        %v2697 = vxor.u32 %v2673, 2147483648
        %v2698 = vxor.u32 %v2674, 2147483648
        %v2699 = vxor.u32 %v2675, 2147483648
        %v2700 = vxor.u32 %v2676, 2147483648
        %v2701 = vxor.u32 %v2677, 2147483648
        %v2702 = vxor.u32 %v2678, 2147483648
        %v2703 = vxor.u32 %v2679, 2147483648
        %v2704 = vxor.u32 %v2680, 2147483648
        %v2705 = vxor.u32 %v2681, 2147483648
        %v2706 = vxor.u32 %v2682, 2147483648
        %v2707 = vxor.u32 %v2683, 2147483648
        %v2708 = vxor.u32 %v2684, 2147483648
        %v2709 = vxor.u32 %v2685, 2147483648
        %v2710 = vxor.u32 %v2686, 2147483648
        %v2711 = vxor.u32 %v2687, 2147483648
        %v2712 = vxor.u32 %v2688, 2147483648
        %v2713 = vmul.f32 %v2689, 1.442695
        %v2714 = vpow.pop %v2713
        %v2715 = vmul.f32 %v2690, 1.442695
        %v2716 = vpow.pop %v2715
        %v2717 = vmul.f32 %v2691, 1.442695
        %v2718 = vpow.pop %v2717
        %v2719 = vmul.f32 %v2692, 1.442695
        %v2720 = vpow.pop %v2719
        %v2721 = vmul.f32 %v2693, 1.442695
        %v2722 = vpow.pop %v2721
        %v2723 = vmul.f32 %v2694, 1.442695
        %v2724 = vpow.pop %v2723
        %v2725 = vmul.f32 %v2695, 1.442695
        %v2726 = vpow.pop %v2725
        %v2727 = vmul.f32 %v2696, 1.442695
        %v2728 = vpow.pop %v2727
        %v2729 = vmul.f32 %v2697, 1.442695
        %v2730 = vpow.pop %v2729
        %v2731 = vmul.f32 %v2698, 1.442695
        %v2732 = vpow.pop %v2731
        %v2733 = vmul.f32 %v2699, 1.442695
        %v2734 = vpow.pop %v2733
        %v2735 = vmul.f32 %v2700, 1.442695
        %v2736 = vpow.pop %v2735
        %v2737 = vmul.f32 %v2701, 1.442695
        %v2738 = vpow.pop %v2737
        %v2739 = vmul.f32 %v2702, 1.442695
        %v2740 = vpow.pop %v2739
        %v2741 = vmul.f32 %v2703, 1.442695
        %v2742 = vpow.pop %v2741
        %v2743 = vmul.f32 %v2704, 1.442695
        %v2744 = vpow.pop %v2743
        %v2745 = vmul.f32 %v2705, 1.442695
        %v2746 = vpow.pop %v2745
        %v2747 = vmul.f32 %v2706, 1.442695
        %v2748 = vpow.pop %v2747
        %v2749 = vmul.f32 %v2707, 1.442695
        %v2750 = vpow.pop %v2749
        %v2751 = vmul.f32 %v2708, 1.442695
        %v2752 = vpow.pop %v2751
        %v2753 = vmul.f32 %v2709, 1.442695
        %v2754 = vpow.pop %v2753
        %v2755 = vmul.f32 %v2710, 1.442695
        %v2756 = vpow.pop %v2755
        %v2757 = vmul.f32 %v2711, 1.442695
        %v2758 = vpow.pop %v2757
        %v2759 = vmul.f32 %v2712, 1.442695
        %v2760 = vpow.pop %v2759
        %v2761 = vadd.f32 %v2714, 1.0
        %v2762 = vadd.f32 %v2716, 1.0
        %v2763 = vadd.f32 %v2718, 1.0
        %v2764 = vadd.f32 %v2720, 1.0
        %v2765 = vadd.f32 %v2722, 1.0
        %v2766 = vadd.f32 %v2724, 1.0
        %v2767 = vadd.f32 %v2726, 1.0
        %v2768 = vadd.f32 %v2728, 1.0
        %v2769 = vadd.f32 %v2730, 1.0
        %v2770 = vadd.f32 %v2732, 1.0
        %v2771 = vadd.f32 %v2734, 1.0
        %v2772 = vadd.f32 %v2736, 1.0
        %v2773 = vadd.f32 %v2738, 1.0
        %v2774 = vadd.f32 %v2740, 1.0
        %v2775 = vadd.f32 %v2742, 1.0
        %v2776 = vadd.f32 %v2744, 1.0
        %v2777 = vadd.f32 %v2746, 1.0
        %v2778 = vadd.f32 %v2748, 1.0
        %v2779 = vadd.f32 %v2750, 1.0
        %v2780 = vadd.f32 %v2752, 1.0
        %v2781 = vadd.f32 %v2754, 1.0
        %v2782 = vadd.f32 %v2756, 1.0
        %v2783 = vadd.f32 %v2758, 1.0
        %v2784 = vadd.f32 %v2760, 1.0
        %v2785 = vrcp.pop %v2761
        %v2786 = vmul.f32 1.0, %v2785
        %v2787 = vrcp.pop %v2762
        %v2788 = vmul.f32 1.0, %v2787
        %v2789 = vrcp.pop %v2763
        %v2790 = vmul.f32 1.0, %v2789
        %v2791 = vrcp.pop %v2764
        %v2792 = vmul.f32 1.0, %v2791
        %v2793 = vrcp.pop %v2765
        %v2794 = vmul.f32 1.0, %v2793
        %v2795 = vrcp.pop %v2766
        %v2796 = vmul.f32 1.0, %v2795
        %v2797 = vrcp.pop %v2767
        %v2798 = vmul.f32 1.0, %v2797
        %v2799 = vrcp.pop %v2768
        %v2800 = vmul.f32 1.0, %v2799
        %v2801 = vrcp.pop %v2769
        %v2802 = vmul.f32 1.0, %v2801
        %v2803 = vrcp.pop %v2770
        %v2804 = vmul.f32 1.0, %v2803
        %v2805 = vrcp.pop %v2771
        %v2806 = vmul.f32 1.0, %v2805
        %v2807 = vrcp.pop %v2772
        %v2808 = vmul.f32 1.0, %v2807
        %v2809 = vrcp.pop %v2773
        %v2810 = vmul.f32 1.0, %v2809
        %v2811 = vrcp.pop %v2774
        %v2812 = vmul.f32 1.0, %v2811
        %v2813 = vrcp.pop %v2775
        %v2814 = vmul.f32 1.0, %v2813
        %v2815 = vrcp.pop %v2776
        %v2816 = vmul.f32 1.0, %v2815
        %v2817 = vrcp.pop %v2777
        %v2818 = vmul.f32 1.0, %v2817
        %v2819 = vrcp.pop %v2778
        %v2820 = vmul.f32 1.0, %v2819
        %v2821 = vrcp.pop %v2779
        %v2822 = vmul.f32 1.0, %v2821
        %v2823 = vrcp.pop %v2780
        %v2824 = vmul.f32 1.0, %v2823
        %v2825 = vrcp.pop %v2781
        %v2826 = vmul.f32 1.0, %v2825
        %v2827 = vrcp.pop %v2782
        %v2828 = vmul.f32 1.0, %v2827
        %v2829 = vrcp.pop %v2783
        %v2830 = vmul.f32 1.0, %v2829
        %v2831 = vrcp.pop %v2784
        %v2832 = vmul.f32 1.0, %v2831
        %v2833 = vadd.f32 %v2786, 1.0
        %v2834 = vadd.f32 %v2788, 1.0
        %v2835 = vadd.f32 %v2790, 1.0
        %v2836 = vadd.f32 %v2792, 1.0
        %v2837 = vadd.f32 %v2794, 1.0
        %v2838 = vadd.f32 %v2796, 1.0
        %v2839 = vadd.f32 %v2798, 1.0
        %v2840 = vadd.f32 %v2800, 1.0
        %v2841 = vadd.f32 %v2802, 1.0
        %v2842 = vadd.f32 %v2804, 1.0
        %v2843 = vadd.f32 %v2806, 1.0
        %v2844 = vadd.f32 %v2808, 1.0
        %v2845 = vadd.f32 %v2810, 1.0
        %v2846 = vadd.f32 %v2812, 1.0
        %v2847 = vadd.f32 %v2814, 1.0
        %v2848 = vadd.f32 %v2816, 1.0
        %v2849 = vadd.f32 %v2818, 1.0
        %v2850 = vadd.f32 %v2820, 1.0
        %v2851 = vadd.f32 %v2822, 1.0
        %v2852 = vadd.f32 %v2824, 1.0
        %v2853 = vadd.f32 %v2826, 1.0
        %v2854 = vadd.f32 %v2828, 1.0
        %v2855 = vadd.f32 %v2830, 1.0
        %v2856 = vadd.f32 %v2832, 1.0
        %v2857 = vmul.f32 %v323, %v2833
        %v2858 = vmul.f32 %v324, %v2834
        %v2859 = vmul.f32 %v325, %v2835
        %v2860 = vmul.f32 %v326, %v2836
        %v2861 = vmul.f32 %v327, %v2837
        %v2862 = vmul.f32 %v328, %v2838
        %v2863 = vmul.f32 %v329, %v2839
        %v2864 = vmul.f32 %v330, %v2840
        %v2865 = vmul.f32 %v331, %v2841
        %v2866 = vmul.f32 %v332, %v2842
        %v2867 = vmul.f32 %v333, %v2843
        %v2868 = vmul.f32 %v334, %v2844
        %v2869 = vmul.f32 %v335, %v2845
        %v2870 = vmul.f32 %v336, %v2846
        %v2871 = vmul.f32 %v337, %v2847
        %v2872 = vmul.f32 %v338, %v2848
        %v2873 = vmul.f32 %v339, %v2849
        %v2874 = vmul.f32 %v340, %v2850
        %v2875 = vmul.f32 %v341, %v2851
        %v2876 = vmul.f32 %v342, %v2852
        %v2877 = vmul.f32 %v343, %v2853
        %v2878 = vmul.f32 %v344, %v2854
        %v2879 = vmul.f32 %v345, %v2855
        %v2880 = vmul.f32 %v346, %v2856
        %2881 = vst [vmem:[%s319] sm:$0xff] %v2857
        %2882 = vst [vmem:[%s319 + $0x8] sm:$0xff] %v2858
        %2883 = vst [vmem:[%s319 + $0x10] sm:$0xff] %v2859
        %2884 = vst [vmem:[%s319 + $0x18] sm:$0xff] %v2860
        %2885 = vst [vmem:[%s319 + $0x20] sm:$0xff] %v2861
        %2886 = vst.msk [vmem:[%s319 + $0x28] sm:$0xff] %vm440, %v2862
        %2887 = vst [vmem:[%s319 + $0x30] sm:$0xff] %v2863
        %2888 = vst [vmem:[%s319 + $0x38] sm:$0xff] %v2864
        %2889 = vst [vmem:[%s319 + $0x40] sm:$0xff] %v2865
        %2890 = vst [vmem:[%s319 + $0x48] sm:$0xff] %v2866
        %2891 = vst [vmem:[%s319 + $0x50] sm:$0xff] %v2867
        %2892 = vst.msk [vmem:[%s319 + $0x58] sm:$0xff] %vm440, %v2868
        %2893 = vst [vmem:[%s319 + $0x60] sm:$0xff] %v2869
        %2894 = vst [vmem:[%s319 + $0x68] sm:$0xff] %v2870
        %2895 = vst [vmem:[%s319 + $0x70] sm:$0xff] %v2871
        %2896 = vst [vmem:[%s319 + $0x78] sm:$0xff] %v2872
        %2897 = vst [vmem:[%s319 + $0x80] sm:$0xff] %v2873
        %2898 = vst.msk [vmem:[%s319 + $0x88] sm:$0xff] %vm440, %v2874
        %2899 = vst [vmem:[%s319 + $0x90] sm:$0xff] %v2875
        %2900 = vst [vmem:[%s319 + $0x98] sm:$0xff] %v2876
        %2901 = vst [vmem:[%s319 + $0xa0] sm:$0xff] %v2877
        %2902 = vst [vmem:[%s319 + $0xa8] sm:$0xff] %v2878
        %2903 = vst [vmem:[%s319 + $0xb0] sm:$0xff] %v2879
        %2904 = vst.msk [vmem:[%s319 + $0xb8] sm:$0xff] %vm440, %v2880
        %p2905 = scmp.lt.s32.totalorder %s20, 1
        %s2906 = scalar_select %p2905, %s20, 1
        %s2907 = smul.addr %s2906, 24
        %s2908 = smul.addr %s2907, 8
        %s2909 = scalar_lea.vmem %s8, %s2908
        // Predicated region
        $region57: #{la_forward.1} parent=51 // pred_check
          %p2910 = pneg %p211
        $region58: #{la_forward.1} parent=51 // pred_check_branch
          %2912 = sbr.rel (%p2910) target = $region60
        $region59: #{la_forward.1} parent=51 // pred_region
          _
        $region60: #{la_forward.1} parent=51 // pred_fallthru
          _
      $region52: #{la_forward.1} parent=5 // pred_fallthru
        _
      %p2913 = scmp.le.s32.totalorder 2, %s15
      // Predicated region
      $region61: #{la_forward.1} parent=5 // pred_check
        %p2914 = pneg %p2913
      $region62: #{la_forward.1} parent=5 // pred_check_branch
        %2916 = sbr.rel (%p2914) target = $region64
      $region63: #{la_forward.1} parent=5 // pred_region
        %s2917 = ssub.s32 %s15, 2
        // Predicated region
        $region65: #{la_forward.1} parent=63 // pred_check
          %p2918 = pneg %p217
        $region66: #{la_forward.1} parent=63 // pred_check_branch
          %2920 = sbr.rel (%p2918) target = $region68
        $region67: #{la_forward.1} parent=63 // pred_region
          %p2921 = scmp.lt.s32.totalorder %s21, 1
          %s2922 = scalar_select %p2921, %s21, 1
          %s2923 = smul.addr %s2922, 24
          %s2924 = smul.addr %s2923, 8
          %s2925 = scalar_lea.vmem %s8, %s2924
        $region68: #{la_forward.1} parent=63 // pred_fallthru
          _
      $region64: #{la_forward.1} parent=5 // pred_fallthru
        _
    $region6: #{la_forward.1} parent=1 // loop_footer
      %s19 = sadd.s32 1, %s15
    $region7: #{la_forward.1} parent=1 // loop_footer_branch
      %14 = sbr.rel target = $region3
    $region8: #{la_forward.1} parent=1 // loop_exit
      _
    %2926 = vsyncpa [#allocation3], 1
    %s2927 = scalar_lea.sflag [#allocation3], 1
    %2928 = vsyncpa %s2927, 1

</llo_original>
